<compile_context>
chip_gen: v6e
topology: v6e:2x2x1
jax: 0.10.0
libtpu: 0.0.40
codegen_flags: <defaults>
</compile_context>

<pallas_src>
import functools

import jax
import jax.numpy as jnp
from jax import lax
from jax.experimental import pallas as pl
from jax.experimental.pallas import tpu as pltpu


# ----------------------------------------------------------------------------
# Generation-aware compiler params
# ----------------------------------------------------------------------------
def _vmem_limit_bytes():
    cap = 128 * 1024 * 1024
    try:
        info = pltpu.get_tpu_info()
        cap = int(getattr(info, "vmem_capacity_bytes", cap))
    except Exception:
        pass
    # ~40 MiB on v7x (64 MiB physical), ~100 MiB on v5e/v6e (128 MiB physical)
    return max(32 * 1024 * 1024,
               min(cap - 24 * 1024 * 1024, 100 * 1024 * 1024))


def _compiler_params():
    return pltpu.CompilerParams(
        dimension_semantics=("parallel",),
        vmem_limit_bytes=_vmem_limit_bytes(),
    )


def _weight_spec(shape):
    # Constant-index weight blocks: single-buffer them (index_map is (0,0)
    # for every grid step, so double-buffering buys nothing and costs VMEM).
    index_map = lambda b: tuple(0 for _ in shape)
    try:
        return pl.BlockSpec(shape, index_map, pipeline_mode=pl.Buffered(1))
    except TypeError:  # older API without pipeline_mode
        return pl.BlockSpec(shape, index_map)


# ----------------------------------------------------------------------------
# TF-style LayerNorm (eps inside the sqrt, biased variance)
# ----------------------------------------------------------------------------
def _tf_layernorm(x, gamma, beta, eps):
    mean = jnp.mean(x, axis=-1, keepdims=True)
    xc = x - mean
    var = jnp.mean(xc * xc, axis=-1, keepdims=True)
    return gamma * (xc * lax.rsqrt(var + eps)) + beta


# ----------------------------------------------------------------------------
# Fused encoder-layer kernel (per batch element):
#   LN1 -> QKV -> MHSA -> Wo -> +res -> LN2 -> FF1+ReLU -> FF2 -> +res
#   [-> final LN (last layer only)]
# ----------------------------------------------------------------------------
def _encoder_layer_kernel(x_ref, ln1g_ref, ln1b_ref, wqkv_ref, bqkv_ref,
                          wo_ref, bo_ref, ln2g_ref, ln2b_ref,
                          w1_ref, b1_ref, w2_ref, b2_ref,
                          fing_ref, finb_ref,
                          o_ref, qkv_sc, ctx_sc,
                          *, n_heads, eps, final_eps, apply_final):
    x = x_ref[0].astype(jnp.float32)                       # (S, H)
    S, H = x.shape
    dk = H // n_heads

    # ---------------- attention sublayer ----------------
    xn = _tf_layernorm(x, ln1g_ref[...], ln1b_ref[...], eps)

    # Fused QKV projection (bf16 MXU feed, f32 accumulate); 1/sqrt(dk) is
    # already folded into the Q columns of wqkv/bqkv.  Result lives in a
    # VMEM scratch so the head loop slices a ref, not a big live value.
    qkv_sc[...] = (jnp.dot(xn.astype(jnp.bfloat16), wqkv_ref[...],
                           preferred_element_type=jnp.float32)
                   + bqkv_ref[...]).astype(qkv_sc.dtype)   # (S, 3H) bf16

    for h in range(n_heads):
        q = qkv_sc[:, h * dk:(h + 1) * dk]                       # (S, dk) bf16
        k = qkv_sc[:, H + h * dk: H + (h + 1) * dk]
        v = qkv_sc[:, 2 * H + h * dk: 2 * H + (h + 1) * dk]
        # QK^T without an explicit transpose: contract last axes of both.
        s = lax.dot_general(q, k, (((1,), (1,)), ((), ())),
                            preferred_element_type=jnp.float32)  # (S, S) f32
        m = jnp.max(s, axis=-1, keepdims=True)
        p = jnp.exp(s - m)
        denom = jnp.sum(p, axis=-1, keepdims=True)
        p = p * pl.reciprocal(denom)                             # exact, EUP
        ctx = jnp.dot(p.astype(jnp.bfloat16), v,
                      preferred_element_type=jnp.float32)        # (S, dk)
        # Write this head's context into its column slab of the scratch; the
        # output projection is done once, full-width, after the loop.
        ctx_sc[:, h * dk:(h + 1) * dk] = ctx.astype(ctx_sc.dtype)

    attn = jnp.dot(ctx_sc[...], wo_ref[...],
                   preferred_element_type=jnp.float32) + bo_ref[...]
    x1 = x + attn                                           # residual fused

    # ---------------- feed-forward sublayer ----------------
    xn2 = _tf_layernorm(x1, ln2g_ref[...], ln2b_ref[...], eps)
    hmid = jnp.dot(xn2.astype(jnp.bfloat16), w1_ref[...],
                   preferred_element_type=jnp.float32) + b1_ref[...]
    hmid = jnp.maximum(hmid, 0.0)                           # (S, Dff) in VMEM
    y = jnp.dot(hmid.astype(jnp.bfloat16), w2_ref[...],
                preferred_element_type=jnp.float32) + b2_ref[...]
    x2 = x1 + y                                             # residual fused

    if apply_final:
        # Encoder's final TF-style LayerNorm (eps = 1e-12), folded in.
        x2 = _tf_layernorm(x2, fing_ref[...], finb_ref[...], final_eps)

    o_ref[0] = x2.astype(o_ref.dtype)


def encoder_layer(x, p, final_norm, n_heads, *, eps=1e-5,
                  apply_final=False, final_eps=1e-12):
    B, S, H = x.shape
    Dff = p["ff1_w"].shape[1]
    kernel = functools.partial(_encoder_layer_kernel, n_heads=n_heads, eps=eps,
                               final_eps=final_eps, apply_final=apply_final)

    act_spec = pl.BlockSpec((1, S, H), lambda b: (b, 0, 0))
    vec = lambda n: pl.BlockSpec((1, n), lambda b: (0, 0))

    return pl.pallas_call(
        kernel,
        out_shape=jax.ShapeDtypeStruct((B, S, H), x.dtype),
        grid=(B,),
        in_specs=[
            act_spec,
            vec(H), vec(H),                         # ln1 gamma/beta
            _weight_spec((H, 3 * H)), vec(3 * H),   # wqkv, bqkv
            _weight_spec((H, H)), vec(H),           # wo, bo
            vec(H), vec(H),                         # ln2 gamma/beta
            _weight_spec((H, Dff)), vec(Dff),       # w1, b1
            _weight_spec((Dff, H)), vec(H),         # w2, b2
            vec(H), vec(H),                         # final norm gamma/beta
        ],
        out_specs=act_spec,
        scratch_shapes=[
            pltpu.VMEM((S, 3 * H), jnp.bfloat16),   # fused QKV
            pltpu.VMEM((S, H), jnp.bfloat16),       # per-head contexts
        ],
        compiler_params=_compiler_params(),
    )(x,
      p["ln1_g"].reshape(1, H), p["ln1_b"].reshape(1, H),
      p["wqkv"], p["bqkv"].reshape(1, 3 * H),
      p["wo"], p["bo"].reshape(1, H),
      p["ln2_g"].reshape(1, H), p["ln2_b"].reshape(1, H),
      p["ff1_w"], p["ff1_b"].reshape(1, Dff),
      p["ff2_w"], p["ff2_b"].reshape(1, H),
      final_norm["g"].reshape(1, H), final_norm["b"].reshape(1, H))


# ----------------------------------------------------------------------------
# Parameters (deterministic, synthetic): weights bf16 (MXU), biases/LN f32.
# The 1/sqrt(dk) attention scale is folded into the Q weights/bias at init.
# ----------------------------------------------------------------------------
def init_params(key, n_layers, hidden, d_ff, n_heads):
    dk = hidden // n_heads
    q_scale = 1.0 / (dk ** 0.5)

    def dense(k, fan_in, fan_out, scale=1.0):
        w = jax.random.normal(k, (fan_in, fan_out), jnp.float32) * 0.02 * scale
        b = jnp.zeros((fan_out,), jnp.float32) * scale
        return w.astype(jnp.bfloat16), b

    params = []
    for lk in jax.random.split(key, n_layers):
        ks = jax.random.split(lk, 6)
        wq, bq = dense(ks[0], hidden, hidden, scale=q_scale)  # scale folded in
        wk, bk = dense(ks[1], hidden, hidden)
        wv, bv = dense(ks[2], hidden, hidden)
        wo, bo = dense(ks[3], hidden, hidden)
        w1, b1 = dense(ks[4], hidden, d_ff)
        w2, b2 = dense(ks[5], d_ff, hidden)
        params.append({
            "ln1_g": jnp.ones((hidden,), jnp.float32),
            "ln1_b": jnp.zeros((hidden,), jnp.float32),
            "ln2_g": jnp.ones((hidden,), jnp.float32),
            "ln2_b": jnp.zeros((hidden,), jnp.float32),
            "wqkv": jnp.concatenate([wq, wk, wv], axis=1),   # (H, 3H) bf16
            "bqkv": jnp.concatenate([bq, bk, bv], axis=0),   # (3H,)  f32
            "wo": wo, "bo": bo,
            "ff1_w": w1, "ff1_b": b1,
            "ff2_w": w2, "ff2_b": b2,
        })
    final_norm = {"g": jnp.ones((hidden,), jnp.float32),
                  "b": jnp.zeros((hidden,), jnp.float32)}
    return params, final_norm


# ----------------------------------------------------------------------------
# Encoder forward: stack of N fused layers; the final TF-style LayerNorm
# (eps = 1e-12) is folded into the last layer's kernel.
# ----------------------------------------------------------------------------
def encoder_forward(x, params, final_norm, n_heads, mask=None):
    # TODO(synk): mask is ignored (mask=None path only).
    n = len(params)
    for i, p in enumerate(params):
        x = encoder_layer(x, p, final_norm, n_heads, eps=1e-5,
                          apply_final=(i == n - 1), final_eps=1e-12)
    return x


# ----------------------------------------------------------------------------
if __name__ == "__main__":
    B, S, H = 2, 8, 32
    N_HEADS, D_FF, N_LAYERS = 4, 64, 4

    key = jax.random.PRNGKey(0)
    kx, kp = jax.random.split(key)
    x = jax.random.normal(kx, (B, S, H), jnp.float32)
    params, final_norm = init_params(kp, N_LAYERS, H, D_FF, N_HEADS)

    fwd = jax.jit(functools.partial(encoder_forward, n_heads=N_HEADS))
    out = jax.block_until_ready(fwd(x, params, final_norm))

    assert out.shape == (B, S, H) and out.dtype == jnp.float32
    assert bool(jnp.all(jnp.isfinite(out)))
    print("KERNEL_OK")
</pallas_src>

<mosaic_0001>
module attributes {stable_mosaic.version = 11 : i64} {
  func.func @_encoder_layer_kernel(%arg0: i32, %arg1: memref<1x8x32xf32, #tpu.memory_space<vmem>>, %arg2: memref<1x32xf32, #tpu.memory_space<vmem>>, %arg3: memref<1x32xf32, #tpu.memory_space<vmem>>, %arg4: memref<32x96xbf16, #tpu.memory_space<vmem>>, %arg5: memref<1x96xf32, #tpu.memory_space<vmem>>, %arg6: memref<32x32xbf16, #tpu.memory_space<vmem>>, %arg7: memref<1x32xf32, #tpu.memory_space<vmem>>, %arg8: memref<1x32xf32, #tpu.memory_space<vmem>>, %arg9: memref<1x32xf32, #tpu.memory_space<vmem>>, %arg10: memref<32x64xbf16, #tpu.memory_space<vmem>>, %arg11: memref<1x64xf32, #tpu.memory_space<vmem>>, %arg12: memref<64x32xbf16, #tpu.memory_space<vmem>>, %arg13: memref<1x32xf32, #tpu.memory_space<vmem>>, %arg14: memref<1x32xf32, #tpu.memory_space<vmem>>, %arg15: memref<1x32xf32, #tpu.memory_space<vmem>>, %arg16: memref<1x8x32xf32, #tpu.memory_space<vmem>>, %arg17: memref<8x96xbf16, #tpu.memory_space<vmem>>, %arg18: memref<8x32xbf16, #tpu.memory_space<vmem>>) attributes {dimension_semantics = [#tpu.dimension_semantics<parallel>], iteration_bounds = array<i64: 2>, scalar_prefetch = 0 : i64, scratch_operands = 2 : i64, tpu.core_type = #tpu.core_type<tc>, window_params = [{transform_indices = @transform_0, window_bounds = array<i64: 1, 8, 32>}, {pipeline_mode = #tpu.pipeline_mode<synchronous>, transform_indices = @transform_1, window_bounds = array<i64: 1, 32>}, {pipeline_mode = #tpu.pipeline_mode<synchronous>, transform_indices = @transform_2, window_bounds = array<i64: 1, 32>}, {pipeline_mode = #tpu.pipeline_mode<synchronous>, transform_indices = @transform_3, window_bounds = array<i64: 32, 96>}, {pipeline_mode = #tpu.pipeline_mode<synchronous>, transform_indices = @transform_4, window_bounds = array<i64: 1, 96>}, {pipeline_mode = #tpu.pipeline_mode<synchronous>, transform_indices = @transform_5, window_bounds = array<i64: 32, 32>}, {pipeline_mode = #tpu.pipeline_mode<synchronous>, transform_indices = @transform_6, window_bounds = array<i64: 1, 32>}, {pipeline_mode = #tpu.pipeline_mode<synchronous>, transform_indices = @transform_7, window_bounds = array<i64: 1, 32>}, {pipeline_mode = #tpu.pipeline_mode<synchronous>, transform_indices = @transform_8, window_bounds = array<i64: 1, 32>}, {pipeline_mode = #tpu.pipeline_mode<synchronous>, transform_indices = @transform_9, window_bounds = array<i64: 32, 64>}, {pipeline_mode = #tpu.pipeline_mode<synchronous>, transform_indices = @transform_10, window_bounds = array<i64: 1, 64>}, {pipeline_mode = #tpu.pipeline_mode<synchronous>, transform_indices = @transform_11, window_bounds = array<i64: 64, 32>}, {pipeline_mode = #tpu.pipeline_mode<synchronous>, transform_indices = @transform_12, window_bounds = array<i64: 1, 32>}, {pipeline_mode = #tpu.pipeline_mode<synchronous>, transform_indices = @transform_13, window_bounds = array<i64: 1, 32>}, {pipeline_mode = #tpu.pipeline_mode<synchronous>, transform_indices = @transform_14, window_bounds = array<i64: 1, 32>}, {transform_indices = @transform_15, window_bounds = array<i64: 1, 8, 32>}]} {
    %c0 = arith.constant 0 : index
    %c0_0 = arith.constant 0 : index
    %c0_1 = arith.constant 0 : index
    %0 = vector.load %arg1[%c0, %c0_0, %c0_1] : memref<1x8x32xf32, #tpu.memory_space<vmem>>, vector<1x8x32xf32>
    %1 = vector.shape_cast %0 : vector<1x8x32xf32> to vector<8x32xf32>
    %c0_2 = arith.constant 0 : index
    %c0_3 = arith.constant 0 : index
    %2 = vector.load %arg2[%c0_2, %c0_3] : memref<1x32xf32, #tpu.memory_space<vmem>>, vector<1x32xf32>
    %c0_4 = arith.constant 0 : index
    %c0_5 = arith.constant 0 : index
    %3 = vector.load %arg3[%c0_4, %c0_5] : memref<1x32xf32, #tpu.memory_space<vmem>>, vector<1x32xf32>
    %cst = arith.constant dense<0.000000e+00> : vector<8xf32>
    %4 = vector.multi_reduction <add>, %1, %cst [1] : vector<8x32xf32> to vector<8xf32>
    %5 = vector.shape_cast %4 : vector<8xf32> to vector<8x1xf32>
    %cst_6 = arith.constant 3.200000e+01 : f32
    %6 = vector.broadcast %cst_6 : f32 to vector<8x1xf32>
    %7 = arith.divf %5, %6 : vector<8x1xf32>
    %8 = vector.broadcast %7 : vector<8x1xf32> to vector<8x32xf32>
    %9 = arith.subf %1, %8 : vector<8x32xf32>
    %10 = arith.mulf %9, %9 : vector<8x32xf32>
    %cst_7 = arith.constant dense<0.000000e+00> : vector<8xf32>
    %11 = vector.multi_reduction <add>, %10, %cst_7 [1] : vector<8x32xf32> to vector<8xf32>
    %12 = vector.shape_cast %11 : vector<8xf32> to vector<8x1xf32>
    %cst_8 = arith.constant 3.200000e+01 : f32
    %13 = vector.broadcast %cst_8 : f32 to vector<8x1xf32>
    %14 = arith.divf %12, %13 : vector<8x1xf32>
    %cst_9 = arith.constant 9.99999974E-6 : f32
    %15 = vector.broadcast %cst_9 : f32 to vector<8x1xf32>
    %16 = arith.addf %14, %15 : vector<8x1xf32>
    %17 = math.rsqrt %16 : vector<8x1xf32>
    %18 = vector.broadcast %17 : vector<8x1xf32> to vector<8x32xf32>
    %19 = arith.mulf %9, %18 : vector<8x32xf32>
    %20 = vector.broadcast %2 : vector<1x32xf32> to vector<8x32xf32>
    %21 = arith.mulf %20, %19 : vector<8x32xf32>
    %22 = vector.broadcast %3 : vector<1x32xf32> to vector<8x32xf32>
    %23 = arith.addf %21, %22 : vector<8x32xf32>
    %24 = arith.truncf %23 : vector<8x32xf32> to vector<8x32xbf16>
    %c0_10 = arith.constant 0 : index
    %c0_11 = arith.constant 0 : index
    %25 = vector.load %arg4[%c0_10, %c0_11] : memref<32x96xbf16, #tpu.memory_space<vmem>>, vector<32x96xbf16>
    %cst_12 = arith.constant dense<0.000000e+00> : vector<8x96xf32>
    %26 = tpu.matmul %24, %25, %cst_12 {dimension_numbers = #tpu.dot_dimension_numbers<[1], [0], [0], [1], [0, 0, 1, 1], [], []>} : vector<8x32xbf16>, vector<32x96xbf16>, vector<8x96xf32> -> vector<8x96xf32>
    %c0_13 = arith.constant 0 : index
    %c0_14 = arith.constant 0 : index
    %27 = vector.load %arg5[%c0_13, %c0_14] : memref<1x96xf32, #tpu.memory_space<vmem>>, vector<1x96xf32>
    %28 = vector.broadcast %27 : vector<1x96xf32> to vector<8x96xf32>
    %29 = arith.addf %26, %28 : vector<8x96xf32>
    %30 = arith.truncf %29 : vector<8x96xf32> to vector<8x96xbf16>
    %c0_15 = arith.constant 0 : index
    %c0_16 = arith.constant 0 : index
    %31 = vector.load %arg17[%c0_15, %c0_16] : memref<8x96xbf16, #tpu.memory_space<vmem>>, vector<8x96xbf16>
    tpu.vector_store %arg17[%c0_15, %c0_16], %30 {strides = array<i32>} : memref<8x96xbf16, #tpu.memory_space<vmem>>, vector<8x96xbf16>,
    %c0_17 = arith.constant 0 : index
    %c0_18 = arith.constant 0 : index
    %32 = vector.load %arg17[%c0_17, %c0_18] : memref<8x96xbf16, #tpu.memory_space<vmem>>, vector<8x8xbf16>
    %c0_19 = arith.constant 0 : index
    %c32 = arith.constant 32 : index
    %33 = vector.load %arg17[%c0_19, %c32] : memref<8x96xbf16, #tpu.memory_space<vmem>>, vector<8x8xbf16>
    %c0_20 = arith.constant 0 : index
    %c64 = arith.constant 64 : index
    %34 = vector.load %arg17[%c0_20, %c64] : memref<8x96xbf16, #tpu.memory_space<vmem>>, vector<8x8xbf16>
    %cst_21 = arith.constant dense<0.000000e+00> : vector<8x8xf32>
    %35 = tpu.matmul %32, %33, %cst_21 {dimension_numbers = #tpu.dot_dimension_numbers<[1], [1], [0], [0], [0, 0, 1, 0], [], []>} : vector<8x8xbf16>, vector<8x8xbf16>, vector<8x8xf32> -> vector<8x8xf32>
    %cst_22 = arith.constant dense<0xFF800000> : vector<8xf32>
    %36 = vector.multi_reduction <maximumf>, %35, %cst_22 [1] : vector<8x8xf32> to vector<8xf32>
    %37 = vector.shape_cast %36 : vector<8xf32> to vector<8x1xf32>
    %38 = vector.broadcast %37 : vector<8x1xf32> to vector<8x8xf32>
    %39 = arith.subf %35, %38 : vector<8x8xf32>
    %40 = math.exp %39 : vector<8x8xf32>
    %cst_23 = arith.constant dense<0.000000e+00> : vector<8xf32>
    %41 = vector.multi_reduction <add>, %40, %cst_23 [1] : vector<8x8xf32> to vector<8xf32>
    %42 = vector.shape_cast %41 : vector<8xf32> to vector<8x1xf32>
    %43 = tpu.reciprocal %42 : vector<8x1xf32> -> vector<8x1xf32>
    %44 = vector.broadcast %43 : vector<8x1xf32> to vector<8x8xf32>
    %45 = arith.mulf %40, %44 : vector<8x8xf32>
    %46 = arith.truncf %45 : vector<8x8xf32> to vector<8x8xbf16>
    %cst_24 = arith.constant dense<0.000000e+00> : vector<8x8xf32>
    %47 = tpu.matmul %46, %34, %cst_24 {dimension_numbers = #tpu.dot_dimension_numbers<[1], [0], [0], [1], [0, 0, 1, 1], [], []>} : vector<8x8xbf16>, vector<8x8xbf16>, vector<8x8xf32> -> vector<8x8xf32>
    %48 = arith.truncf %47 : vector<8x8xf32> to vector<8x8xbf16>
    %c0_25 = arith.constant 0 : index
    %c0_26 = arith.constant 0 : index
    %49 = vector.load %arg18[%c0_25, %c0_26] : memref<8x32xbf16, #tpu.memory_space<vmem>>, vector<8x8xbf16>
    tpu.vector_store %arg18[%c0_25, %c0_26], %48 {strides = array<i32>} : memref<8x32xbf16, #tpu.memory_space<vmem>>, vector<8x8xbf16>,
    %c0_27 = arith.constant 0 : index
    %c8 = arith.constant 8 : index
    %50 = vector.load %arg17[%c0_27, %c8] : memref<8x96xbf16, #tpu.memory_space<vmem>>, vector<8x8xbf16>
    %c0_28 = arith.constant 0 : index
    %c40 = arith.constant 40 : index
    %51 = vector.load %arg17[%c0_28, %c40] : memref<8x96xbf16, #tpu.memory_space<vmem>>, vector<8x8xbf16>
    %c0_29 = arith.constant 0 : index
    %c72 = arith.constant 72 : index
    %52 = vector.load %arg17[%c0_29, %c72] : memref<8x96xbf16, #tpu.memory_space<vmem>>, vector<8x8xbf16>
    %cst_30 = arith.constant dense<0.000000e+00> : vector<8x8xf32>
    %53 = tpu.matmul %50, %51, %cst_30 {dimension_numbers = #tpu.dot_dimension_numbers<[1], [1], [0], [0], [0, 0, 1, 0], [], []>} : vector<8x8xbf16>, vector<8x8xbf16>, vector<8x8xf32> -> vector<8x8xf32>
    %cst_31 = arith.constant dense<0xFF800000> : vector<8xf32>
    %54 = vector.multi_reduction <maximumf>, %53, %cst_31 [1] : vector<8x8xf32> to vector<8xf32>
    %55 = vector.shape_cast %54 : vector<8xf32> to vector<8x1xf32>
    %56 = vector.broadcast %55 : vector<8x1xf32> to vector<8x8xf32>
    %57 = arith.subf %53, %56 : vector<8x8xf32>
    %58 = math.exp %57 : vector<8x8xf32>
    %cst_32 = arith.constant dense<0.000000e+00> : vector<8xf32>
    %59 = vector.multi_reduction <add>, %58, %cst_32 [1] : vector<8x8xf32> to vector<8xf32>
    %60 = vector.shape_cast %59 : vector<8xf32> to vector<8x1xf32>
    %61 = tpu.reciprocal %60 : vector<8x1xf32> -> vector<8x1xf32>
    %62 = vector.broadcast %61 : vector<8x1xf32> to vector<8x8xf32>
    %63 = arith.mulf %58, %62 : vector<8x8xf32>
    %64 = arith.truncf %63 : vector<8x8xf32> to vector<8x8xbf16>
    %cst_33 = arith.constant dense<0.000000e+00> : vector<8x8xf32>
    %65 = tpu.matmul %64, %52, %cst_33 {dimension_numbers = #tpu.dot_dimension_numbers<[1], [0], [0], [1], [0, 0, 1, 1], [], []>} : vector<8x8xbf16>, vector<8x8xbf16>, vector<8x8xf32> -> vector<8x8xf32>
    %66 = arith.truncf %65 : vector<8x8xf32> to vector<8x8xbf16>
    %c0_34 = arith.constant 0 : index
    %c8_35 = arith.constant 8 : index
    %67 = vector.load %arg18[%c0_34, %c8_35] : memref<8x32xbf16, #tpu.memory_space<vmem>>, vector<8x8xbf16>
    tpu.vector_store %arg18[%c0_34, %c8_35], %66 {strides = array<i32>} : memref<8x32xbf16, #tpu.memory_space<vmem>>, vector<8x8xbf16>,
    %c0_36 = arith.constant 0 : index
    %c16 = arith.constant 16 : index
    %68 = vector.load %arg17[%c0_36, %c16] : memref<8x96xbf16, #tpu.memory_space<vmem>>, vector<8x8xbf16>
    %c0_37 = arith.constant 0 : index
    %c48 = arith.constant 48 : index
    %69 = vector.load %arg17[%c0_37, %c48] : memref<8x96xbf16, #tpu.memory_space<vmem>>, vector<8x8xbf16>
    %c0_38 = arith.constant 0 : index
    %c80 = arith.constant 80 : index
    %70 = vector.load %arg17[%c0_38, %c80] : memref<8x96xbf16, #tpu.memory_space<vmem>>, vector<8x8xbf16>
    %cst_39 = arith.constant dense<0.000000e+00> : vector<8x8xf32>
    %71 = tpu.matmul %68, %69, %cst_39 {dimension_numbers = #tpu.dot_dimension_numbers<[1], [1], [0], [0], [0, 0, 1, 0], [], []>} : vector<8x8xbf16>, vector<8x8xbf16>, vector<8x8xf32> -> vector<8x8xf32>
    %cst_40 = arith.constant dense<0xFF800000> : vector<8xf32>
    %72 = vector.multi_reduction <maximumf>, %71, %cst_40 [1] : vector<8x8xf32> to vector<8xf32>
    %73 = vector.shape_cast %72 : vector<8xf32> to vector<8x1xf32>
    %74 = vector.broadcast %73 : vector<8x1xf32> to vector<8x8xf32>
    %75 = arith.subf %71, %74 : vector<8x8xf32>
    %76 = math.exp %75 : vector<8x8xf32>
    %cst_41 = arith.constant dense<0.000000e+00> : vector<8xf32>
    %77 = vector.multi_reduction <add>, %76, %cst_41 [1] : vector<8x8xf32> to vector<8xf32>
    %78 = vector.shape_cast %77 : vector<8xf32> to vector<8x1xf32>
    %79 = tpu.reciprocal %78 : vector<8x1xf32> -> vector<8x1xf32>
    %80 = vector.broadcast %79 : vector<8x1xf32> to vector<8x8xf32>
    %81 = arith.mulf %76, %80 : vector<8x8xf32>
    %82 = arith.truncf %81 : vector<8x8xf32> to vector<8x8xbf16>
    %cst_42 = arith.constant dense<0.000000e+00> : vector<8x8xf32>
    %83 = tpu.matmul %82, %70, %cst_42 {dimension_numbers = #tpu.dot_dimension_numbers<[1], [0], [0], [1], [0, 0, 1, 1], [], []>} : vector<8x8xbf16>, vector<8x8xbf16>, vector<8x8xf32> -> vector<8x8xf32>
    %84 = arith.truncf %83 : vector<8x8xf32> to vector<8x8xbf16>
    %c0_43 = arith.constant 0 : index
    %c16_44 = arith.constant 16 : index
    %85 = vector.load %arg18[%c0_43, %c16_44] : memref<8x32xbf16, #tpu.memory_space<vmem>>, vector<8x8xbf16>
    tpu.vector_store %arg18[%c0_43, %c16_44], %84 {strides = array<i32>} : memref<8x32xbf16, #tpu.memory_space<vmem>>, vector<8x8xbf16>,
    %c0_45 = arith.constant 0 : index
    %c24 = arith.constant 24 : index
    %86 = vector.load %arg17[%c0_45, %c24] : memref<8x96xbf16, #tpu.memory_space<vmem>>, vector<8x8xbf16>
    %c0_46 = arith.constant 0 : index
    %c56 = arith.constant 56 : index
    %87 = vector.load %arg17[%c0_46, %c56] : memref<8x96xbf16, #tpu.memory_space<vmem>>, vector<8x8xbf16>
    %c0_47 = arith.constant 0 : index
    %c88 = arith.constant 88 : index
    %88 = vector.load %arg17[%c0_47, %c88] : memref<8x96xbf16, #tpu.memory_space<vmem>>, vector<8x8xbf16>
    %cst_48 = arith.constant dense<0.000000e+00> : vector<8x8xf32>
    %89 = tpu.matmul %86, %87, %cst_48 {dimension_numbers = #tpu.dot_dimension_numbers<[1], [1], [0], [0], [0, 0, 1, 0], [], []>} : vector<8x8xbf16>, vector<8x8xbf16>, vector<8x8xf32> -> vector<8x8xf32>
    %cst_49 = arith.constant dense<0xFF800000> : vector<8xf32>
    %90 = vector.multi_reduction <maximumf>, %89, %cst_49 [1] : vector<8x8xf32> to vector<8xf32>
    %91 = vector.shape_cast %90 : vector<8xf32> to vector<8x1xf32>
    %92 = vector.broadcast %91 : vector<8x1xf32> to vector<8x8xf32>
    %93 = arith.subf %89, %92 : vector<8x8xf32>
    %94 = math.exp %93 : vector<8x8xf32>
    %cst_50 = arith.constant dense<0.000000e+00> : vector<8xf32>
    %95 = vector.multi_reduction <add>, %94, %cst_50 [1] : vector<8x8xf32> to vector<8xf32>
    %96 = vector.shape_cast %95 : vector<8xf32> to vector<8x1xf32>
    %97 = tpu.reciprocal %96 : vector<8x1xf32> -> vector<8x1xf32>
    %98 = vector.broadcast %97 : vector<8x1xf32> to vector<8x8xf32>
    %99 = arith.mulf %94, %98 : vector<8x8xf32>
    %100 = arith.truncf %99 : vector<8x8xf32> to vector<8x8xbf16>
    %cst_51 = arith.constant dense<0.000000e+00> : vector<8x8xf32>
    %101 = tpu.matmul %100, %88, %cst_51 {dimension_numbers = #tpu.dot_dimension_numbers<[1], [0], [0], [1], [0, 0, 1, 1], [], []>} : vector<8x8xbf16>, vector<8x8xbf16>, vector<8x8xf32> -> vector<8x8xf32>
    %102 = arith.truncf %101 : vector<8x8xf32> to vector<8x8xbf16>
    %c0_52 = arith.constant 0 : index
    %c24_53 = arith.constant 24 : index
    %103 = vector.load %arg18[%c0_52, %c24_53] : memref<8x32xbf16, #tpu.memory_space<vmem>>, vector<8x8xbf16>
    tpu.vector_store %arg18[%c0_52, %c24_53], %102 {strides = array<i32>} : memref<8x32xbf16, #tpu.memory_space<vmem>>, vector<8x8xbf16>,
    %c0_54 = arith.constant 0 : index
    %c0_55 = arith.constant 0 : index
    %104 = vector.load %arg18[%c0_54, %c0_55] : memref<8x32xbf16, #tpu.memory_space<vmem>>, vector<8x32xbf16>
    %c0_56 = arith.constant 0 : index
    %c0_57 = arith.constant 0 : index
    %105 = vector.load %arg6[%c0_56, %c0_57] : memref<32x32xbf16, #tpu.memory_space<vmem>>, vector<32x32xbf16>
    %cst_58 = arith.constant dense<0.000000e+00> : vector<8x32xf32>
    %106 = tpu.matmul %104, %105, %cst_58 {dimension_numbers = #tpu.dot_dimension_numbers<[1], [0], [0], [1], [0, 0, 1, 1], [], []>} : vector<8x32xbf16>, vector<32x32xbf16>, vector<8x32xf32> -> vector<8x32xf32>
    %c0_59 = arith.constant 0 : index
    %c0_60 = arith.constant 0 : index
    %107 = vector.load %arg7[%c0_59, %c0_60] : memref<1x32xf32, #tpu.memory_space<vmem>>, vector<1x32xf32>
    %108 = vector.broadcast %107 : vector<1x32xf32> to vector<8x32xf32>
    %109 = arith.addf %106, %108 : vector<8x32xf32>
    %110 = arith.addf %1, %109 : vector<8x32xf32>
    %c0_61 = arith.constant 0 : index
    %c0_62 = arith.constant 0 : index
    %111 = vector.load %arg8[%c0_61, %c0_62] : memref<1x32xf32, #tpu.memory_space<vmem>>, vector<1x32xf32>
    %c0_63 = arith.constant 0 : index
    %c0_64 = arith.constant 0 : index
    %112 = vector.load %arg9[%c0_63, %c0_64] : memref<1x32xf32, #tpu.memory_space<vmem>>, vector<1x32xf32>
    %cst_65 = arith.constant dense<0.000000e+00> : vector<8xf32>
    %113 = vector.multi_reduction <add>, %110, %cst_65 [1] : vector<8x32xf32> to vector<8xf32>
    %114 = vector.shape_cast %113 : vector<8xf32> to vector<8x1xf32>
    %cst_66 = arith.constant 3.200000e+01 : f32
    %115 = vector.broadcast %cst_66 : f32 to vector<8x1xf32>
    %116 = arith.divf %114, %115 : vector<8x1xf32>
    %117 = vector.broadcast %116 : vector<8x1xf32> to vector<8x32xf32>
    %118 = arith.subf %110, %117 : vector<8x32xf32>
    %119 = arith.mulf %118, %118 : vector<8x32xf32>
    %cst_67 = arith.constant dense<0.000000e+00> : vector<8xf32>
    %120 = vector.multi_reduction <add>, %119, %cst_67 [1] : vector<8x32xf32> to vector<8xf32>
    %121 = vector.shape_cast %120 : vector<8xf32> to vector<8x1xf32>
    %cst_68 = arith.constant 3.200000e+01 : f32
    %122 = vector.broadcast %cst_68 : f32 to vector<8x1xf32>
    %123 = arith.divf %121, %122 : vector<8x1xf32>
    %cst_69 = arith.constant 9.99999974E-6 : f32
    %124 = vector.broadcast %cst_69 : f32 to vector<8x1xf32>
    %125 = arith.addf %123, %124 : vector<8x1xf32>
    %126 = math.rsqrt %125 : vector<8x1xf32>
    %127 = vector.broadcast %126 : vector<8x1xf32> to vector<8x32xf32>
    %128 = arith.mulf %118, %127 : vector<8x32xf32>
    %129 = vector.broadcast %111 : vector<1x32xf32> to vector<8x32xf32>
    %130 = arith.mulf %129, %128 : vector<8x32xf32>
    %131 = vector.broadcast %112 : vector<1x32xf32> to vector<8x32xf32>
    %132 = arith.addf %130, %131 : vector<8x32xf32>
    %133 = arith.truncf %132 : vector<8x32xf32> to vector<8x32xbf16>
    %c0_70 = arith.constant 0 : index
    %c0_71 = arith.constant 0 : index
    %134 = vector.load %arg10[%c0_70, %c0_71] : memref<32x64xbf16, #tpu.memory_space<vmem>>, vector<32x64xbf16>
    %cst_72 = arith.constant dense<0.000000e+00> : vector<8x64xf32>
    %135 = tpu.matmul %133, %134, %cst_72 {dimension_numbers = #tpu.dot_dimension_numbers<[1], [0], [0], [1], [0, 0, 1, 1], [], []>} : vector<8x32xbf16>, vector<32x64xbf16>, vector<8x64xf32> -> vector<8x64xf32>
    %c0_73 = arith.constant 0 : index
    %c0_74 = arith.constant 0 : index
    %136 = vector.load %arg11[%c0_73, %c0_74] : memref<1x64xf32, #tpu.memory_space<vmem>>, vector<1x64xf32>
    %137 = vector.broadcast %136 : vector<1x64xf32> to vector<8x64xf32>
    %138 = arith.addf %135, %137 : vector<8x64xf32>
    %cst_75 = arith.constant 0.000000e+00 : f32
    %139 = vector.broadcast %cst_75 : f32 to vector<8x64xf32>
    %140 = arith.maximumf %138, %139 : vector<8x64xf32>
    %141 = arith.truncf %140 : vector<8x64xf32> to vector<8x64xbf16>
    %c0_76 = arith.constant 0 : index
    %c0_77 = arith.constant 0 : index
    %142 = vector.load %arg12[%c0_76, %c0_77] : memref<64x32xbf16, #tpu.memory_space<vmem>>, vector<64x32xbf16>
    %cst_78 = arith.constant dense<0.000000e+00> : vector<8x32xf32>
    %143 = tpu.matmul %141, %142, %cst_78 {dimension_numbers = #tpu.dot_dimension_numbers<[1], [0], [0], [1], [0, 0, 1, 1], [], []>} : vector<8x64xbf16>, vector<64x32xbf16>, vector<8x32xf32> -> vector<8x32xf32>
    %c0_79 = arith.constant 0 : index
    %c0_80 = arith.constant 0 : index
    %144 = vector.load %arg13[%c0_79, %c0_80] : memref<1x32xf32, #tpu.memory_space<vmem>>, vector<1x32xf32>
    %145 = vector.broadcast %144 : vector<1x32xf32> to vector<8x32xf32>
    %146 = arith.addf %143, %145 : vector<8x32xf32>
    %147 = arith.addf %110, %146 : vector<8x32xf32>
    %c0_81 = arith.constant 0 : index
    %c0_82 = arith.constant 0 : index
    %c0_83 = arith.constant 0 : index
    %148 = vector.load %arg16[%c0_81, %c0_82, %c0_83] : memref<1x8x32xf32, #tpu.memory_space<vmem>>, vector<1x8x32xf32>
    %149 = vector.shape_cast %148 : vector<1x8x32xf32> to vector<8x32xf32>
    %150 = vector.shape_cast %147 : vector<8x32xf32> to vector<1x8x32xf32>
    tpu.vector_store %arg16[%c0_81, %c0_82, %c0_83], %150 {strides = array<i32>} : memref<1x8x32xf32, #tpu.memory_space<vmem>>, vector<1x8x32xf32>,
    return
  }
  func.func @transform_0(%arg0: i32) -> (i32, i32, i32) {
    %c0_i32 = arith.constant 0 : i32
    %c0_i32_0 = arith.constant 0 : i32
    %c0_i32_1 = arith.constant 0 : i32
    return %arg0, %c0_i32, %c0_i32_0 : i32, i32, i32
  }
  func.func @transform_1(%arg0: i32) -> (i32, i32) {
    %c0_i32 = arith.constant 0 : i32
    %c0_i32_0 = arith.constant 0 : i32
    %c0_i32_1 = arith.constant 0 : i32
    return %c0_i32, %c0_i32_0 : i32, i32
  }
  func.func @transform_2(%arg0: i32) -> (i32, i32) {
    %c0_i32 = arith.constant 0 : i32
    %c0_i32_0 = arith.constant 0 : i32
    %c0_i32_1 = arith.constant 0 : i32
    return %c0_i32, %c0_i32_0 : i32, i32
  }
  func.func @transform_3(%arg0: i32) -> (i32, i32) {
    %c0_i32 = arith.constant 0 : i32
    %c0_i32_0 = arith.constant 0 : i32
    %c0_i32_1 = arith.constant 0 : i32
    return %c0_i32, %c0_i32_0 : i32, i32
  }
  func.func @transform_4(%arg0: i32) -> (i32, i32) {
    %c0_i32 = arith.constant 0 : i32
    %c0_i32_0 = arith.constant 0 : i32
    %c0_i32_1 = arith.constant 0 : i32
    return %c0_i32, %c0_i32_0 : i32, i32
  }
  func.func @transform_5(%arg0: i32) -> (i32, i32) {
    %c0_i32 = arith.constant 0 : i32
    %c0_i32_0 = arith.constant 0 : i32
    %c0_i32_1 = arith.constant 0 : i32
    return %c0_i32, %c0_i32_0 : i32, i32
  }
  func.func @transform_6(%arg0: i32) -> (i32, i32) {
    %c0_i32 = arith.constant 0 : i32
    %c0_i32_0 = arith.constant 0 : i32
    %c0_i32_1 = arith.constant 0 : i32
    return %c0_i32, %c0_i32_0 : i32, i32
  }
  func.func @transform_7(%arg0: i32) -> (i32, i32) {
    %c0_i32 = arith.constant 0 : i32
    %c0_i32_0 = arith.constant 0 : i32
    %c0_i32_1 = arith.constant 0 : i32
    return %c0_i32, %c0_i32_0 : i32, i32
  }
  func.func @transform_8(%arg0: i32) -> (i32, i32) {
    %c0_i32 = arith.constant 0 : i32
    %c0_i32_0 = arith.constant 0 : i32
    %c0_i32_1 = arith.constant 0 : i32
    return %c0_i32, %c0_i32_0 : i32, i32
  }
  func.func @transform_9(%arg0: i32) -> (i32, i32) {
    %c0_i32 = arith.constant 0 : i32
    %c0_i32_0 = arith.constant 0 : i32
    %c0_i32_1 = arith.constant 0 : i32
    return %c0_i32, %c0_i32_0 : i32, i32
  }
  func.func @transform_10(%arg0: i32) -> (i32, i32) {
    %c0_i32 = arith.constant 0 : i32
    %c0_i32_0 = arith.constant 0 : i32
    %c0_i32_1 = arith.constant 0 : i32
    return %c0_i32, %c0_i32_0 : i32, i32
  }
  func.func @transform_11(%arg0: i32) -> (i32, i32) {
    %c0_i32 = arith.constant 0 : i32
    %c0_i32_0 = arith.constant 0 : i32
    %c0_i32_1 = arith.constant 0 : i32
    return %c0_i32, %c0_i32_0 : i32, i32
  }
  func.func @transform_12(%arg0: i32) -> (i32, i32) {
    %c0_i32 = arith.constant 0 : i32
    %c0_i32_0 = arith.constant 0 : i32
    %c0_i32_1 = arith.constant 0 : i32
    return %c0_i32, %c0_i32_0 : i32, i32
  }
  func.func @transform_13(%arg0: i32) -> (i32, i32) {
    %c0_i32 = arith.constant 0 : i32
    %c0_i32_0 = arith.constant 0 : i32
    %c0_i32_1 = arith.constant 0 : i32
    return %c0_i32, %c0_i32_0 : i32, i32
  }
  func.func @transform_14(%arg0: i32) -> (i32, i32) {
    %c0_i32 = arith.constant 0 : i32
    %c0_i32_0 = arith.constant 0 : i32
    %c0_i32_1 = arith.constant 0 : i32
    return %c0_i32, %c0_i32_0 : i32, i32
  }
  func.func @transform_15(%arg0: i32) -> (i32, i32, i32) {
    %c0_i32 = arith.constant 0 : i32
    %c0_i32_0 = arith.constant 0 : i32
    %c0_i32_1 = arith.constant 0 : i32
    return %arg0, %c0_i32, %c0_i32_0 : i32, i32, i32
  }
}

module attributes {stable_mosaic.version = 11 : i64} {
  func.func @_encoder_layer_kernel(%arg0: i32, %arg1: memref<1x8x32xf32, #tpu.memory_space<vmem>>, %arg2: memref<1x32xf32, #tpu.memory_space<vmem>>, %arg3: memref<1x32xf32, #tpu.memory_space<vmem>>, %arg4: memref<32x96xbf16, #tpu.memory_space<vmem>>, %arg5: memref<1x96xf32, #tpu.memory_space<vmem>>, %arg6: memref<32x32xbf16, #tpu.memory_space<vmem>>, %arg7: memref<1x32xf32, #tpu.memory_space<vmem>>, %arg8: memref<1x32xf32, #tpu.memory_space<vmem>>, %arg9: memref<1x32xf32, #tpu.memory_space<vmem>>, %arg10: memref<32x64xbf16, #tpu.memory_space<vmem>>, %arg11: memref<1x64xf32, #tpu.memory_space<vmem>>, %arg12: memref<64x32xbf16, #tpu.memory_space<vmem>>, %arg13: memref<1x32xf32, #tpu.memory_space<vmem>>, %arg14: memref<1x32xf32, #tpu.memory_space<vmem>>, %arg15: memref<1x32xf32, #tpu.memory_space<vmem>>, %arg16: memref<1x8x32xf32, #tpu.memory_space<vmem>>, %arg17: memref<8x96xbf16, #tpu.memory_space<vmem>>, %arg18: memref<8x32xbf16, #tpu.memory_space<vmem>>) attributes {dimension_semantics = [#tpu.dimension_semantics<parallel>], iteration_bounds = array<i64: 2>, scalar_prefetch = 0 : i64, scratch_operands = 2 : i64, tpu.core_type = #tpu.core_type<tc>, window_params = [{transform_indices = @transform_0, window_bounds = array<i64: 1, 8, 32>}, {pipeline_mode = #tpu.pipeline_mode<synchronous>, transform_indices = @transform_1, window_bounds = array<i64: 1, 32>}, {pipeline_mode = #tpu.pipeline_mode<synchronous>, transform_indices = @transform_2, window_bounds = array<i64: 1, 32>}, {pipeline_mode = #tpu.pipeline_mode<synchronous>, transform_indices = @transform_3, window_bounds = array<i64: 32, 96>}, {pipeline_mode = #tpu.pipeline_mode<synchronous>, transform_indices = @transform_4, window_bounds = array<i64: 1, 96>}, {pipeline_mode = #tpu.pipeline_mode<synchronous>, transform_indices = @transform_5, window_bounds = array<i64: 32, 32>}, {pipeline_mode = #tpu.pipeline_mode<synchronous>, transform_indices = @transform_6, window_bounds = array<i64: 1, 32>}, {pipeline_mode = #tpu.pipeline_mode<synchronous>, transform_indices = @transform_7, window_bounds = array<i64: 1, 32>}, {pipeline_mode = #tpu.pipeline_mode<synchronous>, transform_indices = @transform_8, window_bounds = array<i64: 1, 32>}, {pipeline_mode = #tpu.pipeline_mode<synchronous>, transform_indices = @transform_9, window_bounds = array<i64: 32, 64>}, {pipeline_mode = #tpu.pipeline_mode<synchronous>, transform_indices = @transform_10, window_bounds = array<i64: 1, 64>}, {pipeline_mode = #tpu.pipeline_mode<synchronous>, transform_indices = @transform_11, window_bounds = array<i64: 64, 32>}, {pipeline_mode = #tpu.pipeline_mode<synchronous>, transform_indices = @transform_12, window_bounds = array<i64: 1, 32>}, {pipeline_mode = #tpu.pipeline_mode<synchronous>, transform_indices = @transform_13, window_bounds = array<i64: 1, 32>}, {pipeline_mode = #tpu.pipeline_mode<synchronous>, transform_indices = @transform_14, window_bounds = array<i64: 1, 32>}, {transform_indices = @transform_15, window_bounds = array<i64: 1, 8, 32>}]} {
    %c0 = arith.constant 0 : index
    %c0_0 = arith.constant 0 : index
    %c0_1 = arith.constant 0 : index
    %0 = vector.load %arg1[%c0, %c0_0, %c0_1] : memref<1x8x32xf32, #tpu.memory_space<vmem>>, vector<1x8x32xf32>
    %1 = vector.shape_cast %0 : vector<1x8x32xf32> to vector<8x32xf32>
    %c0_2 = arith.constant 0 : index
    %c0_3 = arith.constant 0 : index
    %2 = vector.load %arg2[%c0_2, %c0_3] : memref<1x32xf32, #tpu.memory_space<vmem>>, vector<1x32xf32>
    %c0_4 = arith.constant 0 : index
    %c0_5 = arith.constant 0 : index
    %3 = vector.load %arg3[%c0_4, %c0_5] : memref<1x32xf32, #tpu.memory_space<vmem>>, vector<1x32xf32>
    %cst = arith.constant dense<0.000000e+00> : vector<8xf32>
    %4 = vector.multi_reduction <add>, %1, %cst [1] : vector<8x32xf32> to vector<8xf32>
    %5 = vector.shape_cast %4 : vector<8xf32> to vector<8x1xf32>
    %cst_6 = arith.constant 3.200000e+01 : f32
    %6 = vector.broadcast %cst_6 : f32 to vector<8x1xf32>
    %7 = arith.divf %5, %6 : vector<8x1xf32>
    %8 = vector.broadcast %7 : vector<8x1xf32> to vector<8x32xf32>
    %9 = arith.subf %1, %8 : vector<8x32xf32>
    %10 = arith.mulf %9, %9 : vector<8x32xf32>
    %cst_7 = arith.constant dense<0.000000e+00> : vector<8xf32>
    %11 = vector.multi_reduction <add>, %10, %cst_7 [1] : vector<8x32xf32> to vector<8xf32>
    %12 = vector.shape_cast %11 : vector<8xf32> to vector<8x1xf32>
    %cst_8 = arith.constant 3.200000e+01 : f32
    %13 = vector.broadcast %cst_8 : f32 to vector<8x1xf32>
    %14 = arith.divf %12, %13 : vector<8x1xf32>
    %cst_9 = arith.constant 9.99999974E-6 : f32
    %15 = vector.broadcast %cst_9 : f32 to vector<8x1xf32>
    %16 = arith.addf %14, %15 : vector<8x1xf32>
    %17 = math.rsqrt %16 : vector<8x1xf32>
    %18 = vector.broadcast %17 : vector<8x1xf32> to vector<8x32xf32>
    %19 = arith.mulf %9, %18 : vector<8x32xf32>
    %20 = vector.broadcast %2 : vector<1x32xf32> to vector<8x32xf32>
    %21 = arith.mulf %20, %19 : vector<8x32xf32>
    %22 = vector.broadcast %3 : vector<1x32xf32> to vector<8x32xf32>
    %23 = arith.addf %21, %22 : vector<8x32xf32>
    %24 = arith.truncf %23 : vector<8x32xf32> to vector<8x32xbf16>
    %c0_10 = arith.constant 0 : index
    %c0_11 = arith.constant 0 : index
    %25 = vector.load %arg4[%c0_10, %c0_11] : memref<32x96xbf16, #tpu.memory_space<vmem>>, vector<32x96xbf16>
    %cst_12 = arith.constant dense<0.000000e+00> : vector<8x96xf32>
    %26 = tpu.matmul %24, %25, %cst_12 {dimension_numbers = #tpu.dot_dimension_numbers<[1], [0], [0], [1], [0, 0, 1, 1], [], []>} : vector<8x32xbf16>, vector<32x96xbf16>, vector<8x96xf32> -> vector<8x96xf32>
    %c0_13 = arith.constant 0 : index
    %c0_14 = arith.constant 0 : index
    %27 = vector.load %arg5[%c0_13, %c0_14] : memref<1x96xf32, #tpu.memory_space<vmem>>, vector<1x96xf32>
    %28 = vector.broadcast %27 : vector<1x96xf32> to vector<8x96xf32>
    %29 = arith.addf %26, %28 : vector<8x96xf32>
    %30 = arith.truncf %29 : vector<8x96xf32> to vector<8x96xbf16>
    %c0_15 = arith.constant 0 : index
    %c0_16 = arith.constant 0 : index
    %31 = vector.load %arg17[%c0_15, %c0_16] : memref<8x96xbf16, #tpu.memory_space<vmem>>, vector<8x96xbf16>
    tpu.vector_store %arg17[%c0_15, %c0_16], %30 {strides = array<i32>} : memref<8x96xbf16, #tpu.memory_space<vmem>>, vector<8x96xbf16>,
    %c0_17 = arith.constant 0 : index
    %c0_18 = arith.constant 0 : index
    %32 = vector.load %arg17[%c0_17, %c0_18] : memref<8x96xbf16, #tpu.memory_space<vmem>>, vector<8x8xbf16>
    %c0_19 = arith.constant 0 : index
    %c32 = arith.constant 32 : index
    %33 = vector.load %arg17[%c0_19, %c32] : memref<8x96xbf16, #tpu.memory_space<vmem>>, vector<8x8xbf16>
    %c0_20 = arith.constant 0 : index
    %c64 = arith.constant 64 : index
    %34 = vector.load %arg17[%c0_20, %c64] : memref<8x96xbf16, #tpu.memory_space<vmem>>, vector<8x8xbf16>
    %cst_21 = arith.constant dense<0.000000e+00> : vector<8x8xf32>
    %35 = tpu.matmul %32, %33, %cst_21 {dimension_numbers = #tpu.dot_dimension_numbers<[1], [1], [0], [0], [0, 0, 1, 0], [], []>} : vector<8x8xbf16>, vector<8x8xbf16>, vector<8x8xf32> -> vector<8x8xf32>
    %cst_22 = arith.constant dense<0xFF800000> : vector<8xf32>
    %36 = vector.multi_reduction <maximumf>, %35, %cst_22 [1] : vector<8x8xf32> to vector<8xf32>
    %37 = vector.shape_cast %36 : vector<8xf32> to vector<8x1xf32>
    %38 = vector.broadcast %37 : vector<8x1xf32> to vector<8x8xf32>
    %39 = arith.subf %35, %38 : vector<8x8xf32>
    %40 = math.exp %39 : vector<8x8xf32>
    %cst_23 = arith.constant dense<0.000000e+00> : vector<8xf32>
    %41 = vector.multi_reduction <add>, %40, %cst_23 [1] : vector<8x8xf32> to vector<8xf32>
    %42 = vector.shape_cast %41 : vector<8xf32> to vector<8x1xf32>
    %43 = tpu.reciprocal %42 : vector<8x1xf32> -> vector<8x1xf32>
    %44 = vector.broadcast %43 : vector<8x1xf32> to vector<8x8xf32>
    %45 = arith.mulf %40, %44 : vector<8x8xf32>
    %46 = arith.truncf %45 : vector<8x8xf32> to vector<8x8xbf16>
    %cst_24 = arith.constant dense<0.000000e+00> : vector<8x8xf32>
    %47 = tpu.matmul %46, %34, %cst_24 {dimension_numbers = #tpu.dot_dimension_numbers<[1], [0], [0], [1], [0, 0, 1, 1], [], []>} : vector<8x8xbf16>, vector<8x8xbf16>, vector<8x8xf32> -> vector<8x8xf32>
    %48 = arith.truncf %47 : vector<8x8xf32> to vector<8x8xbf16>
    %c0_25 = arith.constant 0 : index
    %c0_26 = arith.constant 0 : index
    %49 = vector.load %arg18[%c0_25, %c0_26] : memref<8x32xbf16, #tpu.memory_space<vmem>>, vector<8x8xbf16>
    tpu.vector_store %arg18[%c0_25, %c0_26], %48 {strides = array<i32>} : memref<8x32xbf16, #tpu.memory_space<vmem>>, vector<8x8xbf16>,
    %c0_27 = arith.constant 0 : index
    %c8 = arith.constant 8 : index
    %50 = vector.load %arg17[%c0_27, %c8] : memref<8x96xbf16, #tpu.memory_space<vmem>>, vector<8x8xbf16>
    %c0_28 = arith.constant 0 : index
    %c40 = arith.constant 40 : index
    %51 = vector.load %arg17[%c0_28, %c40] : memref<8x96xbf16, #tpu.memory_space<vmem>>, vector<8x8xbf16>
    %c0_29 = arith.constant 0 : index
    %c72 = arith.constant 72 : index
    %52 = vector.load %arg17[%c0_29, %c72] : memref<8x96xbf16, #tpu.memory_space<vmem>>, vector<8x8xbf16>
    %cst_30 = arith.constant dense<0.000000e+00> : vector<8x8xf32>
    %53 = tpu.matmul %50, %51, %cst_30 {dimension_numbers = #tpu.dot_dimension_numbers<[1], [1], [0], [0], [0, 0, 1, 0], [], []>} : vector<8x8xbf16>, vector<8x8xbf16>, vector<8x8xf32> -> vector<8x8xf32>
    %cst_31 = arith.constant dense<0xFF800000> : vector<8xf32>
    %54 = vector.multi_reduction <maximumf>, %53, %cst_31 [1] : vector<8x8xf32> to vector<8xf32>
    %55 = vector.shape_cast %54 : vector<8xf32> to vector<8x1xf32>
    %56 = vector.broadcast %55 : vector<8x1xf32> to vector<8x8xf32>
    %57 = arith.subf %53, %56 : vector<8x8xf32>
    %58 = math.exp %57 : vector<8x8xf32>
    %cst_32 = arith.constant dense<0.000000e+00> : vector<8xf32>
    %59 = vector.multi_reduction <add>, %58, %cst_32 [1] : vector<8x8xf32> to vector<8xf32>
    %60 = vector.shape_cast %59 : vector<8xf32> to vector<8x1xf32>
    %61 = tpu.reciprocal %60 : vector<8x1xf32> -> vector<8x1xf32>
    %62 = vector.broadcast %61 : vector<8x1xf32> to vector<8x8xf32>
    %63 = arith.mulf %58, %62 : vector<8x8xf32>
    %64 = arith.truncf %63 : vector<8x8xf32> to vector<8x8xbf16>
    %cst_33 = arith.constant dense<0.000000e+00> : vector<8x8xf32>
    %65 = tpu.matmul %64, %52, %cst_33 {dimension_numbers = #tpu.dot_dimension_numbers<[1], [0], [0], [1], [0, 0, 1, 1], [], []>} : vector<8x8xbf16>, vector<8x8xbf16>, vector<8x8xf32> -> vector<8x8xf32>
    %66 = arith.truncf %65 : vector<8x8xf32> to vector<8x8xbf16>
    %c0_34 = arith.constant 0 : index
    %c8_35 = arith.constant 8 : index
    %67 = vector.load %arg18[%c0_34, %c8_35] : memref<8x32xbf16, #tpu.memory_space<vmem>>, vector<8x8xbf16>
    tpu.vector_store %arg18[%c0_34, %c8_35], %66 {strides = array<i32>} : memref<8x32xbf16, #tpu.memory_space<vmem>>, vector<8x8xbf16>,
    %c0_36 = arith.constant 0 : index
    %c16 = arith.constant 16 : index
    %68 = vector.load %arg17[%c0_36, %c16] : memref<8x96xbf16, #tpu.memory_space<vmem>>, vector<8x8xbf16>
    %c0_37 = arith.constant 0 : index
    %c48 = arith.constant 48 : index
    %69 = vector.load %arg17[%c0_37, %c48] : memref<8x96xbf16, #tpu.memory_space<vmem>>, vector<8x8xbf16>
    %c0_38 = arith.constant 0 : index
    %c80 = arith.constant 80 : index
    %70 = vector.load %arg17[%c0_38, %c80] : memref<8x96xbf16, #tpu.memory_space<vmem>>, vector<8x8xbf16>
    %cst_39 = arith.constant dense<0.000000e+00> : vector<8x8xf32>
    %71 = tpu.matmul %68, %69, %cst_39 {dimension_numbers = #tpu.dot_dimension_numbers<[1], [1], [0], [0], [0, 0, 1, 0], [], []>} : vector<8x8xbf16>, vector<8x8xbf16>, vector<8x8xf32> -> vector<8x8xf32>
    %cst_40 = arith.constant dense<0xFF800000> : vector<8xf32>
    %72 = vector.multi_reduction <maximumf>, %71, %cst_40 [1] : vector<8x8xf32> to vector<8xf32>
    %73 = vector.shape_cast %72 : vector<8xf32> to vector<8x1xf32>
    %74 = vector.broadcast %73 : vector<8x1xf32> to vector<8x8xf32>
    %75 = arith.subf %71, %74 : vector<8x8xf32>
    %76 = math.exp %75 : vector<8x8xf32>
    %cst_41 = arith.constant dense<0.000000e+00> : vector<8xf32>
    %77 = vector.multi_reduction <add>, %76, %cst_41 [1] : vector<8x8xf32> to vector<8xf32>
    %78 = vector.shape_cast %77 : vector<8xf32> to vector<8x1xf32>
    %79 = tpu.reciprocal %78 : vector<8x1xf32> -> vector<8x1xf32>
    %80 = vector.broadcast %79 : vector<8x1xf32> to vector<8x8xf32>
    %81 = arith.mulf %76, %80 : vector<8x8xf32>
    %82 = arith.truncf %81 : vector<8x8xf32> to vector<8x8xbf16>
    %cst_42 = arith.constant dense<0.000000e+00> : vector<8x8xf32>
    %83 = tpu.matmul %82, %70, %cst_42 {dimension_numbers = #tpu.dot_dimension_numbers<[1], [0], [0], [1], [0, 0, 1, 1], [], []>} : vector<8x8xbf16>, vector<8x8xbf16>, vector<8x8xf32> -> vector<8x8xf32>
    %84 = arith.truncf %83 : vector<8x8xf32> to vector<8x8xbf16>
    %c0_43 = arith.constant 0 : index
    %c16_44 = arith.constant 16 : index
    %85 = vector.load %arg18[%c0_43, %c16_44] : memref<8x32xbf16, #tpu.memory_space<vmem>>, vector<8x8xbf16>
    tpu.vector_store %arg18[%c0_43, %c16_44], %84 {strides = array<i32>} : memref<8x32xbf16, #tpu.memory_space<vmem>>, vector<8x8xbf16>,
    %c0_45 = arith.constant 0 : index
    %c24 = arith.constant 24 : index
    %86 = vector.load %arg17[%c0_45, %c24] : memref<8x96xbf16, #tpu.memory_space<vmem>>, vector<8x8xbf16>
    %c0_46 = arith.constant 0 : index
    %c56 = arith.constant 56 : index
    %87 = vector.load %arg17[%c0_46, %c56] : memref<8x96xbf16, #tpu.memory_space<vmem>>, vector<8x8xbf16>
    %c0_47 = arith.constant 0 : index
    %c88 = arith.constant 88 : index
    %88 = vector.load %arg17[%c0_47, %c88] : memref<8x96xbf16, #tpu.memory_space<vmem>>, vector<8x8xbf16>
    %cst_48 = arith.constant dense<0.000000e+00> : vector<8x8xf32>
    %89 = tpu.matmul %86, %87, %cst_48 {dimension_numbers = #tpu.dot_dimension_numbers<[1], [1], [0], [0], [0, 0, 1, 0], [], []>} : vector<8x8xbf16>, vector<8x8xbf16>, vector<8x8xf32> -> vector<8x8xf32>
    %cst_49 = arith.constant dense<0xFF800000> : vector<8xf32>
    %90 = vector.multi_reduction <maximumf>, %89, %cst_49 [1] : vector<8x8xf32> to vector<8xf32>
    %91 = vector.shape_cast %90 : vector<8xf32> to vector<8x1xf32>
    %92 = vector.broadcast %91 : vector<8x1xf32> to vector<8x8xf32>
    %93 = arith.subf %89, %92 : vector<8x8xf32>
    %94 = math.exp %93 : vector<8x8xf32>
    %cst_50 = arith.constant dense<0.000000e+00> : vector<8xf32>
    %95 = vector.multi_reduction <add>, %94, %cst_50 [1] : vector<8x8xf32> to vector<8xf32>
    %96 = vector.shape_cast %95 : vector<8xf32> to vector<8x1xf32>
    %97 = tpu.reciprocal %96 : vector<8x1xf32> -> vector<8x1xf32>
    %98 = vector.broadcast %97 : vector<8x1xf32> to vector<8x8xf32>
    %99 = arith.mulf %94, %98 : vector<8x8xf32>
    %100 = arith.truncf %99 : vector<8x8xf32> to vector<8x8xbf16>
    %cst_51 = arith.constant dense<0.000000e+00> : vector<8x8xf32>
    %101 = tpu.matmul %100, %88, %cst_51 {dimension_numbers = #tpu.dot_dimension_numbers<[1], [0], [0], [1], [0, 0, 1, 1], [], []>} : vector<8x8xbf16>, vector<8x8xbf16>, vector<8x8xf32> -> vector<8x8xf32>
    %102 = arith.truncf %101 : vector<8x8xf32> to vector<8x8xbf16>
    %c0_52 = arith.constant 0 : index
    %c24_53 = arith.constant 24 : index
    %103 = vector.load %arg18[%c0_52, %c24_53] : memref<8x32xbf16, #tpu.memory_space<vmem>>, vector<8x8xbf16>
    tpu.vector_store %arg18[%c0_52, %c24_53], %102 {strides = array<i32>} : memref<8x32xbf16, #tpu.memory_space<vmem>>, vector<8x8xbf16>,
    %c0_54 = arith.constant 0 : index
    %c0_55 = arith.constant 0 : index
    %104 = vector.load %arg18[%c0_54, %c0_55] : memref<8x32xbf16, #tpu.memory_space<vmem>>, vector<8x32xbf16>
    %c0_56 = arith.constant 0 : index
    %c0_57 = arith.constant 0 : index
    %105 = vector.load %arg6[%c0_56, %c0_57] : memref<32x32xbf16, #tpu.memory_space<vmem>>, vector<32x32xbf16>
    %cst_58 = arith.constant dense<0.000000e+00> : vector<8x32xf32>
    %106 = tpu.matmul %104, %105, %cst_58 {dimension_numbers = #tpu.dot_dimension_numbers<[1], [0], [0], [1], [0, 0, 1, 1], [], []>} : vector<8x32xbf16>, vector<32x32xbf16>, vector<8x32xf32> -> vector<8x32xf32>
    %c0_59 = arith.constant 0 : index
    %c0_60 = arith.constant 0 : index
    %107 = vector.load %arg7[%c0_59, %c0_60] : memref<1x32xf32, #tpu.memory_space<vmem>>, vector<1x32xf32>
    %108 = vector.broadcast %107 : vector<1x32xf32> to vector<8x32xf32>
    %109 = arith.addf %106, %108 : vector<8x32xf32>
    %110 = arith.addf %1, %109 : vector<8x32xf32>
    %c0_61 = arith.constant 0 : index
    %c0_62 = arith.constant 0 : index
    %111 = vector.load %arg8[%c0_61, %c0_62] : memref<1x32xf32, #tpu.memory_space<vmem>>, vector<1x32xf32>
    %c0_63 = arith.constant 0 : index
    %c0_64 = arith.constant 0 : index
    %112 = vector.load %arg9[%c0_63, %c0_64] : memref<1x32xf32, #tpu.memory_space<vmem>>, vector<1x32xf32>
    %cst_65 = arith.constant dense<0.000000e+00> : vector<8xf32>
    %113 = vector.multi_reduction <add>, %110, %cst_65 [1] : vector<8x32xf32> to vector<8xf32>
    %114 = vector.shape_cast %113 : vector<8xf32> to vector<8x1xf32>
    %cst_66 = arith.constant 3.200000e+01 : f32
    %115 = vector.broadcast %cst_66 : f32 to vector<8x1xf32>
    %116 = arith.divf %114, %115 : vector<8x1xf32>
    %117 = vector.broadcast %116 : vector<8x1xf32> to vector<8x32xf32>
    %118 = arith.subf %110, %117 : vector<8x32xf32>
    %119 = arith.mulf %118, %118 : vector<8x32xf32>
    %cst_67 = arith.constant dense<0.000000e+00> : vector<8xf32>
    %120 = vector.multi_reduction <add>, %119, %cst_67 [1] : vector<8x32xf32> to vector<8xf32>
    %121 = vector.shape_cast %120 : vector<8xf32> to vector<8x1xf32>
    %cst_68 = arith.constant 3.200000e+01 : f32
    %122 = vector.broadcast %cst_68 : f32 to vector<8x1xf32>
    %123 = arith.divf %121, %122 : vector<8x1xf32>
    %cst_69 = arith.constant 9.99999974E-6 : f32
    %124 = vector.broadcast %cst_69 : f32 to vector<8x1xf32>
    %125 = arith.addf %123, %124 : vector<8x1xf32>
    %126 = math.rsqrt %125 : vector<8x1xf32>
    %127 = vector.broadcast %126 : vector<8x1xf32> to vector<8x32xf32>
    %128 = arith.mulf %118, %127 : vector<8x32xf32>
    %129 = vector.broadcast %111 : vector<1x32xf32> to vector<8x32xf32>
    %130 = arith.mulf %129, %128 : vector<8x32xf32>
    %131 = vector.broadcast %112 : vector<1x32xf32> to vector<8x32xf32>
    %132 = arith.addf %130, %131 : vector<8x32xf32>
    %133 = arith.truncf %132 : vector<8x32xf32> to vector<8x32xbf16>
    %c0_70 = arith.constant 0 : index
    %c0_71 = arith.constant 0 : index
    %134 = vector.load %arg10[%c0_70, %c0_71] : memref<32x64xbf16, #tpu.memory_space<vmem>>, vector<32x64xbf16>
    %cst_72 = arith.constant dense<0.000000e+00> : vector<8x64xf32>
    %135 = tpu.matmul %133, %134, %cst_72 {dimension_numbers = #tpu.dot_dimension_numbers<[1], [0], [0], [1], [0, 0, 1, 1], [], []>} : vector<8x32xbf16>, vector<32x64xbf16>, vector<8x64xf32> -> vector<8x64xf32>
    %c0_73 = arith.constant 0 : index
    %c0_74 = arith.constant 0 : index
    %136 = vector.load %arg11[%c0_73, %c0_74] : memref<1x64xf32, #tpu.memory_space<vmem>>, vector<1x64xf32>
    %137 = vector.broadcast %136 : vector<1x64xf32> to vector<8x64xf32>
    %138 = arith.addf %135, %137 : vector<8x64xf32>
    %cst_75 = arith.constant 0.000000e+00 : f32
    %139 = vector.broadcast %cst_75 : f32 to vector<8x64xf32>
    %140 = arith.maximumf %138, %139 : vector<8x64xf32>
    %141 = arith.truncf %140 : vector<8x64xf32> to vector<8x64xbf16>
    %c0_76 = arith.constant 0 : index
    %c0_77 = arith.constant 0 : index
    %142 = vector.load %arg12[%c0_76, %c0_77] : memref<64x32xbf16, #tpu.memory_space<vmem>>, vector<64x32xbf16>
    %cst_78 = arith.constant dense<0.000000e+00> : vector<8x32xf32>
    %143 = tpu.matmul %141, %142, %cst_78 {dimension_numbers = #tpu.dot_dimension_numbers<[1], [0], [0], [1], [0, 0, 1, 1], [], []>} : vector<8x64xbf16>, vector<64x32xbf16>, vector<8x32xf32> -> vector<8x32xf32>
    %c0_79 = arith.constant 0 : index
    %c0_80 = arith.constant 0 : index
    %144 = vector.load %arg13[%c0_79, %c0_80] : memref<1x32xf32, #tpu.memory_space<vmem>>, vector<1x32xf32>
    %145 = vector.broadcast %144 : vector<1x32xf32> to vector<8x32xf32>
    %146 = arith.addf %143, %145 : vector<8x32xf32>
    %147 = arith.addf %110, %146 : vector<8x32xf32>
    %c0_81 = arith.constant 0 : index
    %c0_82 = arith.constant 0 : index
    %148 = vector.load %arg14[%c0_81, %c0_82] : memref<1x32xf32, #tpu.memory_space<vmem>>, vector<1x32xf32>
    %c0_83 = arith.constant 0 : index
    %c0_84 = arith.constant 0 : index
    %149 = vector.load %arg15[%c0_83, %c0_84] : memref<1x32xf32, #tpu.memory_space<vmem>>, vector<1x32xf32>
    %cst_85 = arith.constant dense<0.000000e+00> : vector<8xf32>
    %150 = vector.multi_reduction <add>, %147, %cst_85 [1] : vector<8x32xf32> to vector<8xf32>
    %151 = vector.shape_cast %150 : vector<8xf32> to vector<8x1xf32>
    %cst_86 = arith.constant 3.200000e+01 : f32
    %152 = vector.broadcast %cst_86 : f32 to vector<8x1xf32>
    %153 = arith.divf %151, %152 : vector<8x1xf32>
    %154 = vector.broadcast %153 : vector<8x1xf32> to vector<8x32xf32>
    %155 = arith.subf %147, %154 : vector<8x32xf32>
    %156 = arith.mulf %155, %155 : vector<8x32xf32>
    %cst_87 = arith.constant dense<0.000000e+00> : vector<8xf32>
    %157 = vector.multi_reduction <add>, %156, %cst_87 [1] : vector<8x32xf32> to vector<8xf32>
    %158 = vector.shape_cast %157 : vector<8xf32> to vector<8x1xf32>
    %cst_88 = arith.constant 3.200000e+01 : f32
    %159 = vector.broadcast %cst_88 : f32 to vector<8x1xf32>
    %160 = arith.divf %158, %159 : vector<8x1xf32>
    %cst_89 = arith.constant 9.99999996E-13 : f32
    %161 = vector.broadcast %cst_89 : f32 to vector<8x1xf32>
    %162 = arith.addf %160, %161 : vector<8x1xf32>
    %163 = math.rsqrt %162 : vector<8x1xf32>
    %164 = vector.broadcast %163 : vector<8x1xf32> to vector<8x32xf32>
    %165 = arith.mulf %155, %164 : vector<8x32xf32>
    %166 = vector.broadcast %148 : vector<1x32xf32> to vector<8x32xf32>
    %167 = arith.mulf %166, %165 : vector<8x32xf32>
    %168 = vector.broadcast %149 : vector<1x32xf32> to vector<8x32xf32>
    %169 = arith.addf %167, %168 : vector<8x32xf32>
    %c0_90 = arith.constant 0 : index
    %c0_91 = arith.constant 0 : index
    %c0_92 = arith.constant 0 : index
    %170 = vector.load %arg16[%c0_90, %c0_91, %c0_92] : memref<1x8x32xf32, #tpu.memory_space<vmem>>, vector<1x8x32xf32>
    %171 = vector.shape_cast %170 : vector<1x8x32xf32> to vector<8x32xf32>
    %172 = vector.shape_cast %169 : vector<8x32xf32> to vector<1x8x32xf32>
    tpu.vector_store %arg16[%c0_90, %c0_91, %c0_92], %172 {strides = array<i32>} : memref<1x8x32xf32, #tpu.memory_space<vmem>>, vector<1x8x32xf32>,
    return
  }
  func.func @transform_0(%arg0: i32) -> (i32, i32, i32) {
    %c0_i32 = arith.constant 0 : i32
    %c0_i32_0 = arith.constant 0 : i32
    %c0_i32_1 = arith.constant 0 : i32
    return %arg0, %c0_i32, %c0_i32_0 : i32, i32, i32
  }
  func.func @transform_1(%arg0: i32) -> (i32, i32) {
    %c0_i32 = arith.constant 0 : i32
    %c0_i32_0 = arith.constant 0 : i32
    %c0_i32_1 = arith.constant 0 : i32
    return %c0_i32, %c0_i32_0 : i32, i32
  }
  func.func @transform_2(%arg0: i32) -> (i32, i32) {
    %c0_i32 = arith.constant 0 : i32
    %c0_i32_0 = arith.constant 0 : i32
    %c0_i32_1 = arith.constant 0 : i32
    return %c0_i32, %c0_i32_0 : i32, i32
  }
  func.func @transform_3(%arg0: i32) -> (i32, i32) {
    %c0_i32 = arith.constant 0 : i32
    %c0_i32_0 = arith.constant 0 : i32
    %c0_i32_1 = arith.constant 0 : i32
    return %c0_i32, %c0_i32_0 : i32, i32
  }
  func.func @transform_4(%arg0: i32) -> (i32, i32) {
    %c0_i32 = arith.constant 0 : i32
    %c0_i32_0 = arith.constant 0 : i32
    %c0_i32_1 = arith.constant 0 : i32
    return %c0_i32, %c0_i32_0 : i32, i32
  }
  func.func @transform_5(%arg0: i32) -> (i32, i32) {
    %c0_i32 = arith.constant 0 : i32
    %c0_i32_0 = arith.constant 0 : i32
    %c0_i32_1 = arith.constant 0 : i32
    return %c0_i32, %c0_i32_0 : i32, i32
  }
  func.func @transform_6(%arg0: i32) -> (i32, i32) {
    %c0_i32 = arith.constant 0 : i32
    %c0_i32_0 = arith.constant 0 : i32
    %c0_i32_1 = arith.constant 0 : i32
    return %c0_i32, %c0_i32_0 : i32, i32
  }
  func.func @transform_7(%arg0: i32) -> (i32, i32) {
    %c0_i32 = arith.constant 0 : i32
    %c0_i32_0 = arith.constant 0 : i32
    %c0_i32_1 = arith.constant 0 : i32
    return %c0_i32, %c0_i32_0 : i32, i32
  }
  func.func @transform_8(%arg0: i32) -> (i32, i32) {
    %c0_i32 = arith.constant 0 : i32
    %c0_i32_0 = arith.constant 0 : i32
    %c0_i32_1 = arith.constant 0 : i32
    return %c0_i32, %c0_i32_0 : i32, i32
  }
  func.func @transform_9(%arg0: i32) -> (i32, i32) {
    %c0_i32 = arith.constant 0 : i32
    %c0_i32_0 = arith.constant 0 : i32
    %c0_i32_1 = arith.constant 0 : i32
    return %c0_i32, %c0_i32_0 : i32, i32
  }
  func.func @transform_10(%arg0: i32) -> (i32, i32) {
    %c0_i32 = arith.constant 0 : i32
    %c0_i32_0 = arith.constant 0 : i32
    %c0_i32_1 = arith.constant 0 : i32
    return %c0_i32, %c0_i32_0 : i32, i32
  }
  func.func @transform_11(%arg0: i32) -> (i32, i32) {
    %c0_i32 = arith.constant 0 : i32
    %c0_i32_0 = arith.constant 0 : i32
    %c0_i32_1 = arith.constant 0 : i32
    return %c0_i32, %c0_i32_0 : i32, i32
  }
  func.func @transform_12(%arg0: i32) -> (i32, i32) {
    %c0_i32 = arith.constant 0 : i32
    %c0_i32_0 = arith.constant 0 : i32
    %c0_i32_1 = arith.constant 0 : i32
    return %c0_i32, %c0_i32_0 : i32, i32
  }
  func.func @transform_13(%arg0: i32) -> (i32, i32) {
    %c0_i32 = arith.constant 0 : i32
    %c0_i32_0 = arith.constant 0 : i32
    %c0_i32_1 = arith.constant 0 : i32
    return %c0_i32, %c0_i32_0 : i32, i32
  }
  func.func @transform_14(%arg0: i32) -> (i32, i32) {
    %c0_i32 = arith.constant 0 : i32
    %c0_i32_0 = arith.constant 0 : i32
    %c0_i32_1 = arith.constant 0 : i32
    return %c0_i32, %c0_i32_0 : i32, i32
  }
  func.func @transform_15(%arg0: i32) -> (i32, i32, i32) {
    %c0_i32 = arith.constant 0 : i32
    %c0_i32_0 = arith.constant 0 : i32
    %c0_i32_1 = arith.constant 0 : i32
    return %arg0, %c0_i32, %c0_i32_0 : i32, i32, i32
  }
}

</mosaic_0001>

<llo_original>
// kernel: encoder_forward.7
$region0: #{encoder_forward.7}
  #allocation0 [shape = 'u32[]', space=smem, size = 0x4, offset = 0x4, fixed_abs, tag = 'smem constant byte address 0x4 - core index']
  #allocation1 [shape = 'u32[144,128]{1,0:T(1,128)}', space=vmem, size = 0x12000, scoped, tag = 'internal scratch']
  #allocation2 [shape = 'bf16[8,96]{1,0:T(8,128)(2,1)}', space=vmem, size = 0x800, scoped, tag = 'scratch operand']
  #allocation3 [shape = 'bf16[8,32]{1,0:T(8,128)(2,1)}', space=vmem, size = 0x800, scoped, tag = 'scratch operand']
  %s0 = inlined_call_operand.vmem [shape: f32[2,8,32], index: 0, kind: input, shape index: {}]
  %s1 = inlined_call_operand.vmem [shape: f32[1,32], index: 1, kind: input, shape index: {}]
  %s2 = inlined_call_operand.vmem [shape: f32[1,32], index: 2, kind: input, shape index: {}]
  %s3 = inlined_call_operand.vmem [shape: bf16[32,96], index: 3, kind: input, shape index: {}]
  %s4 = inlined_call_operand.vmem [shape: f32[1,96], index: 4, kind: input, shape index: {}]
  %s5 = inlined_call_operand.vmem [shape: bf16[32,32], index: 5, kind: input, shape index: {}]
  %s6 = inlined_call_operand.vmem [shape: f32[1,32], index: 6, kind: input, shape index: {}]
  %s7 = inlined_call_operand.vmem [shape: f32[1,32], index: 7, kind: input, shape index: {}]
  %s8 = inlined_call_operand.vmem [shape: f32[1,32], index: 8, kind: input, shape index: {}]
  %s9 = inlined_call_operand.vmem [shape: bf16[32,64], index: 9, kind: input, shape index: {}]
  %s10 = inlined_call_operand.vmem [shape: f32[1,64], index: 10, kind: input, shape index: {}]
  %s11 = inlined_call_operand.vmem [shape: bf16[64,32], index: 11, kind: input, shape index: {}]
  %s12 = inlined_call_operand.vmem [shape: f32[1,32], index: 12, kind: input, shape index: {}]
  %s13 = inlined_call_operand.vmem [shape: f32[1,32], index: 13, kind: input, shape index: {}]
  %s14 = inlined_call_operand.vmem [shape: f32[1,32], index: 14, kind: input, shape index: {}]
  %s15 = inlined_call_operand.hbm [shape: f32[2,8,32], index: 15, kind: output, shape index: {}]
  %s16 = sld [smem:[#allocation0]]
  $region93: #{encoder_forward.7} parent=0
    _
  %s18 = ssub.s32 1, %s16
  %s19 = scalar_select 0, %s18, %s16
  $region1: #{encoder_forward.7} parent=0
    #allocation4 [shape = 'u8[8192]{0}', space=vmem, size = 0x2000, scoped, tag = 'output window, operand 0']
    #allocation5 [shape = 's32[2]{0}', space=sflag, size = 0x8, scoped, tag = 'scoped memory for encoder_forward.7']
    %20 = vsyncpa [#allocation5], 0
    %s21 = scalar_lea.sflag [#allocation5], 1
    %22 = vsyncpa %s21, 0
    loop: start=0, step=1, limit=4
    $region2: #{encoder_forward.7} parent=1 // loop_pre_header
      _
    $region3: #{encoder_forward.7} parent=1 // loop_header
      %s24 = sphi 0, %s28
      %p25 = scmp.ge.s32.totalorder %s24, 4
      %s34 = sphi 0, %s36
      %s37 = sphi 0, %s34
      %s38 = sphi 0, %s37
      %s54 = sphi 0, %s38
      %s58 = sphi 0, %s58
      %s60 = sphi 0, %s58
      %s61 = sphi 0, %s60
      %s75 = sphi 0, %s61
      %s79 = sphi 0, %s79
      %s81 = sphi 0, %s79
      %s82 = sphi 0, %s81
      %s96 = sphi 0, %s82
      %s100 = sphi 0, %s100
      %s102 = sphi 0, %s100
      %s103 = sphi 0, %s102
      %s117 = sphi 0, %s103
      %s121 = sphi 0, %s121
      %s123 = sphi 0, %s121
      %s124 = sphi 0, %s123
      %s138 = sphi 0, %s124
      %s142 = sphi 0, %s142
      %s144 = sphi 0, %s142
      %s145 = sphi 0, %s144
      %s159 = sphi 0, %s145
      %s163 = sphi 0, %s163
      %s165 = sphi 0, %s163
      %s166 = sphi 0, %s165
      %s180 = sphi 0, %s166
      %s184 = sphi 0, %s184
      %s186 = sphi 0, %s184
      %s187 = sphi 0, %s186
      %s201 = sphi 0, %s187
      %s205 = sphi 0, %s205
      %s207 = sphi 0, %s205
      %s208 = sphi 0, %s207
      %s222 = sphi 0, %s208
      %s226 = sphi 0, %s226
      %s228 = sphi 0, %s226
      %s229 = sphi 0, %s228
      %s243 = sphi 0, %s229
      %s247 = sphi 0, %s247
      %s249 = sphi 0, %s247
      %s250 = sphi 0, %s249
      %s264 = sphi 0, %s250
      %s268 = sphi 0, %s268
      %s270 = sphi 0, %s268
      %s271 = sphi 0, %s270
      %s285 = sphi 0, %s271
      %s289 = sphi 0, %s289
      %s291 = sphi 0, %s289
      %s292 = sphi 0, %s291
      %s306 = sphi 0, %s292
      %s310 = sphi 0, %s310
      %s312 = sphi 0, %s310
      %s313 = sphi 0, %s312
      %s327 = sphi 0, %s313
      %s331 = sphi 0, %s331
      %s333 = sphi 0, %s331
      %s334 = sphi 0, %s333
      %s348 = sphi 0, %s334
      %s354 = sphi 0, %s356
      %s357 = sphi 0, %s354
      %s358 = sphi 0, %s357
      %s374 = sphi 0, %s358
    $region4: #{encoder_forward.7} parent=1 // loop_header_branch
      %27 = sbr.rel (%p25) target = $region8
    $region5: #{encoder_forward.7} parent=1 // loop_body
      %s29 = ssub.s32 %s24, 1
      %s30 = ssub.s32 %s24, 2
      %s31 = sadd.s32 %s24, 1
      %s32 = ssub.s32 %s24, %s31
      %p33 = scmp.eq.s32.totalorder %s32, 0
      %s35 = sadd.s32 %s34, 1
      %s36 = scalar_select %p33, %s34, %s35
      %p39 = pneg %p33
      %p40 = scmp.eq.s32.totalorder %s24, 1
      %p41 = por %p39, %p40
      %p42 = scmp.ne.s32.totalorder %s34, %s37
      %p43 = scmp.eq.s32.totalorder %s24, 0
      %p44 = por %p42, %p43
      %p45 = scmp.ne.s32.totalorder %s34, %s37
      %p46 = scmp.eq.s32.totalorder %s29, 1
      %p47 = por %p45, %p46
      %p48 = scmp.ne.s32.totalorder %s37, %s38
      %p49 = scmp.eq.s32.totalorder %s29, 0
      %p50 = por %p48, %p49
      %p51 = scmp.ne.s32.totalorder %s37, %s38
      %p52 = scmp.eq.s32.totalorder %s30, 1
      %p53 = por %p51, %p52
      %p55 = scmp.ne.s32.totalorder %s38, %s54
      %p56 = scmp.eq.s32.totalorder %s30, 0
      %p57 = por %p55, %p56
      %s59 = sadd.s32 %s58, 1
      %p62 = scmp.eq.s32.totalorder %s24, 1
      %p63 = scmp.ne.s32.totalorder %s58, %s60
      %p64 = scmp.eq.s32.totalorder %s24, 0
      %p65 = por %p63, %p64
      %p66 = scmp.ne.s32.totalorder %s58, %s60
      %p67 = scmp.eq.s32.totalorder %s29, 1
      %p68 = por %p66, %p67
      %p69 = scmp.ne.s32.totalorder %s60, %s61
      %p70 = scmp.eq.s32.totalorder %s29, 0
      %p71 = por %p69, %p70
      %p72 = scmp.ne.s32.totalorder %s60, %s61
      %p73 = scmp.eq.s32.totalorder %s30, 1
      %p74 = por %p72, %p73
      %p76 = scmp.ne.s32.totalorder %s61, %s75
      %p77 = scmp.eq.s32.totalorder %s30, 0
      %p78 = por %p76, %p77
      %s80 = sadd.s32 %s79, 1
      %p83 = scmp.eq.s32.totalorder %s24, 1
      %p84 = scmp.ne.s32.totalorder %s79, %s81
      %p85 = scmp.eq.s32.totalorder %s24, 0
      %p86 = por %p84, %p85
      %p87 = scmp.ne.s32.totalorder %s79, %s81
      %p88 = scmp.eq.s32.totalorder %s29, 1
      %p89 = por %p87, %p88
      %p90 = scmp.ne.s32.totalorder %s81, %s82
      %p91 = scmp.eq.s32.totalorder %s29, 0
      %p92 = por %p90, %p91
      %p93 = scmp.ne.s32.totalorder %s81, %s82
      %p94 = scmp.eq.s32.totalorder %s30, 1
      %p95 = por %p93, %p94
      %p97 = scmp.ne.s32.totalorder %s82, %s96
      %p98 = scmp.eq.s32.totalorder %s30, 0
      %p99 = por %p97, %p98
      %s101 = sadd.s32 %s100, 1
      %p104 = scmp.eq.s32.totalorder %s24, 1
      %p105 = scmp.ne.s32.totalorder %s100, %s102
      %p106 = scmp.eq.s32.totalorder %s24, 0
      %p107 = por %p105, %p106
      %p108 = scmp.ne.s32.totalorder %s100, %s102
      %p109 = scmp.eq.s32.totalorder %s29, 1
      %p110 = por %p108, %p109
      %p111 = scmp.ne.s32.totalorder %s102, %s103
      %p112 = scmp.eq.s32.totalorder %s29, 0
      %p113 = por %p111, %p112
      %p114 = scmp.ne.s32.totalorder %s102, %s103
      %p115 = scmp.eq.s32.totalorder %s30, 1
      %p116 = por %p114, %p115
      %p118 = scmp.ne.s32.totalorder %s103, %s117
      %p119 = scmp.eq.s32.totalorder %s30, 0
      %p120 = por %p118, %p119
      %s122 = sadd.s32 %s121, 1
      %p125 = scmp.eq.s32.totalorder %s24, 1
      %p126 = scmp.ne.s32.totalorder %s121, %s123
      %p127 = scmp.eq.s32.totalorder %s24, 0
      %p128 = por %p126, %p127
      %p129 = scmp.ne.s32.totalorder %s121, %s123
      %p130 = scmp.eq.s32.totalorder %s29, 1
      %p131 = por %p129, %p130
      %p132 = scmp.ne.s32.totalorder %s123, %s124
      %p133 = scmp.eq.s32.totalorder %s29, 0
      %p134 = por %p132, %p133
      %p135 = scmp.ne.s32.totalorder %s123, %s124
      %p136 = scmp.eq.s32.totalorder %s30, 1
      %p137 = por %p135, %p136
      %p139 = scmp.ne.s32.totalorder %s124, %s138
      %p140 = scmp.eq.s32.totalorder %s30, 0
      %p141 = por %p139, %p140
      %s143 = sadd.s32 %s142, 1
      %p146 = scmp.eq.s32.totalorder %s24, 1
      %p147 = scmp.ne.s32.totalorder %s142, %s144
      %p148 = scmp.eq.s32.totalorder %s24, 0
      %p149 = por %p147, %p148
      %p150 = scmp.ne.s32.totalorder %s142, %s144
      %p151 = scmp.eq.s32.totalorder %s29, 1
      %p152 = por %p150, %p151
      %p153 = scmp.ne.s32.totalorder %s144, %s145
      %p154 = scmp.eq.s32.totalorder %s29, 0
      %p155 = por %p153, %p154
      %p156 = scmp.ne.s32.totalorder %s144, %s145
      %p157 = scmp.eq.s32.totalorder %s30, 1
      %p158 = por %p156, %p157
      %p160 = scmp.ne.s32.totalorder %s145, %s159
      %p161 = scmp.eq.s32.totalorder %s30, 0
      %p162 = por %p160, %p161
      %s164 = sadd.s32 %s163, 1
      %p167 = scmp.eq.s32.totalorder %s24, 1
      %p168 = scmp.ne.s32.totalorder %s163, %s165
      %p169 = scmp.eq.s32.totalorder %s24, 0
      %p170 = por %p168, %p169
      %p171 = scmp.ne.s32.totalorder %s163, %s165
      %p172 = scmp.eq.s32.totalorder %s29, 1
      %p173 = por %p171, %p172
      %p174 = scmp.ne.s32.totalorder %s165, %s166
      %p175 = scmp.eq.s32.totalorder %s29, 0
      %p176 = por %p174, %p175
      %p177 = scmp.ne.s32.totalorder %s165, %s166
      %p178 = scmp.eq.s32.totalorder %s30, 1
      %p179 = por %p177, %p178
      %p181 = scmp.ne.s32.totalorder %s166, %s180
      %p182 = scmp.eq.s32.totalorder %s30, 0
      %p183 = por %p181, %p182
      %s185 = sadd.s32 %s184, 1
      %p188 = scmp.eq.s32.totalorder %s24, 1
      %p189 = scmp.ne.s32.totalorder %s184, %s186
      %p190 = scmp.eq.s32.totalorder %s24, 0
      %p191 = por %p189, %p190
      %p192 = scmp.ne.s32.totalorder %s184, %s186
      %p193 = scmp.eq.s32.totalorder %s29, 1
      %p194 = por %p192, %p193
      %p195 = scmp.ne.s32.totalorder %s186, %s187
      %p196 = scmp.eq.s32.totalorder %s29, 0
      %p197 = por %p195, %p196
      %p198 = scmp.ne.s32.totalorder %s186, %s187
      %p199 = scmp.eq.s32.totalorder %s30, 1
      %p200 = por %p198, %p199
      %p202 = scmp.ne.s32.totalorder %s187, %s201
      %p203 = scmp.eq.s32.totalorder %s30, 0
      %p204 = por %p202, %p203
      %s206 = sadd.s32 %s205, 1
      %p209 = scmp.eq.s32.totalorder %s24, 1
      %p210 = scmp.ne.s32.totalorder %s205, %s207
      %p211 = scmp.eq.s32.totalorder %s24, 0
      %p212 = por %p210, %p211
      %p213 = scmp.ne.s32.totalorder %s205, %s207
      %p214 = scmp.eq.s32.totalorder %s29, 1
      %p215 = por %p213, %p214
      %p216 = scmp.ne.s32.totalorder %s207, %s208
      %p217 = scmp.eq.s32.totalorder %s29, 0
      %p218 = por %p216, %p217
      %p219 = scmp.ne.s32.totalorder %s207, %s208
      %p220 = scmp.eq.s32.totalorder %s30, 1
      %p221 = por %p219, %p220
      %p223 = scmp.ne.s32.totalorder %s208, %s222
      %p224 = scmp.eq.s32.totalorder %s30, 0
      %p225 = por %p223, %p224
      %s227 = sadd.s32 %s226, 1
      %p230 = scmp.eq.s32.totalorder %s24, 1
      %p231 = scmp.ne.s32.totalorder %s226, %s228
      %p232 = scmp.eq.s32.totalorder %s24, 0
      %p233 = por %p231, %p232
      %p234 = scmp.ne.s32.totalorder %s226, %s228
      %p235 = scmp.eq.s32.totalorder %s29, 1
      %p236 = por %p234, %p235
      %p237 = scmp.ne.s32.totalorder %s228, %s229
      %p238 = scmp.eq.s32.totalorder %s29, 0
      %p239 = por %p237, %p238
      %p240 = scmp.ne.s32.totalorder %s228, %s229
      %p241 = scmp.eq.s32.totalorder %s30, 1
      %p242 = por %p240, %p241
      %p244 = scmp.ne.s32.totalorder %s229, %s243
      %p245 = scmp.eq.s32.totalorder %s30, 0
      %p246 = por %p244, %p245
      %s248 = sadd.s32 %s247, 1
      %p251 = scmp.eq.s32.totalorder %s24, 1
      %p252 = scmp.ne.s32.totalorder %s247, %s249
      %p253 = scmp.eq.s32.totalorder %s24, 0
      %p254 = por %p252, %p253
      %p255 = scmp.ne.s32.totalorder %s247, %s249
      %p256 = scmp.eq.s32.totalorder %s29, 1
      %p257 = por %p255, %p256
      %p258 = scmp.ne.s32.totalorder %s249, %s250
      %p259 = scmp.eq.s32.totalorder %s29, 0
      %p260 = por %p258, %p259
      %p261 = scmp.ne.s32.totalorder %s249, %s250
      %p262 = scmp.eq.s32.totalorder %s30, 1
      %p263 = por %p261, %p262
      %p265 = scmp.ne.s32.totalorder %s250, %s264
      %p266 = scmp.eq.s32.totalorder %s30, 0
      %p267 = por %p265, %p266
      %s269 = sadd.s32 %s268, 1
      %p272 = scmp.eq.s32.totalorder %s24, 1
      %p273 = scmp.ne.s32.totalorder %s268, %s270
      %p274 = scmp.eq.s32.totalorder %s24, 0
      %p275 = por %p273, %p274
      %p276 = scmp.ne.s32.totalorder %s268, %s270
      %p277 = scmp.eq.s32.totalorder %s29, 1
      %p278 = por %p276, %p277
      %p279 = scmp.ne.s32.totalorder %s270, %s271
      %p280 = scmp.eq.s32.totalorder %s29, 0
      %p281 = por %p279, %p280
      %p282 = scmp.ne.s32.totalorder %s270, %s271
      %p283 = scmp.eq.s32.totalorder %s30, 1
      %p284 = por %p282, %p283
      %p286 = scmp.ne.s32.totalorder %s271, %s285
      %p287 = scmp.eq.s32.totalorder %s30, 0
      %p288 = por %p286, %p287
      %s290 = sadd.s32 %s289, 1
      %p293 = scmp.eq.s32.totalorder %s24, 1
      %p294 = scmp.ne.s32.totalorder %s289, %s291
      %p295 = scmp.eq.s32.totalorder %s24, 0
      %p296 = por %p294, %p295
      %p297 = scmp.ne.s32.totalorder %s289, %s291
      %p298 = scmp.eq.s32.totalorder %s29, 1
      %p299 = por %p297, %p298
      %p300 = scmp.ne.s32.totalorder %s291, %s292
      %p301 = scmp.eq.s32.totalorder %s29, 0
      %p302 = por %p300, %p301
      %p303 = scmp.ne.s32.totalorder %s291, %s292
      %p304 = scmp.eq.s32.totalorder %s30, 1
      %p305 = por %p303, %p304
      %p307 = scmp.ne.s32.totalorder %s292, %s306
      %p308 = scmp.eq.s32.totalorder %s30, 0
      %p309 = por %p307, %p308
      %s311 = sadd.s32 %s310, 1
      %p314 = scmp.eq.s32.totalorder %s24, 1
      %p315 = scmp.ne.s32.totalorder %s310, %s312
      %p316 = scmp.eq.s32.totalorder %s24, 0
      %p317 = por %p315, %p316
      %p318 = scmp.ne.s32.totalorder %s310, %s312
      %p319 = scmp.eq.s32.totalorder %s29, 1
      %p320 = por %p318, %p319
      %p321 = scmp.ne.s32.totalorder %s312, %s313
      %p322 = scmp.eq.s32.totalorder %s29, 0
      %p323 = por %p321, %p322
      %p324 = scmp.ne.s32.totalorder %s312, %s313
      %p325 = scmp.eq.s32.totalorder %s30, 1
      %p326 = por %p324, %p325
      %p328 = scmp.ne.s32.totalorder %s313, %s327
      %p329 = scmp.eq.s32.totalorder %s30, 0
      %p330 = por %p328, %p329
      %s332 = sadd.s32 %s331, 1
      %p335 = scmp.eq.s32.totalorder %s24, 1
      %p336 = scmp.ne.s32.totalorder %s331, %s333
      %p337 = scmp.eq.s32.totalorder %s24, 0
      %p338 = por %p336, %p337
      %p339 = scmp.ne.s32.totalorder %s331, %s333
      %p340 = scmp.eq.s32.totalorder %s29, 1
      %p341 = por %p339, %p340
      %p342 = scmp.ne.s32.totalorder %s333, %s334
      %p343 = scmp.eq.s32.totalorder %s29, 0
      %p344 = por %p342, %p343
      %p345 = scmp.ne.s32.totalorder %s333, %s334
      %p346 = scmp.eq.s32.totalorder %s30, 1
      %p347 = por %p345, %p346
      %p349 = scmp.ne.s32.totalorder %s334, %s348
      %p350 = scmp.eq.s32.totalorder %s30, 0
      %p351 = por %p349, %p350
      %s352 = ssub.s32 %s24, %s31
      %p353 = scmp.eq.s32.totalorder %s352, 0
      %s355 = sadd.s32 %s354, 1
      %s356 = scalar_select %p353, %s354, %s355
      %p359 = pneg %p353
      %p360 = scmp.eq.s32.totalorder %s24, 1
      %p361 = por %p359, %p360
      %p362 = scmp.ne.s32.totalorder %s354, %s357
      %p363 = scmp.eq.s32.totalorder %s24, 0
      %p364 = por %p362, %p363
      %p365 = scmp.ne.s32.totalorder %s354, %s357
      %p366 = scmp.eq.s32.totalorder %s29, 1
      %p367 = por %p365, %p366
      %p368 = scmp.ne.s32.totalorder %s357, %s358
      %p369 = scmp.eq.s32.totalorder %s29, 0
      %p370 = por %p368, %p369
      %p371 = scmp.ne.s32.totalorder %s357, %s358
      %p372 = scmp.eq.s32.totalorder %s30, 1
      %p373 = por %p371, %p372
      %p375 = scmp.ne.s32.totalorder %s358, %s374
      %p376 = scmp.eq.s32.totalorder %s30, 0
      %p377 = por %p375, %p376
      %p378 = scmp.le.s32.totalorder 1, %s24
      %p379 = scmp.lt.s32.totalorder %s24, 3
      %p380 = pnand %p378, %p379
      %p381 = pneg %p380
      // Predicated region
      $region9: #{encoder_forward.7} parent=5 // pred_check
        _
      $region10: #{encoder_forward.7} parent=5 // pred_check_branch
        %383 = sbr.rel (%p380) target = $region12
      $region11: #{encoder_forward.7} parent=5 // pred_region
        %s384 = ssub.s32 %s24, 1
        // Predicated region
        $region13: #{encoder_forward.7} parent=11 // pred_check
          %p385 = pneg %p71
        $region14: #{encoder_forward.7} parent=11 // pred_check_branch
          %387 = sbr.rel (%p385) target = $region16
        $region15: #{encoder_forward.7} parent=11 // pred_region
          _
        $region16: #{encoder_forward.7} parent=11 // pred_fallthru
          _
        // Predicated region
        $region17: #{encoder_forward.7} parent=11 // pred_check
          %p388 = pneg %p92
        $region18: #{encoder_forward.7} parent=11 // pred_check_branch
          %390 = sbr.rel (%p388) target = $region20
        $region19: #{encoder_forward.7} parent=11 // pred_region
          _
        $region20: #{encoder_forward.7} parent=11 // pred_fallthru
          _
        // Predicated region
        $region21: #{encoder_forward.7} parent=11 // pred_check
          %p391 = pneg %p113
        $region22: #{encoder_forward.7} parent=11 // pred_check_branch
          %393 = sbr.rel (%p391) target = $region24
        $region23: #{encoder_forward.7} parent=11 // pred_region
          _
        $region24: #{encoder_forward.7} parent=11 // pred_fallthru
          _
        // Predicated region
        $region25: #{encoder_forward.7} parent=11 // pred_check
          %p394 = pneg %p134
        $region26: #{encoder_forward.7} parent=11 // pred_check_branch
          %396 = sbr.rel (%p394) target = $region28
        $region27: #{encoder_forward.7} parent=11 // pred_region
          _
        $region28: #{encoder_forward.7} parent=11 // pred_fallthru
          _
        // Predicated region
        $region29: #{encoder_forward.7} parent=11 // pred_check
          %p397 = pneg %p155
        $region30: #{encoder_forward.7} parent=11 // pred_check_branch
          %399 = sbr.rel (%p397) target = $region32
        $region31: #{encoder_forward.7} parent=11 // pred_region
          _
        $region32: #{encoder_forward.7} parent=11 // pred_fallthru
          _
        // Predicated region
        $region33: #{encoder_forward.7} parent=11 // pred_check
          %p400 = pneg %p176
        $region34: #{encoder_forward.7} parent=11 // pred_check_branch
          %402 = sbr.rel (%p400) target = $region36
        $region35: #{encoder_forward.7} parent=11 // pred_region
          _
        $region36: #{encoder_forward.7} parent=11 // pred_fallthru
          _
        // Predicated region
        $region37: #{encoder_forward.7} parent=11 // pred_check
          %p403 = pneg %p197
        $region38: #{encoder_forward.7} parent=11 // pred_check_branch
          %405 = sbr.rel (%p403) target = $region40
        $region39: #{encoder_forward.7} parent=11 // pred_region
          _
        $region40: #{encoder_forward.7} parent=11 // pred_fallthru
          _
        // Predicated region
        $region41: #{encoder_forward.7} parent=11 // pred_check
          %p406 = pneg %p218
        $region42: #{encoder_forward.7} parent=11 // pred_check_branch
          %408 = sbr.rel (%p406) target = $region44
        $region43: #{encoder_forward.7} parent=11 // pred_region
          _
        $region44: #{encoder_forward.7} parent=11 // pred_fallthru
          _
        // Predicated region
        $region45: #{encoder_forward.7} parent=11 // pred_check
          %p409 = pneg %p239
        $region46: #{encoder_forward.7} parent=11 // pred_check_branch
          %411 = sbr.rel (%p409) target = $region48
        $region47: #{encoder_forward.7} parent=11 // pred_region
          _
        $region48: #{encoder_forward.7} parent=11 // pred_fallthru
          _
        // Predicated region
        $region49: #{encoder_forward.7} parent=11 // pred_check
          %p412 = pneg %p260
        $region50: #{encoder_forward.7} parent=11 // pred_check_branch
          %414 = sbr.rel (%p412) target = $region52
        $region51: #{encoder_forward.7} parent=11 // pred_region
          _
        $region52: #{encoder_forward.7} parent=11 // pred_fallthru
          _
        // Predicated region
        $region53: #{encoder_forward.7} parent=11 // pred_check
          %p415 = pneg %p281
        $region54: #{encoder_forward.7} parent=11 // pred_check_branch
          %417 = sbr.rel (%p415) target = $region56
        $region55: #{encoder_forward.7} parent=11 // pred_region
          _
        $region56: #{encoder_forward.7} parent=11 // pred_fallthru
          _
        // Predicated region
        $region57: #{encoder_forward.7} parent=11 // pred_check
          %p418 = pneg %p302
        $region58: #{encoder_forward.7} parent=11 // pred_check_branch
          %420 = sbr.rel (%p418) target = $region60
        $region59: #{encoder_forward.7} parent=11 // pred_region
          _
        $region60: #{encoder_forward.7} parent=11 // pred_fallthru
          _
        // Predicated region
        $region61: #{encoder_forward.7} parent=11 // pred_check
          %p421 = pneg %p323
        $region62: #{encoder_forward.7} parent=11 // pred_check_branch
          %423 = sbr.rel (%p421) target = $region64
        $region63: #{encoder_forward.7} parent=11 // pred_region
          _
        $region64: #{encoder_forward.7} parent=11 // pred_fallthru
          _
        // Predicated region
        $region65: #{encoder_forward.7} parent=11 // pred_check
          %p424 = pneg %p344
        $region66: #{encoder_forward.7} parent=11 // pred_check_branch
          %426 = sbr.rel (%p424) target = $region68
        $region67: #{encoder_forward.7} parent=11 // pred_region
          _
        $region68: #{encoder_forward.7} parent=11 // pred_fallthru
          _
      $region12: #{encoder_forward.7} parent=5 // pred_fallthru
        _
      %p427 = scmp.lt.s32.totalorder %s24, 2
      // Predicated region
      $region69: #{encoder_forward.7} parent=5 // pred_check
        %p428 = pneg %p427
      $region70: #{encoder_forward.7} parent=5 // pred_check_branch
        %430 = sbr.rel (%p428) target = $region72
      $region71: #{encoder_forward.7} parent=5 // pred_region
        // Predicated region
        $region73: #{encoder_forward.7} parent=71 // pred_check
          %p431 = pneg %p44
        $region74: #{encoder_forward.7} parent=71 // pred_check_branch
          %433 = sbr.rel (%p431) target = $region76
        $region75: #{encoder_forward.7} parent=71 // pred_region
          %p434 = scmp.lt.s32.totalorder %s24, 1
          %s435 = scalar_select %p434, %s24, 1
          %s436 = smul.addr %s435, 8
          %s437 = scalar_lea.vmem %s0, %s436
        $region76: #{encoder_forward.7} parent=71 // pred_fallthru
          _
      $region72: #{encoder_forward.7} parent=5 // pred_fallthru
        _
      %p438 = scmp.le.s32.totalorder 1, %s24
      %p439 = scmp.lt.s32.totalorder %s24, 3
      %p440 = pnand %p438, %p439
      %p441 = pneg %p440
      // Predicated region
      $region77: #{encoder_forward.7} parent=5 // pred_check
        _
      $region78: #{encoder_forward.7} parent=5 // pred_check_branch
        %443 = sbr.rel (%p440) target = $region80
      $region79: #{encoder_forward.7} parent=5 // pred_region
        %s444 = ssub.s32 %s24, 1
        %p445 = scmp.lt.s32.totalorder %s29, 1
        %s446 = scalar_select %p445, %s29, 1
        %s447 = smul.addr %s446, 8
        %s448 = scalar_lea.vmem %s0, %s447
        %p449 = pneg %p50
        %p450 = pneg %p47
        %p451 = pneg %p71
        %p452 = pneg %p68
        %p453 = pneg %p92
        %p454 = pneg %p89
        %p455 = pneg %p113
        %p456 = pneg %p110
        %p457 = pneg %p134
        %p458 = pneg %p131
        %p459 = pneg %p155
        %p460 = pneg %p152
        %p461 = pneg %p176
        %p462 = pneg %p173
        %p463 = pneg %p197
        %p464 = pneg %p194
        %p465 = pneg %p218
        %p466 = pneg %p215
        %p467 = pneg %p239
        %p468 = pneg %p236
        %p469 = pneg %p260
        %p470 = pneg %p257
        %p471 = pneg %p281
        %p472 = pneg %p278
        %p473 = pneg %p302
        %p474 = pneg %p299
        %p475 = pneg %p323
        %p476 = pneg %p320
        %p477 = pneg %p344
        %p478 = pneg %p341
        %p479 = pneg %p370
        %p480 = pneg %p367
        %s481 = sand.u32 %s357, 1
        %s482 = scalar_lea.sflag [#allocation5], %s481
        %s483 = sand.u32 %s357, 1
        %s484 = smul.addr %s483, 8
        %s485 = scalar_lea.vmem [#allocation4], %s484
        %p486 = scmp.lt.s32.totalorder %s29, 1
        %s487 = scalar_select %p486, %s29, 1
        %s488 = smul.addr %s487, 8
        %s489 = scalar_lea.vmem %s0, %s488
        %v491 = vld [vmem:[%s489] sm:$0xff]
        %v492 = vld [vmem:[%s1] sm:$0x1]
        %v493 = vld [vmem:[%s2] sm:$0x1]
        %vm494 = vcmask 261120
        %v495 = vsel %vm494, %v491, 0.0
        %496 = vadd.xlane.f32.xlu0 %v495
        %v497 = vpop.xlane.xlu0 %496
        %v498 = vrcp.pop 32.0
        %v499 = vmul.f32 %v497, %v498
        %v500 = vsub.f32 %v491, %v499
        %v501 = vmul.f32 %v500, %v500
        %v502 = vsel %vm494, %v501, 0.0
        %503 = vadd.xlane.f32.xlu0 %v502
        %v504 = vpop.xlane.xlu0 %503
        %v505 = vmul.f32 %v504, %v498
        %v506 = vadd.f32 %v505, 1e-05
        %v507 = vrsqrt.pop %v506
        %v508 = vmul.f32 %v500, %v507
        %v510 = vlaneseq
        %v511 = vshrl.u32 %v510, 7
        %v512 = vsub.s32 0, %v511
        %v513 = vrot.slane %v492, %v512
        %v515 = vmul.f32 %v513, %v508
        %v517 = vlaneseq
        %v518 = vshrl.u32 %v517, 7
        %v519 = vsub.s32 0, %v518
        %v520 = vrot.slane %v493, %v519
        %v522 = vadd.f32 %v515, %v520
        %v523 = vpack.c.bf16 %v522, %v522
        %v524 = vld [vmem:[%s3] sm:$0xf]
        %v525 = vld [vmem:[%s3 + $0x4] sm:$0xf]
        %v526 = vld [vmem:[%s3 + $0x8] sm:$0xf]
        %v527 = vld [vmem:[%s3 + $0xc] sm:$0xf]
        %v528 = vld [vmem:[%s4] sm:$0x1]
        %v530 = vlaneseq
        %v531 = vshrl.u32 %v530, 7
        %v532 = vsub.s32 0, %v531
        %v533 = vrot.slane %v528, %v532
        %v539 = vunpack.c.l.b16 %v524
        %v540 = vunpack.c.l.b16 %v525
        %v541 = vunpack.c.l.b16 %v526
        %v542 = vunpack.c.l.b16 %v527
        %v543 = vpack.c.b16 %v540, %v539
        %v544 = vpack.c.b16 %v542, %v541
        %v548 = vsel %vm494, %v523, 0
        %550 = vmatprep.subr.bf16.mxu0 0
        %551 = vmatpush1.bf16.msra.mxu0 0
        %552 = vmatprep.subr.bf16.mxu0 0
        %553 = vmatpush1.bf16.msra.mxu0 0
        %554 = vmatprep.subr.bf16.mxu0 0
        %555 = vmatpush1.bf16.msra.mxu0 0
        %556 = vmatprep.subr.bf16.mxu0 0
        %557 = vmatpush1.bf16.msra.mxu0 0
        %558 = vmatprep.subr.bf16.mxu0 0
        %559 = vmatpush1.bf16.msra.mxu0 0
        %560 = vmatprep.subr.bf16.mxu0 0
        %561 = vmatpush1.bf16.msra.mxu0 0
        %562 = vmatprep.subr.bf16.mxu0 0
        %563 = vmatpush1.bf16.msra.mxu0 %v544
        %564 = vmatprep.subr.bf16.mxu0 0
        %565 = vmatpush1.bf16.msra.mxu0 %v543
        %566 = vmatprep.subr.bf16.mxu0 0
        %567 = vmatpush2.bf16.msra.mxu0 0
        %568 = vmatprep.subr.bf16.mxu0 0
        %569 = vmatpush2.bf16.msra.mxu0 0
        %570 = vmatprep.subr.bf16.mxu0 0
        %571 = vmatpush2.bf16.msra.mxu0 0
        %572 = vmatprep.subr.bf16.mxu0 0
        %573 = vmatpush2.bf16.msra.mxu0 0
        %574 = vmatprep.subr.bf16.mxu0 0
        %575 = vmatpush2.bf16.msra.mxu0 0
        %576 = vmatprep.subr.bf16.mxu0 0
        %577 = vmatpush2.bf16.msra.mxu0 0
        %578 = vmatprep.subr.bf16.mxu0 0
        %579 = vmatpush2.bf16.msra.mxu0 0
        %580 = vmatprep.subr.bf16.mxu0 0
        %581 = vmatpush2.bf16.msra.mxu0 0
        %582 = vmatprep.mubr.bf16.mxu0 0
        %583 = vmatmul.mubr.bf16.gmra.mxu0 %v548
        %v584 = vpop.f32.mrf.mxu0
        %v585 = vadd.f32 %v533, %v584
        %v586 = vpop.f32.mrf.mxu0
        %v587 = vpop.f32.mrf.mxu0
        %v588 = vpop.f32.mrf.mxu0
        %589 = vdwg.mxu0
        %v590 = vpack.c.bf16 %v585, %v585
        %vm591 = vcmask 781312
        %592 = vst.msk [vmem:[#allocation2] sm:$0xf] %vm591, %v590
        %v593 = vld [vmem:[#allocation2] sm:$0xf]
        %v595 = vunpack.c.l.b16 %v593
        %v596 = vpack.c.b16 %v595, %v595
        %597 = vrot.lane.b32.xlu0 %v596, 96
        %v598 = vpop.permute.xlu0 %597
        %vm599 = vcmask 64512
        %v601 = vsel %vm599, %v593, 0
        %v604 = vsel %vm599, %v598, 0
        %606 = vmatprep.subr.bf16.mxu0 0
        %607 = vmatpush1.bf16.xpose.msra.mxu0 0
        %608 = vmatprep.subr.bf16.mxu0 0
        %609 = vmatpush1.bf16.xpose.msra.mxu0 0
        %610 = vmatprep.subr.bf16.mxu0 0
        %611 = vmatpush1.bf16.xpose.msra.mxu0 0
        %612 = vmatprep.subr.bf16.mxu0 0
        %613 = vmatpush1.bf16.xpose.msra.mxu0 0
        %614 = vmatprep.subr.bf16.mxu0 0
        %615 = vmatpush1.bf16.xpose.msra.mxu0 0
        %616 = vmatprep.subr.bf16.mxu0 0
        %617 = vmatpush1.bf16.xpose.msra.mxu0 0
        %618 = vmatprep.subr.bf16.mxu0 0
        %619 = vmatpush1.bf16.xpose.msra.mxu0 0
        %620 = vmatprep.subr.bf16.mxu0 0
        %621 = vmatpush1.bf16.xpose.msra.mxu0 %v604
        %622 = vmatprep.subr.bf16.mxu0 0
        %623 = vmatpush2.bf16.xpose.msra.mxu0 0
        %624 = vmatprep.subr.bf16.mxu0 0
        %625 = vmatpush2.bf16.xpose.msra.mxu0 0
        %626 = vmatprep.subr.bf16.mxu0 0
        %627 = vmatpush2.bf16.xpose.msra.mxu0 0
        %628 = vmatprep.subr.bf16.mxu0 0
        %629 = vmatpush2.bf16.xpose.msra.mxu0 0
        %630 = vmatprep.subr.bf16.mxu0 0
        %631 = vmatpush2.bf16.xpose.msra.mxu0 0
        %632 = vmatprep.subr.bf16.mxu0 0
        %633 = vmatpush2.bf16.xpose.msra.mxu0 0
        %634 = vmatprep.subr.bf16.mxu0 0
        %635 = vmatpush2.bf16.xpose.msra.mxu0 0
        %636 = vmatprep.subr.bf16.mxu0 0
        %637 = vmatpush2.bf16.xpose.msra.mxu0 0
        %638 = vmatprep.mubr.bf16.mxu0 0
        %639 = vmatmul.mubr.bf16.gmra.mxu0 %v601
        %v640 = vpop.f32.mrf.mxu0
        %v641 = vadd.f32 0.0, %v640
        %v642 = vpop.f32.mrf.mxu0
        %v643 = vpop.f32.mrf.mxu0
        %v644 = vpop.f32.mrf.mxu0
        %645 = vdwg.mxu0
        %v646 = vsel %vm599, %v641, -inf
        %647 = vmax.xlane.f32.xlu0 %v646
        %v648 = vpop.xlane.xlu0 %647
        %v649 = vsub.f32 %v641, %v648
        %v650 = vmul.f32 %v649, 1.442695
        %v651 = vpow.pop %v650
        %v652 = vsel %vm599, %v651, 0.0
        %653 = vadd.xlane.f32.xlu0 %v652
        %v654 = vpop.xlane.xlu0 %653
        %v655 = vrcp.pop %v654
        %v656 = vmul.f32 %v651, %v655
        %v657 = vpack.c.bf16 %v656, %v656
        %658 = vrot.lane.b32.xlu0 %v596, 64
        %v659 = vpop.permute.xlu0 %658
        %v661 = vsel %vm599, %v657, 0
        %vm663 = vcmask 1043456
        %v665 = vsel %vm663, %v659, 0
        %667 = vmatprep.subr.bf16.mxu0 0
        %668 = vmatpush1.bf16.msra.mxu0 0
        %669 = vmatprep.subr.bf16.mxu0 0
        %670 = vmatpush1.bf16.msra.mxu0 0
        %671 = vmatprep.subr.bf16.mxu0 0
        %672 = vmatpush1.bf16.msra.mxu0 0
        %673 = vmatprep.subr.bf16.mxu0 0
        %674 = vmatpush1.bf16.msra.mxu0 0
        %675 = vmatprep.subr.bf16.mxu0 0
        %676 = vmatpush1.bf16.msra.mxu0 0
        %677 = vmatprep.subr.bf16.mxu0 0
        %678 = vmatpush1.bf16.msra.mxu0 0
        %679 = vmatprep.subr.bf16.mxu0 0
        %680 = vmatpush1.bf16.msra.mxu0 0
        %681 = vmatprep.subr.bf16.mxu0 0
        %682 = vmatpush1.bf16.msra.mxu0 %v665
        %683 = vmatprep.subr.bf16.mxu0 0
        %684 = vmatpush2.bf16.msra.mxu0 0
        %685 = vmatprep.subr.bf16.mxu0 0
        %686 = vmatpush2.bf16.msra.mxu0 0
        %687 = vmatprep.subr.bf16.mxu0 0
        %688 = vmatpush2.bf16.msra.mxu0 0
        %689 = vmatprep.subr.bf16.mxu0 0
        %690 = vmatpush2.bf16.msra.mxu0 0
        %691 = vmatprep.subr.bf16.mxu0 0
        %692 = vmatpush2.bf16.msra.mxu0 0
        %693 = vmatprep.subr.bf16.mxu0 0
        %694 = vmatpush2.bf16.msra.mxu0 0
        %695 = vmatprep.subr.bf16.mxu0 0
        %696 = vmatpush2.bf16.msra.mxu0 0
        %697 = vmatprep.subr.bf16.mxu0 0
        %698 = vmatpush2.bf16.msra.mxu0 0
        %699 = vmatprep.mubr.bf16.mxu0 0
        %700 = vmatmul.mubr.bf16.gmra.mxu0 %v661
        %v701 = vpop.f32.mrf.mxu0
        %v702 = vadd.f32 0.0, %v701
        %v703 = vpop.f32.mrf.mxu0
        %v704 = vpop.f32.mrf.mxu0
        %v705 = vpop.f32.mrf.mxu0
        %706 = vdwg.mxu0
        %v707 = vpack.c.bf16 %v702, %v702
        %vm708 = vcmask 60416
        %709 = vst.msk [vmem:[#allocation3] sm:$0xf] %vm708, %v707
        %v710 = vld [vmem:[#allocation2] sm:$0xf]
        %v712 = vunpack.c.l.b16 %v710
        %v713 = vpack.c.b16 %v712, %v712
        %714 = vrot.lane.b32.xlu0 %v713, 120
        %v715 = vpop.permute.xlu0 %714
        %716 = vrot.lane.b32.xlu0 %v713, 88
        %v717 = vpop.permute.xlu0 %716
        %v719 = vsel %vm599, %v715, 0
        %v722 = vsel %vm599, %v717, 0
        %724 = vmatprep.subr.bf16.mxu0 0
        %725 = vmatpush1.bf16.xpose.msra.mxu0 0
        %726 = vmatprep.subr.bf16.mxu0 0
        %727 = vmatpush1.bf16.xpose.msra.mxu0 0
        %728 = vmatprep.subr.bf16.mxu0 0
        %729 = vmatpush1.bf16.xpose.msra.mxu0 0
        %730 = vmatprep.subr.bf16.mxu0 0
        %731 = vmatpush1.bf16.xpose.msra.mxu0 0
        %732 = vmatprep.subr.bf16.mxu0 0
        %733 = vmatpush1.bf16.xpose.msra.mxu0 0
        %734 = vmatprep.subr.bf16.mxu0 0
        %735 = vmatpush1.bf16.xpose.msra.mxu0 0
        %736 = vmatprep.subr.bf16.mxu0 0
        %737 = vmatpush1.bf16.xpose.msra.mxu0 0
        %738 = vmatprep.subr.bf16.mxu0 0
        %739 = vmatpush1.bf16.xpose.msra.mxu0 %v722
        %740 = vmatprep.subr.bf16.mxu0 0
        %741 = vmatpush2.bf16.xpose.msra.mxu0 0
        %742 = vmatprep.subr.bf16.mxu0 0
        %743 = vmatpush2.bf16.xpose.msra.mxu0 0
        %744 = vmatprep.subr.bf16.mxu0 0
        %745 = vmatpush2.bf16.xpose.msra.mxu0 0
        %746 = vmatprep.subr.bf16.mxu0 0
        %747 = vmatpush2.bf16.xpose.msra.mxu0 0
        %748 = vmatprep.subr.bf16.mxu0 0
        %749 = vmatpush2.bf16.xpose.msra.mxu0 0
        %750 = vmatprep.subr.bf16.mxu0 0
        %751 = vmatpush2.bf16.xpose.msra.mxu0 0
        %752 = vmatprep.subr.bf16.mxu0 0
        %753 = vmatpush2.bf16.xpose.msra.mxu0 0
        %754 = vmatprep.subr.bf16.mxu0 0
        %755 = vmatpush2.bf16.xpose.msra.mxu0 0
        %756 = vmatprep.mubr.bf16.mxu0 0
        %757 = vmatmul.mubr.bf16.gmra.mxu0 %v719
        %v758 = vpop.f32.mrf.mxu0
        %v759 = vadd.f32 0.0, %v758
        %v760 = vpop.f32.mrf.mxu0
        %v761 = vpop.f32.mrf.mxu0
        %v762 = vpop.f32.mrf.mxu0
        %763 = vdwg.mxu0
        %v764 = vsel %vm599, %v759, -inf
        %765 = vmax.xlane.f32.xlu0 %v764
        %v766 = vpop.xlane.xlu0 %765
        %v767 = vsub.f32 %v759, %v766
        %v768 = vmul.f32 %v767, 1.442695
        %v769 = vpow.pop %v768
        %v770 = vsel %vm599, %v769, 0.0
        %771 = vadd.xlane.f32.xlu0 %v770
        %v772 = vpop.xlane.xlu0 %771
        %v773 = vrcp.pop %v772
        %v774 = vmul.f32 %v769, %v773
        %v775 = vpack.c.bf16 %v774, %v774
        %776 = vrot.lane.b32.xlu0 %v713, 56
        %v777 = vpop.permute.xlu0 %776
        %v779 = vsel %vm599, %v775, 0
        %v782 = vsel %vm663, %v777, 0
        %784 = vmatprep.subr.bf16.mxu0 0
        %785 = vmatpush1.bf16.msra.mxu0 0
        %786 = vmatprep.subr.bf16.mxu0 0
        %787 = vmatpush1.bf16.msra.mxu0 0
        %788 = vmatprep.subr.bf16.mxu0 0
        %789 = vmatpush1.bf16.msra.mxu0 0
        %790 = vmatprep.subr.bf16.mxu0 0
        %791 = vmatpush1.bf16.msra.mxu0 0
        %792 = vmatprep.subr.bf16.mxu0 0
        %793 = vmatpush1.bf16.msra.mxu0 0
        %794 = vmatprep.subr.bf16.mxu0 0
        %795 = vmatpush1.bf16.msra.mxu0 0
        %796 = vmatprep.subr.bf16.mxu0 0
        %797 = vmatpush1.bf16.msra.mxu0 0
        %798 = vmatprep.subr.bf16.mxu0 0
        %799 = vmatpush1.bf16.msra.mxu0 %v782
        %800 = vmatprep.subr.bf16.mxu0 0
        %801 = vmatpush2.bf16.msra.mxu0 0
        %802 = vmatprep.subr.bf16.mxu0 0
        %803 = vmatpush2.bf16.msra.mxu0 0
        %804 = vmatprep.subr.bf16.mxu0 0
        %805 = vmatpush2.bf16.msra.mxu0 0
        %806 = vmatprep.subr.bf16.mxu0 0
        %807 = vmatpush2.bf16.msra.mxu0 0
        %808 = vmatprep.subr.bf16.mxu0 0
        %809 = vmatpush2.bf16.msra.mxu0 0
        %810 = vmatprep.subr.bf16.mxu0 0
        %811 = vmatpush2.bf16.msra.mxu0 0
        %812 = vmatprep.subr.bf16.mxu0 0
        %813 = vmatpush2.bf16.msra.mxu0 0
        %814 = vmatprep.subr.bf16.mxu0 0
        %815 = vmatpush2.bf16.msra.mxu0 0
        %816 = vmatprep.mubr.bf16.mxu0 0
        %817 = vmatmul.mubr.bf16.gmra.mxu0 %v779
        %v818 = vpop.f32.mrf.mxu0
        %v819 = vadd.f32 0.0, %v818
        %v820 = vpop.f32.mrf.mxu0
        %v821 = vpop.f32.mrf.mxu0
        %v822 = vpop.f32.mrf.mxu0
        %823 = vdwg.mxu0
        %v824 = vpack.c.bf16 %v819, %v819
        %v826 = vunpack.c.l.b16 %v824
        %v827 = vpack.c.b16 %v826, %v826
        %828 = vrot.lane.b32.xlu0 %v827, 8
        %v829 = vpop.permute.xlu0 %828
        %vm831 = vcmask 126016
        %832 = vst.msk [vmem:[#allocation3] sm:$0xf] %vm831, %v829
        %v833 = vld [vmem:[#allocation2] sm:$0xf]
        %v835 = vunpack.c.l.b16 %v833
        %v836 = vpack.c.b16 %v835, %v835
        %837 = vrot.lane.b32.xlu0 %v836, 112
        %v838 = vpop.permute.xlu0 %837
        %839 = vrot.lane.b32.xlu0 %v836, 80
        %v840 = vpop.permute.xlu0 %839
        %v842 = vsel %vm599, %v838, 0
        %v845 = vsel %vm599, %v840, 0
        %847 = vmatprep.subr.bf16.mxu0 0
        %848 = vmatpush1.bf16.xpose.msra.mxu0 0
        %849 = vmatprep.subr.bf16.mxu0 0
        %850 = vmatpush1.bf16.xpose.msra.mxu0 0
        %851 = vmatprep.subr.bf16.mxu0 0
        %852 = vmatpush1.bf16.xpose.msra.mxu0 0
        %853 = vmatprep.subr.bf16.mxu0 0
        %854 = vmatpush1.bf16.xpose.msra.mxu0 0
        %855 = vmatprep.subr.bf16.mxu0 0
        %856 = vmatpush1.bf16.xpose.msra.mxu0 0
        %857 = vmatprep.subr.bf16.mxu0 0
        %858 = vmatpush1.bf16.xpose.msra.mxu0 0
        %859 = vmatprep.subr.bf16.mxu0 0
        %860 = vmatpush1.bf16.xpose.msra.mxu0 0
        %861 = vmatprep.subr.bf16.mxu0 0
        %862 = vmatpush1.bf16.xpose.msra.mxu0 %v845
        %863 = vmatprep.subr.bf16.mxu0 0
        %864 = vmatpush2.bf16.xpose.msra.mxu0 0
        %865 = vmatprep.subr.bf16.mxu0 0
        %866 = vmatpush2.bf16.xpose.msra.mxu0 0
        %867 = vmatprep.subr.bf16.mxu0 0
        %868 = vmatpush2.bf16.xpose.msra.mxu0 0
        %869 = vmatprep.subr.bf16.mxu0 0
        %870 = vmatpush2.bf16.xpose.msra.mxu0 0
        %871 = vmatprep.subr.bf16.mxu0 0
        %872 = vmatpush2.bf16.xpose.msra.mxu0 0
        %873 = vmatprep.subr.bf16.mxu0 0
        %874 = vmatpush2.bf16.xpose.msra.mxu0 0
        %875 = vmatprep.subr.bf16.mxu0 0
        %876 = vmatpush2.bf16.xpose.msra.mxu0 0
        %877 = vmatprep.subr.bf16.mxu0 0
        %878 = vmatpush2.bf16.xpose.msra.mxu0 0
        %879 = vmatprep.mubr.bf16.mxu0 0
        %880 = vmatmul.mubr.bf16.gmra.mxu0 %v842
        %v881 = vpop.f32.mrf.mxu0
        %v882 = vadd.f32 0.0, %v881
        %v883 = vpop.f32.mrf.mxu0
        %v884 = vpop.f32.mrf.mxu0
        %v885 = vpop.f32.mrf.mxu0
        %886 = vdwg.mxu0
        %v887 = vsel %vm599, %v882, -inf
        %888 = vmax.xlane.f32.xlu0 %v887
        %v889 = vpop.xlane.xlu0 %888
        %v890 = vsub.f32 %v882, %v889
        %v891 = vmul.f32 %v890, 1.442695
        %v892 = vpow.pop %v891
        %v893 = vsel %vm599, %v892, 0.0
        %894 = vadd.xlane.f32.xlu0 %v893
        %v895 = vpop.xlane.xlu0 %894
        %v896 = vrcp.pop %v895
        %v897 = vmul.f32 %v892, %v896
        %v898 = vpack.c.bf16 %v897, %v897
        %899 = vrot.lane.b32.xlu0 %v836, 48
        %v900 = vpop.permute.xlu0 %899
        %v902 = vsel %vm599, %v898, 0
        %v905 = vsel %vm663, %v900, 0
        %907 = vmatprep.subr.bf16.mxu0 0
        %908 = vmatpush1.bf16.msra.mxu0 0
        %909 = vmatprep.subr.bf16.mxu0 0
        %910 = vmatpush1.bf16.msra.mxu0 0
        %911 = vmatprep.subr.bf16.mxu0 0
        %912 = vmatpush1.bf16.msra.mxu0 0
        %913 = vmatprep.subr.bf16.mxu0 0
        %914 = vmatpush1.bf16.msra.mxu0 0
        %915 = vmatprep.subr.bf16.mxu0 0
        %916 = vmatpush1.bf16.msra.mxu0 0
        %917 = vmatprep.subr.bf16.mxu0 0
        %918 = vmatpush1.bf16.msra.mxu0 0
        %919 = vmatprep.subr.bf16.mxu0 0
        %920 = vmatpush1.bf16.msra.mxu0 0
        %921 = vmatprep.subr.bf16.mxu0 0
        %922 = vmatpush1.bf16.msra.mxu0 %v905
        %923 = vmatprep.subr.bf16.mxu0 0
        %924 = vmatpush2.bf16.msra.mxu0 0
        %925 = vmatprep.subr.bf16.mxu0 0
        %926 = vmatpush2.bf16.msra.mxu0 0
        %927 = vmatprep.subr.bf16.mxu0 0
        %928 = vmatpush2.bf16.msra.mxu0 0
        %929 = vmatprep.subr.bf16.mxu0 0
        %930 = vmatpush2.bf16.msra.mxu0 0
        %931 = vmatprep.subr.bf16.mxu0 0
        %932 = vmatpush2.bf16.msra.mxu0 0
        %933 = vmatprep.subr.bf16.mxu0 0
        %934 = vmatpush2.bf16.msra.mxu0 0
        %935 = vmatprep.subr.bf16.mxu0 0
        %936 = vmatpush2.bf16.msra.mxu0 0
        %937 = vmatprep.subr.bf16.mxu0 0
        %938 = vmatpush2.bf16.msra.mxu0 0
        %939 = vmatprep.mubr.bf16.mxu0 0
        %940 = vmatmul.mubr.bf16.gmra.mxu0 %v902
        %v941 = vpop.f32.mrf.mxu0
        %v942 = vadd.f32 0.0, %v941
        %v943 = vpop.f32.mrf.mxu0
        %v944 = vpop.f32.mrf.mxu0
        %v945 = vpop.f32.mrf.mxu0
        %946 = vdwg.mxu0
        %v947 = vpack.c.bf16 %v942, %v942
        %v949 = vunpack.c.l.b16 %v947
        %v950 = vpack.c.b16 %v949, %v949
        %951 = vrot.lane.b32.xlu0 %v950, 16
        %v952 = vpop.permute.xlu0 %951
        %vm954 = vcmask 191616
        %955 = vst.msk [vmem:[#allocation3] sm:$0xf] %vm954, %v952
        %v956 = vld [vmem:[#allocation2] sm:$0xf]
        %v958 = vunpack.c.l.b16 %v956
        %v959 = vpack.c.b16 %v958, %v958
        %960 = vrot.lane.b32.xlu0 %v959, 104
        %v961 = vpop.permute.xlu0 %960
        %962 = vrot.lane.b32.xlu0 %v959, 72
        %v963 = vpop.permute.xlu0 %962
        %v965 = vsel %vm599, %v961, 0
        %v968 = vsel %vm599, %v963, 0
        %970 = vmatprep.subr.bf16.mxu0 0
        %971 = vmatpush1.bf16.xpose.msra.mxu0 0
        %972 = vmatprep.subr.bf16.mxu0 0
        %973 = vmatpush1.bf16.xpose.msra.mxu0 0
        %974 = vmatprep.subr.bf16.mxu0 0
        %975 = vmatpush1.bf16.xpose.msra.mxu0 0
        %976 = vmatprep.subr.bf16.mxu0 0
        %977 = vmatpush1.bf16.xpose.msra.mxu0 0
        %978 = vmatprep.subr.bf16.mxu0 0
        %979 = vmatpush1.bf16.xpose.msra.mxu0 0
        %980 = vmatprep.subr.bf16.mxu0 0
        %981 = vmatpush1.bf16.xpose.msra.mxu0 0
        %982 = vmatprep.subr.bf16.mxu0 0
        %983 = vmatpush1.bf16.xpose.msra.mxu0 0
        %984 = vmatprep.subr.bf16.mxu0 0
        %985 = vmatpush1.bf16.xpose.msra.mxu0 %v968
        %986 = vmatprep.subr.bf16.mxu0 0
        %987 = vmatpush2.bf16.xpose.msra.mxu0 0
        %988 = vmatprep.subr.bf16.mxu0 0
        %989 = vmatpush2.bf16.xpose.msra.mxu0 0
        %990 = vmatprep.subr.bf16.mxu0 0
        %991 = vmatpush2.bf16.xpose.msra.mxu0 0
        %992 = vmatprep.subr.bf16.mxu0 0
        %993 = vmatpush2.bf16.xpose.msra.mxu0 0
        %994 = vmatprep.subr.bf16.mxu0 0
        %995 = vmatpush2.bf16.xpose.msra.mxu0 0
        %996 = vmatprep.subr.bf16.mxu0 0
        %997 = vmatpush2.bf16.xpose.msra.mxu0 0
        %998 = vmatprep.subr.bf16.mxu0 0
        %999 = vmatpush2.bf16.xpose.msra.mxu0 0
        %1000 = vmatprep.subr.bf16.mxu0 0
        %1001 = vmatpush2.bf16.xpose.msra.mxu0 0
        %1002 = vmatprep.mubr.bf16.mxu0 0
        %1003 = vmatmul.mubr.bf16.gmra.mxu0 %v965
        %v1004 = vpop.f32.mrf.mxu0
        %v1005 = vadd.f32 0.0, %v1004
        %v1006 = vpop.f32.mrf.mxu0
        %v1007 = vpop.f32.mrf.mxu0
        %v1008 = vpop.f32.mrf.mxu0
        %1009 = vdwg.mxu0
        %v1010 = vsel %vm599, %v1005, -inf
        %1011 = vmax.xlane.f32.xlu0 %v1010
        %v1012 = vpop.xlane.xlu0 %1011
        %v1013 = vsub.f32 %v1005, %v1012
        %v1014 = vmul.f32 %v1013, 1.442695
        %v1015 = vpow.pop %v1014
        %v1016 = vsel %vm599, %v1015, 0.0
        %1017 = vadd.xlane.f32.xlu0 %v1016
        %v1018 = vpop.xlane.xlu0 %1017
        %v1019 = vrcp.pop %v1018
        %v1020 = vmul.f32 %v1015, %v1019
        %v1021 = vpack.c.bf16 %v1020, %v1020
        %1022 = vrot.lane.b32.xlu0 %v959, 40
        %v1023 = vpop.permute.xlu0 %1022
        %v1025 = vsel %vm599, %v1021, 0
        %v1028 = vsel %vm663, %v1023, 0
        %1030 = vmatprep.subr.bf16.mxu0 0
        %1031 = vmatpush1.bf16.msra.mxu0 0
        %1032 = vmatprep.subr.bf16.mxu0 0
        %1033 = vmatpush1.bf16.msra.mxu0 0
        %1034 = vmatprep.subr.bf16.mxu0 0
        %1035 = vmatpush1.bf16.msra.mxu0 0
        %1036 = vmatprep.subr.bf16.mxu0 0
        %1037 = vmatpush1.bf16.msra.mxu0 0
        %1038 = vmatprep.subr.bf16.mxu0 0
        %1039 = vmatpush1.bf16.msra.mxu0 0
        %1040 = vmatprep.subr.bf16.mxu0 0
        %1041 = vmatpush1.bf16.msra.mxu0 0
        %1042 = vmatprep.subr.bf16.mxu0 0
        %1043 = vmatpush1.bf16.msra.mxu0 0
        %1044 = vmatprep.subr.bf16.mxu0 0
        %1045 = vmatpush1.bf16.msra.mxu0 %v1028
        %1046 = vmatprep.subr.bf16.mxu0 0
        %1047 = vmatpush2.bf16.msra.mxu0 0
        %1048 = vmatprep.subr.bf16.mxu0 0
        %1049 = vmatpush2.bf16.msra.mxu0 0
        %1050 = vmatprep.subr.bf16.mxu0 0
        %1051 = vmatpush2.bf16.msra.mxu0 0
        %1052 = vmatprep.subr.bf16.mxu0 0
        %1053 = vmatpush2.bf16.msra.mxu0 0
        %1054 = vmatprep.subr.bf16.mxu0 0
        %1055 = vmatpush2.bf16.msra.mxu0 0
        %1056 = vmatprep.subr.bf16.mxu0 0
        %1057 = vmatpush2.bf16.msra.mxu0 0
        %1058 = vmatprep.subr.bf16.mxu0 0
        %1059 = vmatpush2.bf16.msra.mxu0 0
        %1060 = vmatprep.subr.bf16.mxu0 0
        %1061 = vmatpush2.bf16.msra.mxu0 0
        %1062 = vmatprep.mubr.bf16.mxu0 0
        %1063 = vmatmul.mubr.bf16.gmra.mxu0 %v1025
        %v1064 = vpop.f32.mrf.mxu0
        %v1065 = vadd.f32 0.0, %v1064
        %v1066 = vpop.f32.mrf.mxu0
        %v1067 = vpop.f32.mrf.mxu0
        %v1068 = vpop.f32.mrf.mxu0
        %1069 = vdwg.mxu0
        %v1070 = vpack.c.bf16 %v1065, %v1065
        %v1072 = vunpack.c.l.b16 %v1070
        %v1073 = vpack.c.b16 %v1072, %v1072
        %1074 = vrot.lane.b32.xlu0 %v1073, 24
        %v1075 = vpop.permute.xlu0 %1074
        %vm1077 = vcmask 257216
        %1078 = vst.msk [vmem:[#allocation3] sm:$0xf] %vm1077, %v1075
        %v1079 = vld [vmem:[#allocation3] sm:$0xf]
        %v1080 = vld [vmem:[%s5] sm:$0xf]
        %v1081 = vld [vmem:[%s5 + $0x4] sm:$0xf]
        %v1082 = vld [vmem:[%s5 + $0x8] sm:$0xf]
        %v1083 = vld [vmem:[%s5 + $0xc] sm:$0xf]
        %v1084 = vld [vmem:[%s6] sm:$0x1]
        %v1086 = vlaneseq
        %v1087 = vshrl.u32 %v1086, 7
        %v1088 = vsub.s32 0, %v1087
        %v1089 = vrot.slane %v1084, %v1088
        %v1095 = vunpack.c.l.b16 %v1080
        %v1096 = vunpack.c.l.b16 %v1081
        %v1097 = vunpack.c.l.b16 %v1082
        %v1098 = vunpack.c.l.b16 %v1083
        %v1099 = vpack.c.b16 %v1096, %v1095
        %v1100 = vpack.c.b16 %v1098, %v1097
        %v1104 = vsel %vm494, %v1079, 0
        %1106 = vmatprep.subr.bf16.mxu0 0
        %1107 = vmatpush1.bf16.msra.mxu0 0
        %1108 = vmatprep.subr.bf16.mxu0 0
        %1109 = vmatpush1.bf16.msra.mxu0 0
        %1110 = vmatprep.subr.bf16.mxu0 0
        %1111 = vmatpush1.bf16.msra.mxu0 0
        %1112 = vmatprep.subr.bf16.mxu0 0
        %1113 = vmatpush1.bf16.msra.mxu0 0
        %1114 = vmatprep.subr.bf16.mxu0 0
        %1115 = vmatpush1.bf16.msra.mxu0 0
        %1116 = vmatprep.subr.bf16.mxu0 0
        %1117 = vmatpush1.bf16.msra.mxu0 0
        %1118 = vmatprep.subr.bf16.mxu0 0
        %1119 = vmatpush1.bf16.msra.mxu0 %v1100
        %1120 = vmatprep.subr.bf16.mxu0 0
        %1121 = vmatpush1.bf16.msra.mxu0 %v1099
        %1122 = vmatprep.subr.bf16.mxu0 0
        %1123 = vmatpush2.bf16.msra.mxu0 0
        %1124 = vmatprep.subr.bf16.mxu0 0
        %1125 = vmatpush2.bf16.msra.mxu0 0
        %1126 = vmatprep.subr.bf16.mxu0 0
        %1127 = vmatpush2.bf16.msra.mxu0 0
        %1128 = vmatprep.subr.bf16.mxu0 0
        %1129 = vmatpush2.bf16.msra.mxu0 0
        %1130 = vmatprep.subr.bf16.mxu0 0
        %1131 = vmatpush2.bf16.msra.mxu0 0
        %1132 = vmatprep.subr.bf16.mxu0 0
        %1133 = vmatpush2.bf16.msra.mxu0 0
        %1134 = vmatprep.subr.bf16.mxu0 0
        %1135 = vmatpush2.bf16.msra.mxu0 0
        %1136 = vmatprep.subr.bf16.mxu0 0
        %1137 = vmatpush2.bf16.msra.mxu0 0
        %1138 = vmatprep.mubr.bf16.mxu0 0
        %1139 = vmatmul.mubr.bf16.gmra.mxu0 %v1104
        %v1140 = vpop.f32.mrf.mxu0
        %v1141 = vadd.f32 %v1089, %v1140
        %v1142 = vpop.f32.mrf.mxu0
        %v1143 = vpop.f32.mrf.mxu0
        %v1144 = vpop.f32.mrf.mxu0
        %1145 = vdwg.mxu0
        %v1146 = vadd.f32 %v491, %v1141
        %v1147 = vld [vmem:[%s7] sm:$0x1]
        %v1148 = vld [vmem:[%s8] sm:$0x1]
        %v1149 = vsel %vm494, %v1146, 0.0
        %1150 = vadd.xlane.f32.xlu0 %v1149
        %v1151 = vpop.xlane.xlu0 %1150
        %v1152 = vmul.f32 %v1151, %v498
        %v1153 = vsub.f32 %v1146, %v1152
        %v1154 = vmul.f32 %v1153, %v1153
        %v1155 = vsel %vm494, %v1154, 0.0
        %1156 = vadd.xlane.f32.xlu0 %v1155
        %v1157 = vpop.xlane.xlu0 %1156
        %v1158 = vmul.f32 %v1157, %v498
        %v1159 = vadd.f32 %v1158, 1e-05
        %v1160 = vrsqrt.pop %v1159
        %v1161 = vmul.f32 %v1153, %v1160
        %v1163 = vlaneseq
        %v1164 = vshrl.u32 %v1163, 7
        %v1165 = vsub.s32 0, %v1164
        %v1166 = vrot.slane %v1147, %v1165
        %v1168 = vmul.f32 %v1166, %v1161
        %v1170 = vlaneseq
        %v1171 = vshrl.u32 %v1170, 7
        %v1172 = vsub.s32 0, %v1171
        %v1173 = vrot.slane %v1148, %v1172
        %v1175 = vadd.f32 %v1168, %v1173
        %v1176 = vpack.c.bf16 %v1175, %v1175
        %v1177 = vld [vmem:[%s9] sm:$0xf]
        %v1178 = vld [vmem:[%s9 + $0x4] sm:$0xf]
        %v1179 = vld [vmem:[%s9 + $0x8] sm:$0xf]
        %v1180 = vld [vmem:[%s9 + $0xc] sm:$0xf]
        %v1181 = vld [vmem:[%s10] sm:$0x1]
        %v1183 = vlaneseq
        %v1184 = vshrl.u32 %v1183, 7
        %v1185 = vsub.s32 0, %v1184
        %v1186 = vrot.slane %v1181, %v1185
        %v1192 = vunpack.c.l.b16 %v1177
        %v1193 = vunpack.c.l.b16 %v1178
        %v1194 = vunpack.c.l.b16 %v1179
        %v1195 = vunpack.c.l.b16 %v1180
        %v1196 = vpack.c.b16 %v1193, %v1192
        %v1197 = vpack.c.b16 %v1195, %v1194
        %v1201 = vsel %vm494, %v1176, 0
        %1203 = vmatprep.subr.bf16.mxu0 0
        %1204 = vmatpush1.bf16.msra.mxu0 0
        %1205 = vmatprep.subr.bf16.mxu0 0
        %1206 = vmatpush1.bf16.msra.mxu0 0
        %1207 = vmatprep.subr.bf16.mxu0 0
        %1208 = vmatpush1.bf16.msra.mxu0 0
        %1209 = vmatprep.subr.bf16.mxu0 0
        %1210 = vmatpush1.bf16.msra.mxu0 0
        %1211 = vmatprep.subr.bf16.mxu0 0
        %1212 = vmatpush1.bf16.msra.mxu0 0
        %1213 = vmatprep.subr.bf16.mxu0 0
        %1214 = vmatpush1.bf16.msra.mxu0 0
        %1215 = vmatprep.subr.bf16.mxu0 0
        %1216 = vmatpush1.bf16.msra.mxu0 %v1197
        %1217 = vmatprep.subr.bf16.mxu0 0
        %1218 = vmatpush1.bf16.msra.mxu0 %v1196
        %1219 = vmatprep.subr.bf16.mxu0 0
        %1220 = vmatpush2.bf16.msra.mxu0 0
        %1221 = vmatprep.subr.bf16.mxu0 0
        %1222 = vmatpush2.bf16.msra.mxu0 0
        %1223 = vmatprep.subr.bf16.mxu0 0
        %1224 = vmatpush2.bf16.msra.mxu0 0
        %1225 = vmatprep.subr.bf16.mxu0 0
        %1226 = vmatpush2.bf16.msra.mxu0 0
        %1227 = vmatprep.subr.bf16.mxu0 0
        %1228 = vmatpush2.bf16.msra.mxu0 0
        %1229 = vmatprep.subr.bf16.mxu0 0
        %1230 = vmatpush2.bf16.msra.mxu0 0
        %1231 = vmatprep.subr.bf16.mxu0 0
        %1232 = vmatpush2.bf16.msra.mxu0 0
        %1233 = vmatprep.subr.bf16.mxu0 0
        %1234 = vmatpush2.bf16.msra.mxu0 0
        %1235 = vmatprep.mubr.bf16.mxu0 0
        %1236 = vmatmul.mubr.bf16.gmra.mxu0 %v1201
        %v1237 = vpop.f32.mrf.mxu0
        %v1238 = vadd.f32 %v1186, %v1237
        %v1239 = vpop.f32.mrf.mxu0
        %v1240 = vpop.f32.mrf.mxu0
        %v1241 = vpop.f32.mrf.mxu0
        %1242 = vdwg.mxu0
        %v1243 = vmax.f32 %v1238, 0.0
        %v1244 = vpack.c.bf16 %v1243, %v1243
        %v1245 = vld [vmem:[%s11] sm:$0xf]
        %v1246 = vld [vmem:[%s11 + $0x4] sm:$0xf]
        %v1247 = vld [vmem:[%s11 + $0x8] sm:$0xf]
        %v1248 = vld [vmem:[%s11 + $0xc] sm:$0xf]
        %v1249 = vld [vmem:[%s11 + $0x10] sm:$0xf]
        %v1250 = vld [vmem:[%s11 + $0x14] sm:$0xf]
        %v1251 = vld [vmem:[%s11 + $0x18] sm:$0xf]
        %v1252 = vld [vmem:[%s11 + $0x1c] sm:$0xf]
        %v1253 = vld [vmem:[%s12] sm:$0x1]
        %v1255 = vlaneseq
        %v1256 = vshrl.u32 %v1255, 7
        %v1257 = vsub.s32 0, %v1256
        %v1258 = vrot.slane %v1253, %v1257
        %v1268 = vunpack.c.l.b16 %v1245
        %v1269 = vunpack.c.l.b16 %v1246
        %v1270 = vunpack.c.l.b16 %v1247
        %v1271 = vunpack.c.l.b16 %v1248
        %v1272 = vunpack.c.l.b16 %v1249
        %v1273 = vunpack.c.l.b16 %v1250
        %v1274 = vunpack.c.l.b16 %v1251
        %v1275 = vunpack.c.l.b16 %v1252
        %v1276 = vpack.c.b16 %v1269, %v1268
        %v1277 = vpack.c.b16 %v1271, %v1270
        %v1278 = vpack.c.b16 %v1273, %v1272
        %v1279 = vpack.c.b16 %v1275, %v1274
        %vm1284 = vcmask 523264
        %v1286 = vsel %vm1284, %v1244, 0
        %1288 = vmatprep.subr.bf16.mxu0 0
        %1289 = vmatpush1.bf16.msra.mxu0 0
        %1290 = vmatprep.subr.bf16.mxu0 0
        %1291 = vmatpush1.bf16.msra.mxu0 0
        %1292 = vmatprep.subr.bf16.mxu0 0
        %1293 = vmatpush1.bf16.msra.mxu0 0
        %1294 = vmatprep.subr.bf16.mxu0 0
        %1295 = vmatpush1.bf16.msra.mxu0 0
        %1296 = vmatprep.subr.bf16.mxu0 0
        %1297 = vmatpush1.bf16.msra.mxu0 %v1279
        %1298 = vmatprep.subr.bf16.mxu0 0
        %1299 = vmatpush1.bf16.msra.mxu0 %v1278
        %1300 = vmatprep.subr.bf16.mxu0 0
        %1301 = vmatpush1.bf16.msra.mxu0 %v1277
        %1302 = vmatprep.subr.bf16.mxu0 0
        %1303 = vmatpush1.bf16.msra.mxu0 %v1276
        %1304 = vmatprep.subr.bf16.mxu0 0
        %1305 = vmatpush2.bf16.msra.mxu0 0
        %1306 = vmatprep.subr.bf16.mxu0 0
        %1307 = vmatpush2.bf16.msra.mxu0 0
        %1308 = vmatprep.subr.bf16.mxu0 0
        %1309 = vmatpush2.bf16.msra.mxu0 0
        %1310 = vmatprep.subr.bf16.mxu0 0
        %1311 = vmatpush2.bf16.msra.mxu0 0
        %1312 = vmatprep.subr.bf16.mxu0 0
        %1313 = vmatpush2.bf16.msra.mxu0 0
        %1314 = vmatprep.subr.bf16.mxu0 0
        %1315 = vmatpush2.bf16.msra.mxu0 0
        %1316 = vmatprep.subr.bf16.mxu0 0
        %1317 = vmatpush2.bf16.msra.mxu0 0
        %1318 = vmatprep.subr.bf16.mxu0 0
        %1319 = vmatpush2.bf16.msra.mxu0 0
        %1320 = vmatprep.mubr.bf16.mxu0 0
        %1321 = vmatmul.mubr.bf16.gmra.mxu0 %v1286
        %v1322 = vpop.f32.mrf.mxu0
        %v1323 = vadd.f32 %v1258, %v1322
        %v1324 = vpop.f32.mrf.mxu0
        %v1325 = vpop.f32.mrf.mxu0
        %v1326 = vpop.f32.mrf.mxu0
        %1327 = vdwg.mxu0
        %v1328 = vadd.f32 %v1146, %v1323
        %v1329 = vld [vmem:[%s13] sm:$0x1]
        %v1330 = vld [vmem:[%s14] sm:$0x1]
        %v1331 = vsel %vm494, %v1328, 0.0
        %1332 = vadd.xlane.f32.xlu0 %v1331
        %v1333 = vpop.xlane.xlu0 %1332
        %v1334 = vmul.f32 %v1333, %v498
        %v1335 = vsub.f32 %v1328, %v1334
        %v1336 = vmul.f32 %v1335, %v1335
        %v1337 = vsel %vm494, %v1336, 0.0
        %1338 = vadd.xlane.f32.xlu0 %v1337
        %v1339 = vpop.xlane.xlu0 %1338
        %v1340 = vmul.f32 %v1339, %v498
        %v1341 = vadd.f32 %v1340, 1e-12
        %v1342 = vrsqrt.pop %v1341
        %v1343 = vmul.f32 %v1335, %v1342
        %v1345 = vlaneseq
        %v1346 = vshrl.u32 %v1345, 7
        %v1347 = vsub.s32 0, %v1346
        %v1348 = vrot.slane %v1329, %v1347
        %v1350 = vmul.f32 %v1348, %v1343
        %v1352 = vlaneseq
        %v1353 = vshrl.u32 %v1352, 7
        %v1354 = vsub.s32 0, %v1353
        %v1355 = vrot.slane %v1330, %v1354
        %v1357 = vadd.f32 %v1350, %v1355
        %1358 = vst.msk [vmem:[%s485] sm:$0xff] %vm494, %v1357
        %s1359 = sand.u32 %s357, 1
        %s1360 = scalar_lea.sflag [#allocation5], %s1359
        %s1361 = sand.u32 %s357, 1
        %s1362 = smul.addr %s1361, 8
        %s1363 = scalar_lea.vmem [#allocation4], %s1362
        // Predicated region
        $region81: #{encoder_forward.7} parent=79 // pred_check
          %p1364 = pneg %p367
        $region82: #{encoder_forward.7} parent=79 // pred_check_branch
          %1366 = sbr.rel (%p1364) target = $region84
        $region83: #{encoder_forward.7} parent=79 // pred_region
          %s1368 = ssub.s32 128, 128
          %1369 = vsyncadd %s1360, %s1368
          %s1370 = smul.addr %s29, 128
          %s1371 = scalar_lea.hbm %s15, %s1370
          %s1373 = sshll.u32 %s1363, 4
          %s1374 = int_to_ptr.vmem [resolvable:$true] %s1373
          %1376 = dma.vmem_to_hbm [thread:$0]  %s1374, 128, %s1371, %s1360
        $region84: #{encoder_forward.7} parent=79 // pred_fallthru
          _
      $region80: #{encoder_forward.7} parent=5 // pred_fallthru
        _
      %p1377 = scmp.le.s32.totalorder 2, %s24
      // Predicated region
      $region85: #{encoder_forward.7} parent=5 // pred_check
        %p1378 = pneg %p1377
      $region86: #{encoder_forward.7} parent=5 // pred_check_branch
        %1380 = sbr.rel (%p1378) target = $region88
      $region87: #{encoder_forward.7} parent=5 // pred_region
        %s1381 = ssub.s32 %s24, 2
        // Predicated region
        $region89: #{encoder_forward.7} parent=87 // pred_check
          %p1382 = pneg %p373
        $region90: #{encoder_forward.7} parent=87 // pred_check_branch
          %1384 = sbr.rel (%p1382) target = $region92
        $region91: #{encoder_forward.7} parent=87 // pred_region
          %s1385 = sand.u32 %s358, 1
          %s1386 = scalar_lea.sflag [#allocation5], %s1385
          %s1387 = sand.u32 %s358, 1
          %s1388 = smul.addr %s1387, 8
          %s1389 = scalar_lea.vmem [#allocation4], %s1388
          %1390 = dma.done %s1386, 128
        $region92: #{encoder_forward.7} parent=87 // pred_fallthru
          _
      $region88: #{encoder_forward.7} parent=5 // pred_fallthru
        _
    $region6: #{encoder_forward.7} parent=1 // loop_footer
      %s28 = sadd.s32 1, %s24
    $region7: #{encoder_forward.7} parent=1 // loop_footer_branch
      %23 = sbr.rel target = $region3
    $region8: #{encoder_forward.7} parent=1 // loop_exit
      _
    %1391 = vsyncpa [#allocation5], 1
    %s1392 = scalar_lea.sflag [#allocation5], 1
    %1393 = vsyncpa %s1392, 1

// kernel: encoder_forward.4
$region0: #{encoder_forward.4}
  #allocation0 [shape = 'u32[]', space=smem, size = 0x4, offset = 0x4, fixed_abs, tag = 'smem constant byte address 0x4 - core index']
  #allocation1 [shape = 'u32[144,128]{1,0:T(1,128)}', space=vmem, size = 0x12000, scoped, tag = 'internal scratch']
  #allocation2 [shape = 'bf16[8,96]{1,0:T(8,128)(2,1)}', space=vmem, size = 0x800, scoped, tag = 'scratch operand']
  #allocation3 [shape = 'bf16[8,32]{1,0:T(8,128)(2,1)}', space=vmem, size = 0x800, scoped, tag = 'scratch operand']
  %s0 = inlined_call_operand.vmem [shape: f32[2,8,32], index: 0, kind: input, shape index: {}]
  %s1 = inlined_call_operand.vmem [shape: f32[1,32], index: 1, kind: input, shape index: {}]
  %s2 = inlined_call_operand.vmem [shape: f32[1,32], index: 2, kind: input, shape index: {}]
  %s3 = inlined_call_operand.vmem [shape: bf16[32,96], index: 3, kind: input, shape index: {}]
  %s4 = inlined_call_operand.vmem [shape: f32[1,96], index: 4, kind: input, shape index: {}]
  %s5 = inlined_call_operand.vmem [shape: bf16[32,32], index: 5, kind: input, shape index: {}]
  %s6 = inlined_call_operand.vmem [shape: f32[1,32], index: 6, kind: input, shape index: {}]
  %s7 = inlined_call_operand.vmem [shape: f32[1,32], index: 7, kind: input, shape index: {}]
  %s8 = inlined_call_operand.vmem [shape: f32[1,32], index: 8, kind: input, shape index: {}]
  %s9 = inlined_call_operand.vmem [shape: bf16[32,64], index: 9, kind: input, shape index: {}]
  %s10 = inlined_call_operand.vmem [shape: f32[1,64], index: 10, kind: input, shape index: {}]
  %s11 = inlined_call_operand.vmem [shape: bf16[64,32], index: 11, kind: input, shape index: {}]
  %s12 = inlined_call_operand.vmem [shape: f32[1,32], index: 12, kind: input, shape index: {}]
  %s13 = inlined_call_operand.vmem [shape: f32[1,32], index: 13, kind: input, shape index: {}]
  %s14 = inlined_call_operand.vmem [shape: f32[1,32], index: 14, kind: input, shape index: {}]
  %s15 = inlined_call_operand.vmem [shape: f32[2,8,32], index: 15, kind: output, shape index: {}]
  %s16 = sld [smem:[#allocation0]]
  $region93: #{encoder_forward.4} parent=0
    _
  %s18 = ssub.s32 1, %s16
  %s19 = scalar_select 0, %s18, %s16
  loop: start=0, step=1, limit=4
  $region2: #{encoder_forward.4} parent=0 // loop_pre_header
    _
  $region3: #{encoder_forward.4} parent=0 // loop_header
    %s21 = sphi 0, %s25
    %p22 = scmp.ge.s32.totalorder %s21, 4
    %s31 = sphi 0, %s33
    %s34 = sphi 0, %s31
    %s35 = sphi 0, %s34
    %s51 = sphi 0, %s35
    %s55 = sphi 0, %s55
    %s57 = sphi 0, %s55
    %s58 = sphi 0, %s57
    %s72 = sphi 0, %s58
    %s76 = sphi 0, %s76
    %s78 = sphi 0, %s76
    %s79 = sphi 0, %s78
    %s93 = sphi 0, %s79
    %s97 = sphi 0, %s97
    %s99 = sphi 0, %s97
    %s100 = sphi 0, %s99
    %s114 = sphi 0, %s100
    %s118 = sphi 0, %s118
    %s120 = sphi 0, %s118
    %s121 = sphi 0, %s120
    %s135 = sphi 0, %s121
    %s139 = sphi 0, %s139
    %s141 = sphi 0, %s139
    %s142 = sphi 0, %s141
    %s156 = sphi 0, %s142
    %s160 = sphi 0, %s160
    %s162 = sphi 0, %s160
    %s163 = sphi 0, %s162
    %s177 = sphi 0, %s163
    %s181 = sphi 0, %s181
    %s183 = sphi 0, %s181
    %s184 = sphi 0, %s183
    %s198 = sphi 0, %s184
    %s202 = sphi 0, %s202
    %s204 = sphi 0, %s202
    %s205 = sphi 0, %s204
    %s219 = sphi 0, %s205
    %s223 = sphi 0, %s223
    %s225 = sphi 0, %s223
    %s226 = sphi 0, %s225
    %s240 = sphi 0, %s226
    %s244 = sphi 0, %s244
    %s246 = sphi 0, %s244
    %s247 = sphi 0, %s246
    %s261 = sphi 0, %s247
    %s265 = sphi 0, %s265
    %s267 = sphi 0, %s265
    %s268 = sphi 0, %s267
    %s282 = sphi 0, %s268
    %s286 = sphi 0, %s286
    %s288 = sphi 0, %s286
    %s289 = sphi 0, %s288
    %s303 = sphi 0, %s289
    %s307 = sphi 0, %s307
    %s309 = sphi 0, %s307
    %s310 = sphi 0, %s309
    %s324 = sphi 0, %s310
    %s328 = sphi 0, %s328
    %s330 = sphi 0, %s328
    %s331 = sphi 0, %s330
    %s345 = sphi 0, %s331
    %s351 = sphi 0, %s353
    %s354 = sphi 0, %s351
    %s355 = sphi 0, %s354
    %s371 = sphi 0, %s355
  $region4: #{encoder_forward.4} parent=0 // loop_header_branch
    %24 = sbr.rel (%p22) target = $region8
  $region5: #{encoder_forward.4} parent=0 // loop_body
    %s26 = ssub.s32 %s21, 1
    %s27 = ssub.s32 %s21, 2
    %s28 = sadd.s32 %s21, 1
    %s29 = ssub.s32 %s21, %s28
    %p30 = scmp.eq.s32.totalorder %s29, 0
    %s32 = sadd.s32 %s31, 1
    %s33 = scalar_select %p30, %s31, %s32
    %p36 = pneg %p30
    %p37 = scmp.eq.s32.totalorder %s21, 1
    %p38 = por %p36, %p37
    %p39 = scmp.ne.s32.totalorder %s31, %s34
    %p40 = scmp.eq.s32.totalorder %s21, 0
    %p41 = por %p39, %p40
    %p42 = scmp.ne.s32.totalorder %s31, %s34
    %p43 = scmp.eq.s32.totalorder %s26, 1
    %p44 = por %p42, %p43
    %p45 = scmp.ne.s32.totalorder %s34, %s35
    %p46 = scmp.eq.s32.totalorder %s26, 0
    %p47 = por %p45, %p46
    %p48 = scmp.ne.s32.totalorder %s34, %s35
    %p49 = scmp.eq.s32.totalorder %s27, 1
    %p50 = por %p48, %p49
    %p52 = scmp.ne.s32.totalorder %s35, %s51
    %p53 = scmp.eq.s32.totalorder %s27, 0
    %p54 = por %p52, %p53
    %s56 = sadd.s32 %s55, 1
    %p59 = scmp.eq.s32.totalorder %s21, 1
    %p60 = scmp.ne.s32.totalorder %s55, %s57
    %p61 = scmp.eq.s32.totalorder %s21, 0
    %p62 = por %p60, %p61
    %p63 = scmp.ne.s32.totalorder %s55, %s57
    %p64 = scmp.eq.s32.totalorder %s26, 1
    %p65 = por %p63, %p64
    %p66 = scmp.ne.s32.totalorder %s57, %s58
    %p67 = scmp.eq.s32.totalorder %s26, 0
    %p68 = por %p66, %p67
    %p69 = scmp.ne.s32.totalorder %s57, %s58
    %p70 = scmp.eq.s32.totalorder %s27, 1
    %p71 = por %p69, %p70
    %p73 = scmp.ne.s32.totalorder %s58, %s72
    %p74 = scmp.eq.s32.totalorder %s27, 0
    %p75 = por %p73, %p74
    %s77 = sadd.s32 %s76, 1
    %p80 = scmp.eq.s32.totalorder %s21, 1
    %p81 = scmp.ne.s32.totalorder %s76, %s78
    %p82 = scmp.eq.s32.totalorder %s21, 0
    %p83 = por %p81, %p82
    %p84 = scmp.ne.s32.totalorder %s76, %s78
    %p85 = scmp.eq.s32.totalorder %s26, 1
    %p86 = por %p84, %p85
    %p87 = scmp.ne.s32.totalorder %s78, %s79
    %p88 = scmp.eq.s32.totalorder %s26, 0
    %p89 = por %p87, %p88
    %p90 = scmp.ne.s32.totalorder %s78, %s79
    %p91 = scmp.eq.s32.totalorder %s27, 1
    %p92 = por %p90, %p91
    %p94 = scmp.ne.s32.totalorder %s79, %s93
    %p95 = scmp.eq.s32.totalorder %s27, 0
    %p96 = por %p94, %p95
    %s98 = sadd.s32 %s97, 1
    %p101 = scmp.eq.s32.totalorder %s21, 1
    %p102 = scmp.ne.s32.totalorder %s97, %s99
    %p103 = scmp.eq.s32.totalorder %s21, 0
    %p104 = por %p102, %p103
    %p105 = scmp.ne.s32.totalorder %s97, %s99
    %p106 = scmp.eq.s32.totalorder %s26, 1
    %p107 = por %p105, %p106
    %p108 = scmp.ne.s32.totalorder %s99, %s100
    %p109 = scmp.eq.s32.totalorder %s26, 0
    %p110 = por %p108, %p109
    %p111 = scmp.ne.s32.totalorder %s99, %s100
    %p112 = scmp.eq.s32.totalorder %s27, 1
    %p113 = por %p111, %p112
    %p115 = scmp.ne.s32.totalorder %s100, %s114
    %p116 = scmp.eq.s32.totalorder %s27, 0
    %p117 = por %p115, %p116
    %s119 = sadd.s32 %s118, 1
    %p122 = scmp.eq.s32.totalorder %s21, 1
    %p123 = scmp.ne.s32.totalorder %s118, %s120
    %p124 = scmp.eq.s32.totalorder %s21, 0
    %p125 = por %p123, %p124
    %p126 = scmp.ne.s32.totalorder %s118, %s120
    %p127 = scmp.eq.s32.totalorder %s26, 1
    %p128 = por %p126, %p127
    %p129 = scmp.ne.s32.totalorder %s120, %s121
    %p130 = scmp.eq.s32.totalorder %s26, 0
    %p131 = por %p129, %p130
    %p132 = scmp.ne.s32.totalorder %s120, %s121
    %p133 = scmp.eq.s32.totalorder %s27, 1
    %p134 = por %p132, %p133
    %p136 = scmp.ne.s32.totalorder %s121, %s135
    %p137 = scmp.eq.s32.totalorder %s27, 0
    %p138 = por %p136, %p137
    %s140 = sadd.s32 %s139, 1
    %p143 = scmp.eq.s32.totalorder %s21, 1
    %p144 = scmp.ne.s32.totalorder %s139, %s141
    %p145 = scmp.eq.s32.totalorder %s21, 0
    %p146 = por %p144, %p145
    %p147 = scmp.ne.s32.totalorder %s139, %s141
    %p148 = scmp.eq.s32.totalorder %s26, 1
    %p149 = por %p147, %p148
    %p150 = scmp.ne.s32.totalorder %s141, %s142
    %p151 = scmp.eq.s32.totalorder %s26, 0
    %p152 = por %p150, %p151
    %p153 = scmp.ne.s32.totalorder %s141, %s142
    %p154 = scmp.eq.s32.totalorder %s27, 1
    %p155 = por %p153, %p154
    %p157 = scmp.ne.s32.totalorder %s142, %s156
    %p158 = scmp.eq.s32.totalorder %s27, 0
    %p159 = por %p157, %p158
    %s161 = sadd.s32 %s160, 1
    %p164 = scmp.eq.s32.totalorder %s21, 1
    %p165 = scmp.ne.s32.totalorder %s160, %s162
    %p166 = scmp.eq.s32.totalorder %s21, 0
    %p167 = por %p165, %p166
    %p168 = scmp.ne.s32.totalorder %s160, %s162
    %p169 = scmp.eq.s32.totalorder %s26, 1
    %p170 = por %p168, %p169
    %p171 = scmp.ne.s32.totalorder %s162, %s163
    %p172 = scmp.eq.s32.totalorder %s26, 0
    %p173 = por %p171, %p172
    %p174 = scmp.ne.s32.totalorder %s162, %s163
    %p175 = scmp.eq.s32.totalorder %s27, 1
    %p176 = por %p174, %p175
    %p178 = scmp.ne.s32.totalorder %s163, %s177
    %p179 = scmp.eq.s32.totalorder %s27, 0
    %p180 = por %p178, %p179
    %s182 = sadd.s32 %s181, 1
    %p185 = scmp.eq.s32.totalorder %s21, 1
    %p186 = scmp.ne.s32.totalorder %s181, %s183
    %p187 = scmp.eq.s32.totalorder %s21, 0
    %p188 = por %p186, %p187
    %p189 = scmp.ne.s32.totalorder %s181, %s183
    %p190 = scmp.eq.s32.totalorder %s26, 1
    %p191 = por %p189, %p190
    %p192 = scmp.ne.s32.totalorder %s183, %s184
    %p193 = scmp.eq.s32.totalorder %s26, 0
    %p194 = por %p192, %p193
    %p195 = scmp.ne.s32.totalorder %s183, %s184
    %p196 = scmp.eq.s32.totalorder %s27, 1
    %p197 = por %p195, %p196
    %p199 = scmp.ne.s32.totalorder %s184, %s198
    %p200 = scmp.eq.s32.totalorder %s27, 0
    %p201 = por %p199, %p200
    %s203 = sadd.s32 %s202, 1
    %p206 = scmp.eq.s32.totalorder %s21, 1
    %p207 = scmp.ne.s32.totalorder %s202, %s204
    %p208 = scmp.eq.s32.totalorder %s21, 0
    %p209 = por %p207, %p208
    %p210 = scmp.ne.s32.totalorder %s202, %s204
    %p211 = scmp.eq.s32.totalorder %s26, 1
    %p212 = por %p210, %p211
    %p213 = scmp.ne.s32.totalorder %s204, %s205
    %p214 = scmp.eq.s32.totalorder %s26, 0
    %p215 = por %p213, %p214
    %p216 = scmp.ne.s32.totalorder %s204, %s205
    %p217 = scmp.eq.s32.totalorder %s27, 1
    %p218 = por %p216, %p217
    %p220 = scmp.ne.s32.totalorder %s205, %s219
    %p221 = scmp.eq.s32.totalorder %s27, 0
    %p222 = por %p220, %p221
    %s224 = sadd.s32 %s223, 1
    %p227 = scmp.eq.s32.totalorder %s21, 1
    %p228 = scmp.ne.s32.totalorder %s223, %s225
    %p229 = scmp.eq.s32.totalorder %s21, 0
    %p230 = por %p228, %p229
    %p231 = scmp.ne.s32.totalorder %s223, %s225
    %p232 = scmp.eq.s32.totalorder %s26, 1
    %p233 = por %p231, %p232
    %p234 = scmp.ne.s32.totalorder %s225, %s226
    %p235 = scmp.eq.s32.totalorder %s26, 0
    %p236 = por %p234, %p235
    %p237 = scmp.ne.s32.totalorder %s225, %s226
    %p238 = scmp.eq.s32.totalorder %s27, 1
    %p239 = por %p237, %p238
    %p241 = scmp.ne.s32.totalorder %s226, %s240
    %p242 = scmp.eq.s32.totalorder %s27, 0
    %p243 = por %p241, %p242
    %s245 = sadd.s32 %s244, 1
    %p248 = scmp.eq.s32.totalorder %s21, 1
    %p249 = scmp.ne.s32.totalorder %s244, %s246
    %p250 = scmp.eq.s32.totalorder %s21, 0
    %p251 = por %p249, %p250
    %p252 = scmp.ne.s32.totalorder %s244, %s246
    %p253 = scmp.eq.s32.totalorder %s26, 1
    %p254 = por %p252, %p253
    %p255 = scmp.ne.s32.totalorder %s246, %s247
    %p256 = scmp.eq.s32.totalorder %s26, 0
    %p257 = por %p255, %p256
    %p258 = scmp.ne.s32.totalorder %s246, %s247
    %p259 = scmp.eq.s32.totalorder %s27, 1
    %p260 = por %p258, %p259
    %p262 = scmp.ne.s32.totalorder %s247, %s261
    %p263 = scmp.eq.s32.totalorder %s27, 0
    %p264 = por %p262, %p263
    %s266 = sadd.s32 %s265, 1
    %p269 = scmp.eq.s32.totalorder %s21, 1
    %p270 = scmp.ne.s32.totalorder %s265, %s267
    %p271 = scmp.eq.s32.totalorder %s21, 0
    %p272 = por %p270, %p271
    %p273 = scmp.ne.s32.totalorder %s265, %s267
    %p274 = scmp.eq.s32.totalorder %s26, 1
    %p275 = por %p273, %p274
    %p276 = scmp.ne.s32.totalorder %s267, %s268
    %p277 = scmp.eq.s32.totalorder %s26, 0
    %p278 = por %p276, %p277
    %p279 = scmp.ne.s32.totalorder %s267, %s268
    %p280 = scmp.eq.s32.totalorder %s27, 1
    %p281 = por %p279, %p280
    %p283 = scmp.ne.s32.totalorder %s268, %s282
    %p284 = scmp.eq.s32.totalorder %s27, 0
    %p285 = por %p283, %p284
    %s287 = sadd.s32 %s286, 1
    %p290 = scmp.eq.s32.totalorder %s21, 1
    %p291 = scmp.ne.s32.totalorder %s286, %s288
    %p292 = scmp.eq.s32.totalorder %s21, 0
    %p293 = por %p291, %p292
    %p294 = scmp.ne.s32.totalorder %s286, %s288
    %p295 = scmp.eq.s32.totalorder %s26, 1
    %p296 = por %p294, %p295
    %p297 = scmp.ne.s32.totalorder %s288, %s289
    %p298 = scmp.eq.s32.totalorder %s26, 0
    %p299 = por %p297, %p298
    %p300 = scmp.ne.s32.totalorder %s288, %s289
    %p301 = scmp.eq.s32.totalorder %s27, 1
    %p302 = por %p300, %p301
    %p304 = scmp.ne.s32.totalorder %s289, %s303
    %p305 = scmp.eq.s32.totalorder %s27, 0
    %p306 = por %p304, %p305
    %s308 = sadd.s32 %s307, 1
    %p311 = scmp.eq.s32.totalorder %s21, 1
    %p312 = scmp.ne.s32.totalorder %s307, %s309
    %p313 = scmp.eq.s32.totalorder %s21, 0
    %p314 = por %p312, %p313
    %p315 = scmp.ne.s32.totalorder %s307, %s309
    %p316 = scmp.eq.s32.totalorder %s26, 1
    %p317 = por %p315, %p316
    %p318 = scmp.ne.s32.totalorder %s309, %s310
    %p319 = scmp.eq.s32.totalorder %s26, 0
    %p320 = por %p318, %p319
    %p321 = scmp.ne.s32.totalorder %s309, %s310
    %p322 = scmp.eq.s32.totalorder %s27, 1
    %p323 = por %p321, %p322
    %p325 = scmp.ne.s32.totalorder %s310, %s324
    %p326 = scmp.eq.s32.totalorder %s27, 0
    %p327 = por %p325, %p326
    %s329 = sadd.s32 %s328, 1
    %p332 = scmp.eq.s32.totalorder %s21, 1
    %p333 = scmp.ne.s32.totalorder %s328, %s330
    %p334 = scmp.eq.s32.totalorder %s21, 0
    %p335 = por %p333, %p334
    %p336 = scmp.ne.s32.totalorder %s328, %s330
    %p337 = scmp.eq.s32.totalorder %s26, 1
    %p338 = por %p336, %p337
    %p339 = scmp.ne.s32.totalorder %s330, %s331
    %p340 = scmp.eq.s32.totalorder %s26, 0
    %p341 = por %p339, %p340
    %p342 = scmp.ne.s32.totalorder %s330, %s331
    %p343 = scmp.eq.s32.totalorder %s27, 1
    %p344 = por %p342, %p343
    %p346 = scmp.ne.s32.totalorder %s331, %s345
    %p347 = scmp.eq.s32.totalorder %s27, 0
    %p348 = por %p346, %p347
    %s349 = ssub.s32 %s21, %s28
    %p350 = scmp.eq.s32.totalorder %s349, 0
    %s352 = sadd.s32 %s351, 1
    %s353 = scalar_select %p350, %s351, %s352
    %p356 = pneg %p350
    %p357 = scmp.eq.s32.totalorder %s21, 1
    %p358 = por %p356, %p357
    %p359 = scmp.ne.s32.totalorder %s351, %s354
    %p360 = scmp.eq.s32.totalorder %s21, 0
    %p361 = por %p359, %p360
    %p362 = scmp.ne.s32.totalorder %s351, %s354
    %p363 = scmp.eq.s32.totalorder %s26, 1
    %p364 = por %p362, %p363
    %p365 = scmp.ne.s32.totalorder %s354, %s355
    %p366 = scmp.eq.s32.totalorder %s26, 0
    %p367 = por %p365, %p366
    %p368 = scmp.ne.s32.totalorder %s354, %s355
    %p369 = scmp.eq.s32.totalorder %s27, 1
    %p370 = por %p368, %p369
    %p372 = scmp.ne.s32.totalorder %s355, %s371
    %p373 = scmp.eq.s32.totalorder %s27, 0
    %p374 = por %p372, %p373
    %p375 = scmp.le.s32.totalorder 1, %s21
    %p376 = scmp.lt.s32.totalorder %s21, 3
    %p377 = pnand %p375, %p376
    %p378 = pneg %p377
    // Predicated region
    $region9: #{encoder_forward.4} parent=5 // pred_check
      _
    $region10: #{encoder_forward.4} parent=5 // pred_check_branch
      %380 = sbr.rel (%p377) target = $region12
    $region11: #{encoder_forward.4} parent=5 // pred_region
      %s381 = ssub.s32 %s21, 1
      // Predicated region
      $region13: #{encoder_forward.4} parent=11 // pred_check
        %p382 = pneg %p68
      $region14: #{encoder_forward.4} parent=11 // pred_check_branch
        %384 = sbr.rel (%p382) target = $region16
      $region15: #{encoder_forward.4} parent=11 // pred_region
        _
      $region16: #{encoder_forward.4} parent=11 // pred_fallthru
        _
      // Predicated region
      $region17: #{encoder_forward.4} parent=11 // pred_check
        %p385 = pneg %p89
      $region18: #{encoder_forward.4} parent=11 // pred_check_branch
        %387 = sbr.rel (%p385) target = $region20
      $region19: #{encoder_forward.4} parent=11 // pred_region
        _
      $region20: #{encoder_forward.4} parent=11 // pred_fallthru
        _
      // Predicated region
      $region21: #{encoder_forward.4} parent=11 // pred_check
        %p388 = pneg %p110
      $region22: #{encoder_forward.4} parent=11 // pred_check_branch
        %390 = sbr.rel (%p388) target = $region24
      $region23: #{encoder_forward.4} parent=11 // pred_region
        _
      $region24: #{encoder_forward.4} parent=11 // pred_fallthru
        _
      // Predicated region
      $region25: #{encoder_forward.4} parent=11 // pred_check
        %p391 = pneg %p131
      $region26: #{encoder_forward.4} parent=11 // pred_check_branch
        %393 = sbr.rel (%p391) target = $region28
      $region27: #{encoder_forward.4} parent=11 // pred_region
        _
      $region28: #{encoder_forward.4} parent=11 // pred_fallthru
        _
      // Predicated region
      $region29: #{encoder_forward.4} parent=11 // pred_check
        %p394 = pneg %p152
      $region30: #{encoder_forward.4} parent=11 // pred_check_branch
        %396 = sbr.rel (%p394) target = $region32
      $region31: #{encoder_forward.4} parent=11 // pred_region
        _
      $region32: #{encoder_forward.4} parent=11 // pred_fallthru
        _
      // Predicated region
      $region33: #{encoder_forward.4} parent=11 // pred_check
        %p397 = pneg %p173
      $region34: #{encoder_forward.4} parent=11 // pred_check_branch
        %399 = sbr.rel (%p397) target = $region36
      $region35: #{encoder_forward.4} parent=11 // pred_region
        _
      $region36: #{encoder_forward.4} parent=11 // pred_fallthru
        _
      // Predicated region
      $region37: #{encoder_forward.4} parent=11 // pred_check
        %p400 = pneg %p194
      $region38: #{encoder_forward.4} parent=11 // pred_check_branch
        %402 = sbr.rel (%p400) target = $region40
      $region39: #{encoder_forward.4} parent=11 // pred_region
        _
      $region40: #{encoder_forward.4} parent=11 // pred_fallthru
        _
      // Predicated region
      $region41: #{encoder_forward.4} parent=11 // pred_check
        %p403 = pneg %p215
      $region42: #{encoder_forward.4} parent=11 // pred_check_branch
        %405 = sbr.rel (%p403) target = $region44
      $region43: #{encoder_forward.4} parent=11 // pred_region
        _
      $region44: #{encoder_forward.4} parent=11 // pred_fallthru
        _
      // Predicated region
      $region45: #{encoder_forward.4} parent=11 // pred_check
        %p406 = pneg %p236
      $region46: #{encoder_forward.4} parent=11 // pred_check_branch
        %408 = sbr.rel (%p406) target = $region48
      $region47: #{encoder_forward.4} parent=11 // pred_region
        _
      $region48: #{encoder_forward.4} parent=11 // pred_fallthru
        _
      // Predicated region
      $region49: #{encoder_forward.4} parent=11 // pred_check
        %p409 = pneg %p257
      $region50: #{encoder_forward.4} parent=11 // pred_check_branch
        %411 = sbr.rel (%p409) target = $region52
      $region51: #{encoder_forward.4} parent=11 // pred_region
        _
      $region52: #{encoder_forward.4} parent=11 // pred_fallthru
        _
      // Predicated region
      $region53: #{encoder_forward.4} parent=11 // pred_check
        %p412 = pneg %p278
      $region54: #{encoder_forward.4} parent=11 // pred_check_branch
        %414 = sbr.rel (%p412) target = $region56
      $region55: #{encoder_forward.4} parent=11 // pred_region
        _
      $region56: #{encoder_forward.4} parent=11 // pred_fallthru
        _
      // Predicated region
      $region57: #{encoder_forward.4} parent=11 // pred_check
        %p415 = pneg %p299
      $region58: #{encoder_forward.4} parent=11 // pred_check_branch
        %417 = sbr.rel (%p415) target = $region60
      $region59: #{encoder_forward.4} parent=11 // pred_region
        _
      $region60: #{encoder_forward.4} parent=11 // pred_fallthru
        _
      // Predicated region
      $region61: #{encoder_forward.4} parent=11 // pred_check
        %p418 = pneg %p320
      $region62: #{encoder_forward.4} parent=11 // pred_check_branch
        %420 = sbr.rel (%p418) target = $region64
      $region63: #{encoder_forward.4} parent=11 // pred_region
        _
      $region64: #{encoder_forward.4} parent=11 // pred_fallthru
        _
      // Predicated region
      $region65: #{encoder_forward.4} parent=11 // pred_check
        %p421 = pneg %p341
      $region66: #{encoder_forward.4} parent=11 // pred_check_branch
        %423 = sbr.rel (%p421) target = $region68
      $region67: #{encoder_forward.4} parent=11 // pred_region
        _
      $region68: #{encoder_forward.4} parent=11 // pred_fallthru
        _
    $region12: #{encoder_forward.4} parent=5 // pred_fallthru
      _
    %p424 = scmp.lt.s32.totalorder %s21, 2
    // Predicated region
    $region69: #{encoder_forward.4} parent=5 // pred_check
      %p425 = pneg %p424
    $region70: #{encoder_forward.4} parent=5 // pred_check_branch
      %427 = sbr.rel (%p425) target = $region72
    $region71: #{encoder_forward.4} parent=5 // pred_region
      // Predicated region
      $region73: #{encoder_forward.4} parent=71 // pred_check
        %p428 = pneg %p41
      $region74: #{encoder_forward.4} parent=71 // pred_check_branch
        %430 = sbr.rel (%p428) target = $region76
      $region75: #{encoder_forward.4} parent=71 // pred_region
        %p431 = scmp.lt.s32.totalorder %s21, 1
        %s432 = scalar_select %p431, %s21, 1
        %s433 = smul.addr %s432, 8
        %s434 = scalar_lea.vmem %s0, %s433
      $region76: #{encoder_forward.4} parent=71 // pred_fallthru
        _
    $region72: #{encoder_forward.4} parent=5 // pred_fallthru
      _
    %p435 = scmp.le.s32.totalorder 1, %s21
    %p436 = scmp.lt.s32.totalorder %s21, 3
    %p437 = pnand %p435, %p436
    %p438 = pneg %p437
    // Predicated region
    $region77: #{encoder_forward.4} parent=5 // pred_check
      _
    $region78: #{encoder_forward.4} parent=5 // pred_check_branch
      %440 = sbr.rel (%p437) target = $region80
    $region79: #{encoder_forward.4} parent=5 // pred_region
      %s441 = ssub.s32 %s21, 1
      %p442 = scmp.lt.s32.totalorder %s26, 1
      %s443 = scalar_select %p442, %s26, 1
      %s444 = smul.addr %s443, 8
      %s445 = scalar_lea.vmem %s0, %s444
      %p446 = pneg %p47
      %p447 = pneg %p44
      %p448 = pneg %p68
      %p449 = pneg %p65
      %p450 = pneg %p89
      %p451 = pneg %p86
      %p452 = pneg %p110
      %p453 = pneg %p107
      %p454 = pneg %p131
      %p455 = pneg %p128
      %p456 = pneg %p152
      %p457 = pneg %p149
      %p458 = pneg %p173
      %p459 = pneg %p170
      %p460 = pneg %p194
      %p461 = pneg %p191
      %p462 = pneg %p215
      %p463 = pneg %p212
      %p464 = pneg %p236
      %p465 = pneg %p233
      %p466 = pneg %p257
      %p467 = pneg %p254
      %p468 = pneg %p278
      %p469 = pneg %p275
      %p470 = pneg %p299
      %p471 = pneg %p296
      %p472 = pneg %p320
      %p473 = pneg %p317
      %p474 = pneg %p341
      %p475 = pneg %p338
      %p476 = pneg %p367
      %p477 = pneg %p364
      %p478 = scmp.lt.s32.totalorder %s26, 1
      %s479 = scalar_select %p478, %s26, 1
      %s480 = smul.addr %s479, 8
      %s481 = scalar_lea.vmem %s15, %s480
      %p482 = scmp.lt.s32.totalorder %s26, 1
      %s483 = scalar_select %p482, %s26, 1
      %s484 = smul.addr %s483, 8
      %s485 = scalar_lea.vmem %s0, %s484
      %p486 = scmp.lt.s32.totalorder %s26, 1
      %s487 = scalar_select %p486, %s26, 1
      %s488 = smul.addr %s487, 8
      %s489 = scalar_lea.vmem %s15, %s488
      %v491 = vld [vmem:[%s485] sm:$0xff]
      %v492 = vld [vmem:[%s1] sm:$0x1]
      %v493 = vld [vmem:[%s2] sm:$0x1]
      %vm494 = vcmask 261120
      %v495 = vsel %vm494, %v491, 0.0
      %496 = vadd.xlane.f32.xlu0 %v495
      %v497 = vpop.xlane.xlu0 %496
      %v498 = vrcp.pop 32.0
      %v499 = vmul.f32 %v497, %v498
      %v500 = vsub.f32 %v491, %v499
      %v501 = vmul.f32 %v500, %v500
      %v502 = vsel %vm494, %v501, 0.0
      %503 = vadd.xlane.f32.xlu0 %v502
      %v504 = vpop.xlane.xlu0 %503
      %v505 = vmul.f32 %v504, %v498
      %v506 = vadd.f32 %v505, 1e-05
      %v507 = vrsqrt.pop %v506
      %v508 = vmul.f32 %v500, %v507
      %v510 = vlaneseq
      %v511 = vshrl.u32 %v510, 7
      %v512 = vsub.s32 0, %v511
      %v513 = vrot.slane %v492, %v512
      %v515 = vmul.f32 %v513, %v508
      %v517 = vlaneseq
      %v518 = vshrl.u32 %v517, 7
      %v519 = vsub.s32 0, %v518
      %v520 = vrot.slane %v493, %v519
      %v522 = vadd.f32 %v515, %v520
      %v523 = vpack.c.bf16 %v522, %v522
      %v524 = vld [vmem:[%s3] sm:$0xf]
      %v525 = vld [vmem:[%s3 + $0x4] sm:$0xf]
      %v526 = vld [vmem:[%s3 + $0x8] sm:$0xf]
      %v527 = vld [vmem:[%s3 + $0xc] sm:$0xf]
      %v528 = vld [vmem:[%s4] sm:$0x1]
      %v530 = vlaneseq
      %v531 = vshrl.u32 %v530, 7
      %v532 = vsub.s32 0, %v531
      %v533 = vrot.slane %v528, %v532
      %v539 = vunpack.c.l.b16 %v524
      %v540 = vunpack.c.l.b16 %v525
      %v541 = vunpack.c.l.b16 %v526
      %v542 = vunpack.c.l.b16 %v527
      %v543 = vpack.c.b16 %v540, %v539
      %v544 = vpack.c.b16 %v542, %v541
      %v548 = vsel %vm494, %v523, 0
      %550 = vmatprep.subr.bf16.mxu0 0
      %551 = vmatpush1.bf16.msra.mxu0 0
      %552 = vmatprep.subr.bf16.mxu0 0
      %553 = vmatpush1.bf16.msra.mxu0 0
      %554 = vmatprep.subr.bf16.mxu0 0
      %555 = vmatpush1.bf16.msra.mxu0 0
      %556 = vmatprep.subr.bf16.mxu0 0
      %557 = vmatpush1.bf16.msra.mxu0 0
      %558 = vmatprep.subr.bf16.mxu0 0
      %559 = vmatpush1.bf16.msra.mxu0 0
      %560 = vmatprep.subr.bf16.mxu0 0
      %561 = vmatpush1.bf16.msra.mxu0 0
      %562 = vmatprep.subr.bf16.mxu0 0
      %563 = vmatpush1.bf16.msra.mxu0 %v544
      %564 = vmatprep.subr.bf16.mxu0 0
      %565 = vmatpush1.bf16.msra.mxu0 %v543
      %566 = vmatprep.subr.bf16.mxu0 0
      %567 = vmatpush2.bf16.msra.mxu0 0
      %568 = vmatprep.subr.bf16.mxu0 0
      %569 = vmatpush2.bf16.msra.mxu0 0
      %570 = vmatprep.subr.bf16.mxu0 0
      %571 = vmatpush2.bf16.msra.mxu0 0
      %572 = vmatprep.subr.bf16.mxu0 0
      %573 = vmatpush2.bf16.msra.mxu0 0
      %574 = vmatprep.subr.bf16.mxu0 0
      %575 = vmatpush2.bf16.msra.mxu0 0
      %576 = vmatprep.subr.bf16.mxu0 0
      %577 = vmatpush2.bf16.msra.mxu0 0
      %578 = vmatprep.subr.bf16.mxu0 0
      %579 = vmatpush2.bf16.msra.mxu0 0
      %580 = vmatprep.subr.bf16.mxu0 0
      %581 = vmatpush2.bf16.msra.mxu0 0
      %582 = vmatprep.mubr.bf16.mxu0 0
      %583 = vmatmul.mubr.bf16.gmra.mxu0 %v548
      %v584 = vpop.f32.mrf.mxu0
      %v585 = vadd.f32 %v533, %v584
      %v586 = vpop.f32.mrf.mxu0
      %v587 = vpop.f32.mrf.mxu0
      %v588 = vpop.f32.mrf.mxu0
      %589 = vdwg.mxu0
      %v590 = vpack.c.bf16 %v585, %v585
      %vm591 = vcmask 781312
      %592 = vst.msk [vmem:[#allocation2] sm:$0xf] %vm591, %v590
      %v593 = vld [vmem:[#allocation2] sm:$0xf]
      %v595 = vunpack.c.l.b16 %v593
      %v596 = vpack.c.b16 %v595, %v595
      %597 = vrot.lane.b32.xlu0 %v596, 96
      %v598 = vpop.permute.xlu0 %597
      %vm599 = vcmask 64512
      %v601 = vsel %vm599, %v593, 0
      %v604 = vsel %vm599, %v598, 0
      %606 = vmatprep.subr.bf16.mxu0 0
      %607 = vmatpush1.bf16.xpose.msra.mxu0 0
      %608 = vmatprep.subr.bf16.mxu0 0
      %609 = vmatpush1.bf16.xpose.msra.mxu0 0
      %610 = vmatprep.subr.bf16.mxu0 0
      %611 = vmatpush1.bf16.xpose.msra.mxu0 0
      %612 = vmatprep.subr.bf16.mxu0 0
      %613 = vmatpush1.bf16.xpose.msra.mxu0 0
      %614 = vmatprep.subr.bf16.mxu0 0
      %615 = vmatpush1.bf16.xpose.msra.mxu0 0
      %616 = vmatprep.subr.bf16.mxu0 0
      %617 = vmatpush1.bf16.xpose.msra.mxu0 0
      %618 = vmatprep.subr.bf16.mxu0 0
      %619 = vmatpush1.bf16.xpose.msra.mxu0 0
      %620 = vmatprep.subr.bf16.mxu0 0
      %621 = vmatpush1.bf16.xpose.msra.mxu0 %v604
      %622 = vmatprep.subr.bf16.mxu0 0
      %623 = vmatpush2.bf16.xpose.msra.mxu0 0
      %624 = vmatprep.subr.bf16.mxu0 0
      %625 = vmatpush2.bf16.xpose.msra.mxu0 0
      %626 = vmatprep.subr.bf16.mxu0 0
      %627 = vmatpush2.bf16.xpose.msra.mxu0 0
      %628 = vmatprep.subr.bf16.mxu0 0
      %629 = vmatpush2.bf16.xpose.msra.mxu0 0
      %630 = vmatprep.subr.bf16.mxu0 0
      %631 = vmatpush2.bf16.xpose.msra.mxu0 0
      %632 = vmatprep.subr.bf16.mxu0 0
      %633 = vmatpush2.bf16.xpose.msra.mxu0 0
      %634 = vmatprep.subr.bf16.mxu0 0
      %635 = vmatpush2.bf16.xpose.msra.mxu0 0
      %636 = vmatprep.subr.bf16.mxu0 0
      %637 = vmatpush2.bf16.xpose.msra.mxu0 0
      %638 = vmatprep.mubr.bf16.mxu0 0
      %639 = vmatmul.mubr.bf16.gmra.mxu0 %v601
      %v640 = vpop.f32.mrf.mxu0
      %v641 = vadd.f32 0.0, %v640
      %v642 = vpop.f32.mrf.mxu0
      %v643 = vpop.f32.mrf.mxu0
      %v644 = vpop.f32.mrf.mxu0
      %645 = vdwg.mxu0
      %v646 = vsel %vm599, %v641, -inf
      %647 = vmax.xlane.f32.xlu0 %v646
      %v648 = vpop.xlane.xlu0 %647
      %v649 = vsub.f32 %v641, %v648
      %v650 = vmul.f32 %v649, 1.442695
      %v651 = vpow.pop %v650
      %v652 = vsel %vm599, %v651, 0.0
      %653 = vadd.xlane.f32.xlu0 %v652
      %v654 = vpop.xlane.xlu0 %653
      %v655 = vrcp.pop %v654
      %v656 = vmul.f32 %v651, %v655
      %v657 = vpack.c.bf16 %v656, %v656
      %658 = vrot.lane.b32.xlu0 %v596, 64
      %v659 = vpop.permute.xlu0 %658
      %v661 = vsel %vm599, %v657, 0
      %vm663 = vcmask 1043456
      %v665 = vsel %vm663, %v659, 0
      %667 = vmatprep.subr.bf16.mxu0 0
      %668 = vmatpush1.bf16.msra.mxu0 0
      %669 = vmatprep.subr.bf16.mxu0 0
      %670 = vmatpush1.bf16.msra.mxu0 0
      %671 = vmatprep.subr.bf16.mxu0 0
      %672 = vmatpush1.bf16.msra.mxu0 0
      %673 = vmatprep.subr.bf16.mxu0 0
      %674 = vmatpush1.bf16.msra.mxu0 0
      %675 = vmatprep.subr.bf16.mxu0 0
      %676 = vmatpush1.bf16.msra.mxu0 0
      %677 = vmatprep.subr.bf16.mxu0 0
      %678 = vmatpush1.bf16.msra.mxu0 0
      %679 = vmatprep.subr.bf16.mxu0 0
      %680 = vmatpush1.bf16.msra.mxu0 0
      %681 = vmatprep.subr.bf16.mxu0 0
      %682 = vmatpush1.bf16.msra.mxu0 %v665
      %683 = vmatprep.subr.bf16.mxu0 0
      %684 = vmatpush2.bf16.msra.mxu0 0
      %685 = vmatprep.subr.bf16.mxu0 0
      %686 = vmatpush2.bf16.msra.mxu0 0
      %687 = vmatprep.subr.bf16.mxu0 0
      %688 = vmatpush2.bf16.msra.mxu0 0
      %689 = vmatprep.subr.bf16.mxu0 0
      %690 = vmatpush2.bf16.msra.mxu0 0
      %691 = vmatprep.subr.bf16.mxu0 0
      %692 = vmatpush2.bf16.msra.mxu0 0
      %693 = vmatprep.subr.bf16.mxu0 0
      %694 = vmatpush2.bf16.msra.mxu0 0
      %695 = vmatprep.subr.bf16.mxu0 0
      %696 = vmatpush2.bf16.msra.mxu0 0
      %697 = vmatprep.subr.bf16.mxu0 0
      %698 = vmatpush2.bf16.msra.mxu0 0
      %699 = vmatprep.mubr.bf16.mxu0 0
      %700 = vmatmul.mubr.bf16.gmra.mxu0 %v661
      %v701 = vpop.f32.mrf.mxu0
      %v702 = vadd.f32 0.0, %v701
      %v703 = vpop.f32.mrf.mxu0
      %v704 = vpop.f32.mrf.mxu0
      %v705 = vpop.f32.mrf.mxu0
      %706 = vdwg.mxu0
      %v707 = vpack.c.bf16 %v702, %v702
      %vm708 = vcmask 60416
      %709 = vst.msk [vmem:[#allocation3] sm:$0xf] %vm708, %v707
      %v710 = vld [vmem:[#allocation2] sm:$0xf]
      %v712 = vunpack.c.l.b16 %v710
      %v713 = vpack.c.b16 %v712, %v712
      %714 = vrot.lane.b32.xlu0 %v713, 120
      %v715 = vpop.permute.xlu0 %714
      %716 = vrot.lane.b32.xlu0 %v713, 88
      %v717 = vpop.permute.xlu0 %716
      %v719 = vsel %vm599, %v715, 0
      %v722 = vsel %vm599, %v717, 0
      %724 = vmatprep.subr.bf16.mxu0 0
      %725 = vmatpush1.bf16.xpose.msra.mxu0 0
      %726 = vmatprep.subr.bf16.mxu0 0
      %727 = vmatpush1.bf16.xpose.msra.mxu0 0
      %728 = vmatprep.subr.bf16.mxu0 0
      %729 = vmatpush1.bf16.xpose.msra.mxu0 0
      %730 = vmatprep.subr.bf16.mxu0 0
      %731 = vmatpush1.bf16.xpose.msra.mxu0 0
      %732 = vmatprep.subr.bf16.mxu0 0
      %733 = vmatpush1.bf16.xpose.msra.mxu0 0
      %734 = vmatprep.subr.bf16.mxu0 0
      %735 = vmatpush1.bf16.xpose.msra.mxu0 0
      %736 = vmatprep.subr.bf16.mxu0 0
      %737 = vmatpush1.bf16.xpose.msra.mxu0 0
      %738 = vmatprep.subr.bf16.mxu0 0
      %739 = vmatpush1.bf16.xpose.msra.mxu0 %v722
      %740 = vmatprep.subr.bf16.mxu0 0
      %741 = vmatpush2.bf16.xpose.msra.mxu0 0
      %742 = vmatprep.subr.bf16.mxu0 0
      %743 = vmatpush2.bf16.xpose.msra.mxu0 0
      %744 = vmatprep.subr.bf16.mxu0 0
      %745 = vmatpush2.bf16.xpose.msra.mxu0 0
      %746 = vmatprep.subr.bf16.mxu0 0
      %747 = vmatpush2.bf16.xpose.msra.mxu0 0
      %748 = vmatprep.subr.bf16.mxu0 0
      %749 = vmatpush2.bf16.xpose.msra.mxu0 0
      %750 = vmatprep.subr.bf16.mxu0 0
      %751 = vmatpush2.bf16.xpose.msra.mxu0 0
      %752 = vmatprep.subr.bf16.mxu0 0
      %753 = vmatpush2.bf16.xpose.msra.mxu0 0
      %754 = vmatprep.subr.bf16.mxu0 0
      %755 = vmatpush2.bf16.xpose.msra.mxu0 0
      %756 = vmatprep.mubr.bf16.mxu0 0
      %757 = vmatmul.mubr.bf16.gmra.mxu0 %v719
      %v758 = vpop.f32.mrf.mxu0
      %v759 = vadd.f32 0.0, %v758
      %v760 = vpop.f32.mrf.mxu0
      %v761 = vpop.f32.mrf.mxu0
      %v762 = vpop.f32.mrf.mxu0
      %763 = vdwg.mxu0
      %v764 = vsel %vm599, %v759, -inf
      %765 = vmax.xlane.f32.xlu0 %v764
      %v766 = vpop.xlane.xlu0 %765
      %v767 = vsub.f32 %v759, %v766
      %v768 = vmul.f32 %v767, 1.442695
      %v769 = vpow.pop %v768
      %v770 = vsel %vm599, %v769, 0.0
      %771 = vadd.xlane.f32.xlu0 %v770
      %v772 = vpop.xlane.xlu0 %771
      %v773 = vrcp.pop %v772
      %v774 = vmul.f32 %v769, %v773
      %v775 = vpack.c.bf16 %v774, %v774
      %776 = vrot.lane.b32.xlu0 %v713, 56
      %v777 = vpop.permute.xlu0 %776
      %v779 = vsel %vm599, %v775, 0
      %v782 = vsel %vm663, %v777, 0
      %784 = vmatprep.subr.bf16.mxu0 0
      %785 = vmatpush1.bf16.msra.mxu0 0
      %786 = vmatprep.subr.bf16.mxu0 0
      %787 = vmatpush1.bf16.msra.mxu0 0
      %788 = vmatprep.subr.bf16.mxu0 0
      %789 = vmatpush1.bf16.msra.mxu0 0
      %790 = vmatprep.subr.bf16.mxu0 0
      %791 = vmatpush1.bf16.msra.mxu0 0
      %792 = vmatprep.subr.bf16.mxu0 0
      %793 = vmatpush1.bf16.msra.mxu0 0
      %794 = vmatprep.subr.bf16.mxu0 0
      %795 = vmatpush1.bf16.msra.mxu0 0
      %796 = vmatprep.subr.bf16.mxu0 0
      %797 = vmatpush1.bf16.msra.mxu0 0
      %798 = vmatprep.subr.bf16.mxu0 0
      %799 = vmatpush1.bf16.msra.mxu0 %v782
      %800 = vmatprep.subr.bf16.mxu0 0
      %801 = vmatpush2.bf16.msra.mxu0 0
      %802 = vmatprep.subr.bf16.mxu0 0
      %803 = vmatpush2.bf16.msra.mxu0 0
      %804 = vmatprep.subr.bf16.mxu0 0
      %805 = vmatpush2.bf16.msra.mxu0 0
      %806 = vmatprep.subr.bf16.mxu0 0
      %807 = vmatpush2.bf16.msra.mxu0 0
      %808 = vmatprep.subr.bf16.mxu0 0
      %809 = vmatpush2.bf16.msra.mxu0 0
      %810 = vmatprep.subr.bf16.mxu0 0
      %811 = vmatpush2.bf16.msra.mxu0 0
      %812 = vmatprep.subr.bf16.mxu0 0
      %813 = vmatpush2.bf16.msra.mxu0 0
      %814 = vmatprep.subr.bf16.mxu0 0
      %815 = vmatpush2.bf16.msra.mxu0 0
      %816 = vmatprep.mubr.bf16.mxu0 0
      %817 = vmatmul.mubr.bf16.gmra.mxu0 %v779
      %v818 = vpop.f32.mrf.mxu0
      %v819 = vadd.f32 0.0, %v818
      %v820 = vpop.f32.mrf.mxu0
      %v821 = vpop.f32.mrf.mxu0
      %v822 = vpop.f32.mrf.mxu0
      %823 = vdwg.mxu0
      %v824 = vpack.c.bf16 %v819, %v819
      %v826 = vunpack.c.l.b16 %v824
      %v827 = vpack.c.b16 %v826, %v826
      %828 = vrot.lane.b32.xlu0 %v827, 8
      %v829 = vpop.permute.xlu0 %828
      %vm831 = vcmask 126016
      %832 = vst.msk [vmem:[#allocation3] sm:$0xf] %vm831, %v829
      %v833 = vld [vmem:[#allocation2] sm:$0xf]
      %v835 = vunpack.c.l.b16 %v833
      %v836 = vpack.c.b16 %v835, %v835
      %837 = vrot.lane.b32.xlu0 %v836, 112
      %v838 = vpop.permute.xlu0 %837
      %839 = vrot.lane.b32.xlu0 %v836, 80
      %v840 = vpop.permute.xlu0 %839
      %v842 = vsel %vm599, %v838, 0
      %v845 = vsel %vm599, %v840, 0
      %847 = vmatprep.subr.bf16.mxu0 0
      %848 = vmatpush1.bf16.xpose.msra.mxu0 0
      %849 = vmatprep.subr.bf16.mxu0 0
      %850 = vmatpush1.bf16.xpose.msra.mxu0 0
      %851 = vmatprep.subr.bf16.mxu0 0
      %852 = vmatpush1.bf16.xpose.msra.mxu0 0
      %853 = vmatprep.subr.bf16.mxu0 0
      %854 = vmatpush1.bf16.xpose.msra.mxu0 0
      %855 = vmatprep.subr.bf16.mxu0 0
      %856 = vmatpush1.bf16.xpose.msra.mxu0 0
      %857 = vmatprep.subr.bf16.mxu0 0
      %858 = vmatpush1.bf16.xpose.msra.mxu0 0
      %859 = vmatprep.subr.bf16.mxu0 0
      %860 = vmatpush1.bf16.xpose.msra.mxu0 0
      %861 = vmatprep.subr.bf16.mxu0 0
      %862 = vmatpush1.bf16.xpose.msra.mxu0 %v845
      %863 = vmatprep.subr.bf16.mxu0 0
      %864 = vmatpush2.bf16.xpose.msra.mxu0 0
      %865 = vmatprep.subr.bf16.mxu0 0
      %866 = vmatpush2.bf16.xpose.msra.mxu0 0
      %867 = vmatprep.subr.bf16.mxu0 0
      %868 = vmatpush2.bf16.xpose.msra.mxu0 0
      %869 = vmatprep.subr.bf16.mxu0 0
      %870 = vmatpush2.bf16.xpose.msra.mxu0 0
      %871 = vmatprep.subr.bf16.mxu0 0
      %872 = vmatpush2.bf16.xpose.msra.mxu0 0
      %873 = vmatprep.subr.bf16.mxu0 0
      %874 = vmatpush2.bf16.xpose.msra.mxu0 0
      %875 = vmatprep.subr.bf16.mxu0 0
      %876 = vmatpush2.bf16.xpose.msra.mxu0 0
      %877 = vmatprep.subr.bf16.mxu0 0
      %878 = vmatpush2.bf16.xpose.msra.mxu0 0
      %879 = vmatprep.mubr.bf16.mxu0 0
      %880 = vmatmul.mubr.bf16.gmra.mxu0 %v842
      %v881 = vpop.f32.mrf.mxu0
      %v882 = vadd.f32 0.0, %v881
      %v883 = vpop.f32.mrf.mxu0
      %v884 = vpop.f32.mrf.mxu0
      %v885 = vpop.f32.mrf.mxu0
      %886 = vdwg.mxu0
      %v887 = vsel %vm599, %v882, -inf
      %888 = vmax.xlane.f32.xlu0 %v887
      %v889 = vpop.xlane.xlu0 %888
      %v890 = vsub.f32 %v882, %v889
      %v891 = vmul.f32 %v890, 1.442695
      %v892 = vpow.pop %v891
      %v893 = vsel %vm599, %v892, 0.0
      %894 = vadd.xlane.f32.xlu0 %v893
      %v895 = vpop.xlane.xlu0 %894
      %v896 = vrcp.pop %v895
      %v897 = vmul.f32 %v892, %v896
      %v898 = vpack.c.bf16 %v897, %v897
      %899 = vrot.lane.b32.xlu0 %v836, 48
      %v900 = vpop.permute.xlu0 %899
      %v902 = vsel %vm599, %v898, 0
      %v905 = vsel %vm663, %v900, 0
      %907 = vmatprep.subr.bf16.mxu0 0
      %908 = vmatpush1.bf16.msra.mxu0 0
      %909 = vmatprep.subr.bf16.mxu0 0
      %910 = vmatpush1.bf16.msra.mxu0 0
      %911 = vmatprep.subr.bf16.mxu0 0
      %912 = vmatpush1.bf16.msra.mxu0 0
      %913 = vmatprep.subr.bf16.mxu0 0
      %914 = vmatpush1.bf16.msra.mxu0 0
      %915 = vmatprep.subr.bf16.mxu0 0
      %916 = vmatpush1.bf16.msra.mxu0 0
      %917 = vmatprep.subr.bf16.mxu0 0
      %918 = vmatpush1.bf16.msra.mxu0 0
      %919 = vmatprep.subr.bf16.mxu0 0
      %920 = vmatpush1.bf16.msra.mxu0 0
      %921 = vmatprep.subr.bf16.mxu0 0
      %922 = vmatpush1.bf16.msra.mxu0 %v905
      %923 = vmatprep.subr.bf16.mxu0 0
      %924 = vmatpush2.bf16.msra.mxu0 0
      %925 = vmatprep.subr.bf16.mxu0 0
      %926 = vmatpush2.bf16.msra.mxu0 0
      %927 = vmatprep.subr.bf16.mxu0 0
      %928 = vmatpush2.bf16.msra.mxu0 0
      %929 = vmatprep.subr.bf16.mxu0 0
      %930 = vmatpush2.bf16.msra.mxu0 0
      %931 = vmatprep.subr.bf16.mxu0 0
      %932 = vmatpush2.bf16.msra.mxu0 0
      %933 = vmatprep.subr.bf16.mxu0 0
      %934 = vmatpush2.bf16.msra.mxu0 0
      %935 = vmatprep.subr.bf16.mxu0 0
      %936 = vmatpush2.bf16.msra.mxu0 0
      %937 = vmatprep.subr.bf16.mxu0 0
      %938 = vmatpush2.bf16.msra.mxu0 0
      %939 = vmatprep.mubr.bf16.mxu0 0
      %940 = vmatmul.mubr.bf16.gmra.mxu0 %v902
      %v941 = vpop.f32.mrf.mxu0
      %v942 = vadd.f32 0.0, %v941
      %v943 = vpop.f32.mrf.mxu0
      %v944 = vpop.f32.mrf.mxu0
      %v945 = vpop.f32.mrf.mxu0
      %946 = vdwg.mxu0
      %v947 = vpack.c.bf16 %v942, %v942
      %v949 = vunpack.c.l.b16 %v947
      %v950 = vpack.c.b16 %v949, %v949
      %951 = vrot.lane.b32.xlu0 %v950, 16
      %v952 = vpop.permute.xlu0 %951
      %vm954 = vcmask 191616
      %955 = vst.msk [vmem:[#allocation3] sm:$0xf] %vm954, %v952
      %v956 = vld [vmem:[#allocation2] sm:$0xf]
      %v958 = vunpack.c.l.b16 %v956
      %v959 = vpack.c.b16 %v958, %v958
      %960 = vrot.lane.b32.xlu0 %v959, 104
      %v961 = vpop.permute.xlu0 %960
      %962 = vrot.lane.b32.xlu0 %v959, 72
      %v963 = vpop.permute.xlu0 %962
      %v965 = vsel %vm599, %v961, 0
      %v968 = vsel %vm599, %v963, 0
      %970 = vmatprep.subr.bf16.mxu0 0
      %971 = vmatpush1.bf16.xpose.msra.mxu0 0
      %972 = vmatprep.subr.bf16.mxu0 0
      %973 = vmatpush1.bf16.xpose.msra.mxu0 0
      %974 = vmatprep.subr.bf16.mxu0 0
      %975 = vmatpush1.bf16.xpose.msra.mxu0 0
      %976 = vmatprep.subr.bf16.mxu0 0
      %977 = vmatpush1.bf16.xpose.msra.mxu0 0
      %978 = vmatprep.subr.bf16.mxu0 0
      %979 = vmatpush1.bf16.xpose.msra.mxu0 0
      %980 = vmatprep.subr.bf16.mxu0 0
      %981 = vmatpush1.bf16.xpose.msra.mxu0 0
      %982 = vmatprep.subr.bf16.mxu0 0
      %983 = vmatpush1.bf16.xpose.msra.mxu0 0
      %984 = vmatprep.subr.bf16.mxu0 0
      %985 = vmatpush1.bf16.xpose.msra.mxu0 %v968
      %986 = vmatprep.subr.bf16.mxu0 0
      %987 = vmatpush2.bf16.xpose.msra.mxu0 0
      %988 = vmatprep.subr.bf16.mxu0 0
      %989 = vmatpush2.bf16.xpose.msra.mxu0 0
      %990 = vmatprep.subr.bf16.mxu0 0
      %991 = vmatpush2.bf16.xpose.msra.mxu0 0
      %992 = vmatprep.subr.bf16.mxu0 0
      %993 = vmatpush2.bf16.xpose.msra.mxu0 0
      %994 = vmatprep.subr.bf16.mxu0 0
      %995 = vmatpush2.bf16.xpose.msra.mxu0 0
      %996 = vmatprep.subr.bf16.mxu0 0
      %997 = vmatpush2.bf16.xpose.msra.mxu0 0
      %998 = vmatprep.subr.bf16.mxu0 0
      %999 = vmatpush2.bf16.xpose.msra.mxu0 0
      %1000 = vmatprep.subr.bf16.mxu0 0
      %1001 = vmatpush2.bf16.xpose.msra.mxu0 0
      %1002 = vmatprep.mubr.bf16.mxu0 0
      %1003 = vmatmul.mubr.bf16.gmra.mxu0 %v965
      %v1004 = vpop.f32.mrf.mxu0
      %v1005 = vadd.f32 0.0, %v1004
      %v1006 = vpop.f32.mrf.mxu0
      %v1007 = vpop.f32.mrf.mxu0
      %v1008 = vpop.f32.mrf.mxu0
      %1009 = vdwg.mxu0
      %v1010 = vsel %vm599, %v1005, -inf
      %1011 = vmax.xlane.f32.xlu0 %v1010
      %v1012 = vpop.xlane.xlu0 %1011
      %v1013 = vsub.f32 %v1005, %v1012
      %v1014 = vmul.f32 %v1013, 1.442695
      %v1015 = vpow.pop %v1014
      %v1016 = vsel %vm599, %v1015, 0.0
      %1017 = vadd.xlane.f32.xlu0 %v1016
      %v1018 = vpop.xlane.xlu0 %1017
      %v1019 = vrcp.pop %v1018
      %v1020 = vmul.f32 %v1015, %v1019
      %v1021 = vpack.c.bf16 %v1020, %v1020
      %1022 = vrot.lane.b32.xlu0 %v959, 40
      %v1023 = vpop.permute.xlu0 %1022
      %v1025 = vsel %vm599, %v1021, 0
      %v1028 = vsel %vm663, %v1023, 0
      %1030 = vmatprep.subr.bf16.mxu0 0
      %1031 = vmatpush1.bf16.msra.mxu0 0
      %1032 = vmatprep.subr.bf16.mxu0 0
      %1033 = vmatpush1.bf16.msra.mxu0 0
      %1034 = vmatprep.subr.bf16.mxu0 0
      %1035 = vmatpush1.bf16.msra.mxu0 0
      %1036 = vmatprep.subr.bf16.mxu0 0
      %1037 = vmatpush1.bf16.msra.mxu0 0
      %1038 = vmatprep.subr.bf16.mxu0 0
      %1039 = vmatpush1.bf16.msra.mxu0 0
      %1040 = vmatprep.subr.bf16.mxu0 0
      %1041 = vmatpush1.bf16.msra.mxu0 0
      %1042 = vmatprep.subr.bf16.mxu0 0
      %1043 = vmatpush1.bf16.msra.mxu0 0
      %1044 = vmatprep.subr.bf16.mxu0 0
      %1045 = vmatpush1.bf16.msra.mxu0 %v1028
      %1046 = vmatprep.subr.bf16.mxu0 0
      %1047 = vmatpush2.bf16.msra.mxu0 0
      %1048 = vmatprep.subr.bf16.mxu0 0
      %1049 = vmatpush2.bf16.msra.mxu0 0
      %1050 = vmatprep.subr.bf16.mxu0 0
      %1051 = vmatpush2.bf16.msra.mxu0 0
      %1052 = vmatprep.subr.bf16.mxu0 0
      %1053 = vmatpush2.bf16.msra.mxu0 0
      %1054 = vmatprep.subr.bf16.mxu0 0
      %1055 = vmatpush2.bf16.msra.mxu0 0
      %1056 = vmatprep.subr.bf16.mxu0 0
      %1057 = vmatpush2.bf16.msra.mxu0 0
      %1058 = vmatprep.subr.bf16.mxu0 0
      %1059 = vmatpush2.bf16.msra.mxu0 0
      %1060 = vmatprep.subr.bf16.mxu0 0
      %1061 = vmatpush2.bf16.msra.mxu0 0
      %1062 = vmatprep.mubr.bf16.mxu0 0
      %1063 = vmatmul.mubr.bf16.gmra.mxu0 %v1025
      %v1064 = vpop.f32.mrf.mxu0
      %v1065 = vadd.f32 0.0, %v1064
      %v1066 = vpop.f32.mrf.mxu0
      %v1067 = vpop.f32.mrf.mxu0
      %v1068 = vpop.f32.mrf.mxu0
      %1069 = vdwg.mxu0
      %v1070 = vpack.c.bf16 %v1065, %v1065
      %v1072 = vunpack.c.l.b16 %v1070
      %v1073 = vpack.c.b16 %v1072, %v1072
      %1074 = vrot.lane.b32.xlu0 %v1073, 24
      %v1075 = vpop.permute.xlu0 %1074
      %vm1077 = vcmask 257216
      %1078 = vst.msk [vmem:[#allocation3] sm:$0xf] %vm1077, %v1075
      %v1079 = vld [vmem:[#allocation3] sm:$0xf]
      %v1080 = vld [vmem:[%s5] sm:$0xf]
      %v1081 = vld [vmem:[%s5 + $0x4] sm:$0xf]
      %v1082 = vld [vmem:[%s5 + $0x8] sm:$0xf]
      %v1083 = vld [vmem:[%s5 + $0xc] sm:$0xf]
      %v1084 = vld [vmem:[%s6] sm:$0x1]
      %v1086 = vlaneseq
      %v1087 = vshrl.u32 %v1086, 7
      %v1088 = vsub.s32 0, %v1087
      %v1089 = vrot.slane %v1084, %v1088
      %v1095 = vunpack.c.l.b16 %v1080
      %v1096 = vunpack.c.l.b16 %v1081
      %v1097 = vunpack.c.l.b16 %v1082
      %v1098 = vunpack.c.l.b16 %v1083
      %v1099 = vpack.c.b16 %v1096, %v1095
      %v1100 = vpack.c.b16 %v1098, %v1097
      %v1104 = vsel %vm494, %v1079, 0
      %1106 = vmatprep.subr.bf16.mxu0 0
      %1107 = vmatpush1.bf16.msra.mxu0 0
      %1108 = vmatprep.subr.bf16.mxu0 0
      %1109 = vmatpush1.bf16.msra.mxu0 0
      %1110 = vmatprep.subr.bf16.mxu0 0
      %1111 = vmatpush1.bf16.msra.mxu0 0
      %1112 = vmatprep.subr.bf16.mxu0 0
      %1113 = vmatpush1.bf16.msra.mxu0 0
      %1114 = vmatprep.subr.bf16.mxu0 0
      %1115 = vmatpush1.bf16.msra.mxu0 0
      %1116 = vmatprep.subr.bf16.mxu0 0
      %1117 = vmatpush1.bf16.msra.mxu0 0
      %1118 = vmatprep.subr.bf16.mxu0 0
      %1119 = vmatpush1.bf16.msra.mxu0 %v1100
      %1120 = vmatprep.subr.bf16.mxu0 0
      %1121 = vmatpush1.bf16.msra.mxu0 %v1099
      %1122 = vmatprep.subr.bf16.mxu0 0
      %1123 = vmatpush2.bf16.msra.mxu0 0
      %1124 = vmatprep.subr.bf16.mxu0 0
      %1125 = vmatpush2.bf16.msra.mxu0 0
      %1126 = vmatprep.subr.bf16.mxu0 0
      %1127 = vmatpush2.bf16.msra.mxu0 0
      %1128 = vmatprep.subr.bf16.mxu0 0
      %1129 = vmatpush2.bf16.msra.mxu0 0
      %1130 = vmatprep.subr.bf16.mxu0 0
      %1131 = vmatpush2.bf16.msra.mxu0 0
      %1132 = vmatprep.subr.bf16.mxu0 0
      %1133 = vmatpush2.bf16.msra.mxu0 0
      %1134 = vmatprep.subr.bf16.mxu0 0
      %1135 = vmatpush2.bf16.msra.mxu0 0
      %1136 = vmatprep.subr.bf16.mxu0 0
      %1137 = vmatpush2.bf16.msra.mxu0 0
      %1138 = vmatprep.mubr.bf16.mxu0 0
      %1139 = vmatmul.mubr.bf16.gmra.mxu0 %v1104
      %v1140 = vpop.f32.mrf.mxu0
      %v1141 = vadd.f32 %v1089, %v1140
      %v1142 = vpop.f32.mrf.mxu0
      %v1143 = vpop.f32.mrf.mxu0
      %v1144 = vpop.f32.mrf.mxu0
      %1145 = vdwg.mxu0
      %v1146 = vadd.f32 %v491, %v1141
      %v1147 = vld [vmem:[%s7] sm:$0x1]
      %v1148 = vld [vmem:[%s8] sm:$0x1]
      %v1149 = vsel %vm494, %v1146, 0.0
      %1150 = vadd.xlane.f32.xlu0 %v1149
      %v1151 = vpop.xlane.xlu0 %1150
      %v1152 = vmul.f32 %v1151, %v498
      %v1153 = vsub.f32 %v1146, %v1152
      %v1154 = vmul.f32 %v1153, %v1153
      %v1155 = vsel %vm494, %v1154, 0.0
      %1156 = vadd.xlane.f32.xlu0 %v1155
      %v1157 = vpop.xlane.xlu0 %1156
      %v1158 = vmul.f32 %v1157, %v498
      %v1159 = vadd.f32 %v1158, 1e-05
      %v1160 = vrsqrt.pop %v1159
      %v1161 = vmul.f32 %v1153, %v1160
      %v1163 = vlaneseq
      %v1164 = vshrl.u32 %v1163, 7
      %v1165 = vsub.s32 0, %v1164
      %v1166 = vrot.slane %v1147, %v1165
      %v1168 = vmul.f32 %v1166, %v1161
      %v1170 = vlaneseq
      %v1171 = vshrl.u32 %v1170, 7
      %v1172 = vsub.s32 0, %v1171
      %v1173 = vrot.slane %v1148, %v1172
      %v1175 = vadd.f32 %v1168, %v1173
      %v1176 = vpack.c.bf16 %v1175, %v1175
      %v1177 = vld [vmem:[%s9] sm:$0xf]
      %v1178 = vld [vmem:[%s9 + $0x4] sm:$0xf]
      %v1179 = vld [vmem:[%s9 + $0x8] sm:$0xf]
      %v1180 = vld [vmem:[%s9 + $0xc] sm:$0xf]
      %v1181 = vld [vmem:[%s10] sm:$0x1]
      %v1183 = vlaneseq
      %v1184 = vshrl.u32 %v1183, 7
      %v1185 = vsub.s32 0, %v1184
      %v1186 = vrot.slane %v1181, %v1185
      %v1192 = vunpack.c.l.b16 %v1177
      %v1193 = vunpack.c.l.b16 %v1178
      %v1194 = vunpack.c.l.b16 %v1179
      %v1195 = vunpack.c.l.b16 %v1180
      %v1196 = vpack.c.b16 %v1193, %v1192
      %v1197 = vpack.c.b16 %v1195, %v1194
      %v1201 = vsel %vm494, %v1176, 0
      %1203 = vmatprep.subr.bf16.mxu0 0
      %1204 = vmatpush1.bf16.msra.mxu0 0
      %1205 = vmatprep.subr.bf16.mxu0 0
      %1206 = vmatpush1.bf16.msra.mxu0 0
      %1207 = vmatprep.subr.bf16.mxu0 0
      %1208 = vmatpush1.bf16.msra.mxu0 0
      %1209 = vmatprep.subr.bf16.mxu0 0
      %1210 = vmatpush1.bf16.msra.mxu0 0
      %1211 = vmatprep.subr.bf16.mxu0 0
      %1212 = vmatpush1.bf16.msra.mxu0 0
      %1213 = vmatprep.subr.bf16.mxu0 0
      %1214 = vmatpush1.bf16.msra.mxu0 0
      %1215 = vmatprep.subr.bf16.mxu0 0
      %1216 = vmatpush1.bf16.msra.mxu0 %v1197
      %1217 = vmatprep.subr.bf16.mxu0 0
      %1218 = vmatpush1.bf16.msra.mxu0 %v1196
      %1219 = vmatprep.subr.bf16.mxu0 0
      %1220 = vmatpush2.bf16.msra.mxu0 0
      %1221 = vmatprep.subr.bf16.mxu0 0
      %1222 = vmatpush2.bf16.msra.mxu0 0
      %1223 = vmatprep.subr.bf16.mxu0 0
      %1224 = vmatpush2.bf16.msra.mxu0 0
      %1225 = vmatprep.subr.bf16.mxu0 0
      %1226 = vmatpush2.bf16.msra.mxu0 0
      %1227 = vmatprep.subr.bf16.mxu0 0
      %1228 = vmatpush2.bf16.msra.mxu0 0
      %1229 = vmatprep.subr.bf16.mxu0 0
      %1230 = vmatpush2.bf16.msra.mxu0 0
      %1231 = vmatprep.subr.bf16.mxu0 0
      %1232 = vmatpush2.bf16.msra.mxu0 0
      %1233 = vmatprep.subr.bf16.mxu0 0
      %1234 = vmatpush2.bf16.msra.mxu0 0
      %1235 = vmatprep.mubr.bf16.mxu0 0
      %1236 = vmatmul.mubr.bf16.gmra.mxu0 %v1201
      %v1237 = vpop.f32.mrf.mxu0
      %v1238 = vadd.f32 %v1186, %v1237
      %v1239 = vpop.f32.mrf.mxu0
      %v1240 = vpop.f32.mrf.mxu0
      %v1241 = vpop.f32.mrf.mxu0
      %1242 = vdwg.mxu0
      %v1243 = vmax.f32 %v1238, 0.0
      %v1244 = vpack.c.bf16 %v1243, %v1243
      %v1245 = vld [vmem:[%s11] sm:$0xf]
      %v1246 = vld [vmem:[%s11 + $0x4] sm:$0xf]
      %v1247 = vld [vmem:[%s11 + $0x8] sm:$0xf]
      %v1248 = vld [vmem:[%s11 + $0xc] sm:$0xf]
      %v1249 = vld [vmem:[%s11 + $0x10] sm:$0xf]
      %v1250 = vld [vmem:[%s11 + $0x14] sm:$0xf]
      %v1251 = vld [vmem:[%s11 + $0x18] sm:$0xf]
      %v1252 = vld [vmem:[%s11 + $0x1c] sm:$0xf]
      %v1253 = vld [vmem:[%s12] sm:$0x1]
      %v1255 = vlaneseq
      %v1256 = vshrl.u32 %v1255, 7
      %v1257 = vsub.s32 0, %v1256
      %v1258 = vrot.slane %v1253, %v1257
      %v1268 = vunpack.c.l.b16 %v1245
      %v1269 = vunpack.c.l.b16 %v1246
      %v1270 = vunpack.c.l.b16 %v1247
      %v1271 = vunpack.c.l.b16 %v1248
      %v1272 = vunpack.c.l.b16 %v1249
      %v1273 = vunpack.c.l.b16 %v1250
      %v1274 = vunpack.c.l.b16 %v1251
      %v1275 = vunpack.c.l.b16 %v1252
      %v1276 = vpack.c.b16 %v1269, %v1268
      %v1277 = vpack.c.b16 %v1271, %v1270
      %v1278 = vpack.c.b16 %v1273, %v1272
      %v1279 = vpack.c.b16 %v1275, %v1274
      %vm1284 = vcmask 523264
      %v1286 = vsel %vm1284, %v1244, 0
      %1288 = vmatprep.subr.bf16.mxu0 0
      %1289 = vmatpush1.bf16.msra.mxu0 0
      %1290 = vmatprep.subr.bf16.mxu0 0
      %1291 = vmatpush1.bf16.msra.mxu0 0
      %1292 = vmatprep.subr.bf16.mxu0 0
      %1293 = vmatpush1.bf16.msra.mxu0 0
      %1294 = vmatprep.subr.bf16.mxu0 0
      %1295 = vmatpush1.bf16.msra.mxu0 0
      %1296 = vmatprep.subr.bf16.mxu0 0
      %1297 = vmatpush1.bf16.msra.mxu0 %v1279
      %1298 = vmatprep.subr.bf16.mxu0 0
      %1299 = vmatpush1.bf16.msra.mxu0 %v1278
      %1300 = vmatprep.subr.bf16.mxu0 0
      %1301 = vmatpush1.bf16.msra.mxu0 %v1277
      %1302 = vmatprep.subr.bf16.mxu0 0
      %1303 = vmatpush1.bf16.msra.mxu0 %v1276
      %1304 = vmatprep.subr.bf16.mxu0 0
      %1305 = vmatpush2.bf16.msra.mxu0 0
      %1306 = vmatprep.subr.bf16.mxu0 0
      %1307 = vmatpush2.bf16.msra.mxu0 0
      %1308 = vmatprep.subr.bf16.mxu0 0
      %1309 = vmatpush2.bf16.msra.mxu0 0
      %1310 = vmatprep.subr.bf16.mxu0 0
      %1311 = vmatpush2.bf16.msra.mxu0 0
      %1312 = vmatprep.subr.bf16.mxu0 0
      %1313 = vmatpush2.bf16.msra.mxu0 0
      %1314 = vmatprep.subr.bf16.mxu0 0
      %1315 = vmatpush2.bf16.msra.mxu0 0
      %1316 = vmatprep.subr.bf16.mxu0 0
      %1317 = vmatpush2.bf16.msra.mxu0 0
      %1318 = vmatprep.subr.bf16.mxu0 0
      %1319 = vmatpush2.bf16.msra.mxu0 0
      %1320 = vmatprep.mubr.bf16.mxu0 0
      %1321 = vmatmul.mubr.bf16.gmra.mxu0 %v1286
      %v1322 = vpop.f32.mrf.mxu0
      %v1323 = vadd.f32 %v1258, %v1322
      %v1324 = vpop.f32.mrf.mxu0
      %v1325 = vpop.f32.mrf.mxu0
      %v1326 = vpop.f32.mrf.mxu0
      %1327 = vdwg.mxu0
      %v1328 = vadd.f32 %v1146, %v1323
      %1329 = vst.msk [vmem:[%s489] sm:$0xff] %vm494, %v1328
      %p1330 = scmp.lt.s32.totalorder %s26, 1
      %s1331 = scalar_select %p1330, %s26, 1
      %s1332 = smul.addr %s1331, 8
      %s1333 = scalar_lea.vmem %s15, %s1332
      // Predicated region
      $region81: #{encoder_forward.4} parent=79 // pred_check
        %p1334 = pneg %p364
      $region82: #{encoder_forward.4} parent=79 // pred_check_branch
        %1336 = sbr.rel (%p1334) target = $region84
      $region83: #{encoder_forward.4} parent=79 // pred_region
        _
      $region84: #{encoder_forward.4} parent=79 // pred_fallthru
        _
    $region80: #{encoder_forward.4} parent=5 // pred_fallthru
      _
    %p1337 = scmp.le.s32.totalorder 2, %s21
    // Predicated region
    $region85: #{encoder_forward.4} parent=5 // pred_check
      %p1338 = pneg %p1337
    $region86: #{encoder_forward.4} parent=5 // pred_check_branch
      %1340 = sbr.rel (%p1338) target = $region88
    $region87: #{encoder_forward.4} parent=5 // pred_region
      %s1341 = ssub.s32 %s21, 2
      // Predicated region
      $region89: #{encoder_forward.4} parent=87 // pred_check
        %p1342 = pneg %p370
      $region90: #{encoder_forward.4} parent=87 // pred_check_branch
        %1344 = sbr.rel (%p1342) target = $region92
      $region91: #{encoder_forward.4} parent=87 // pred_region
        %p1345 = scmp.lt.s32.totalorder %s27, 1
        %s1346 = scalar_select %p1345, %s27, 1
        %s1347 = smul.addr %s1346, 8
        %s1348 = scalar_lea.vmem %s15, %s1347
      $region92: #{encoder_forward.4} parent=87 // pred_fallthru
        _
    $region88: #{encoder_forward.4} parent=5 // pred_fallthru
      _
  $region6: #{encoder_forward.4} parent=0 // loop_footer
    %s25 = sadd.s32 1, %s21
  $region7: #{encoder_forward.4} parent=0 // loop_footer_branch
    %20 = sbr.rel target = $region3
  $region8: #{encoder_forward.4} parent=0 // loop_exit
    _

</llo_original>
